<compile_context>
chip_gen: v7x
topology: tpu7x:2x2x1
jax: 0.10.0
libtpu: 0.0.40
codegen_flags: <defaults>
</compile_context>

<pallas_src>
import functools

import jax
import jax.numpy as jnp
from jax.experimental import pallas as pl
from jax.experimental.pallas import tpu as pltpu

LATENT_DIM = 20
IN_DIM = 784
HID_DIM = 400
PACK = 128          # lane-dense packed width for the latent path
LOGVAR_OFF = 64     # logvar lanes start here inside the packed slab
SUBLANE = 16        # bf16 minimum sublane tile

assert LOGVAR_OFF >= LATENT_DIM and LOGVAR_OFF + LATENT_DIM <= PACK


def _round_up(x, m):
    return ((x + m - 1) // m) * m


def vae_kernel(x_ref, eps_ref,
               w1_ref, b1_ref,
               wml_ref, bml_ref,
               w3_ref, b3_ref,
               w4_ref, b4_ref,
               recon_ref, ml_ref):
    f32 = jnp.float32
    bf16 = jnp.bfloat16

    # ---- encode: h1 = relu(x @ W1 + b1) ------------------------------------
    h1 = jnp.dot(x_ref[...], w1_ref[...], preferred_element_type=f32) + b1_ref[...]
    h1 = jnp.maximum(h1, 0.0)                                     # (tb, 400) f32

    # ---- fused mu/logvar projection (single 128-wide MXU pass) -------------
    # wml packs fc21 into lanes [0:20) and fc22 into lanes [64:84); other
    # lanes are zero-padded, so they come out exactly 0 + 0 bias.
    ml = jnp.dot(h1.astype(bf16), wml_ref[...],
                 preferred_element_type=f32) + bml_ref[...]       # (tb, 128)
    ml_ref[...] = ml                                              # lane-dense store

    # ---- reparameterize with no cross-lane movement ------------------------
    lane = jax.lax.broadcasted_iota(jnp.int32, (1, PACK), 1)
    mu_mask = (lane < LATENT_DIM).astype(f32)                     # lanes [0:20)
    lv_mask = jnp.logical_and(lane >= LOGVAR_OFF,
                              lane < LOGVAR_OFF + LATENT_DIM).astype(f32)

    # std lives in the logvar lanes [64:84); other lanes see exp(0) = 1 but
    # eps is zero there, so they contribute nothing.
    std = jnp.exp(0.5 * ml * lv_mask)
    # zz carries mu in lanes [0:20) and eps*std in lanes [64:84).  w3_ref has
    # fc3's weight duplicated into BOTH lane groups, so the contraction below
    # equals (mu + eps*std) @ W3 without ever aligning the two lane groups.
    zz = ml * mu_mask + eps_ref[...] * std                        # (tb, 128) f32

    # ---- decode: h3 = relu(zz @ W3dup + b3); recon = sigmoid(h3 @ W4 + b4) -
    h3 = jnp.dot(zz.astype(bf16), w3_ref[...],
                 preferred_element_type=f32) + b3_ref[...]
    h3 = jnp.maximum(h3, 0.0)                                     # (tb, 400)
    logits = jnp.dot(h3.astype(bf16), w4_ref[...],
                     preferred_element_type=f32) + b4_ref[...]
    recon_ref[...] = jax.nn.sigmoid(logits).astype(recon_ref.dtype)


@functools.partial(jax.jit, static_argnames=("tb_max",))
def vae_forward(x_img, eps, kparams, *, tb_max=512):
    """x_img: (B, 1, 28, 28) float32; eps: (B, LATENT_DIM) standard normal.

    Returns (recon (B, 784) bf16, mu (B, 20) f32, logvar (B, 20) f32) — same
    semantics as VAE.forward(x) == (decode(z), mu, logvar) in PyTorch.
    """
    B = x_img.shape[0]
    # == x.view(-1, 784); cast to bf16 in the wrapper so the dominant input
    # DMA is half-width (kernel downcasts before the MXU anyway).
    x = x_img.reshape(B, -1).astype(jnp.bfloat16)

    # Batch-tile selection:
    #  * multiple of 16 sublanes (bf16 (16,128) tile constraint),
    #  * >= 2 grid steps whenever B allows it (v7x megacore: one "parallel"
    #    axis split across both TensorCores),
    #  * capped at tb_max (512 default keeps VMEM under v5e's scoped budget).
    if B >= 2 * SUBLANE:
        tb = min(tb_max, _round_up(-(-B // 2), SUBLANE))
    else:
        tb = _round_up(max(B, 1), SUBLANE)
    tb = _round_up(tb, SUBLANE)
    Bp = _round_up(B, tb)

    xp = jnp.pad(x, ((0, Bp - B), (0, 0)))
    # eps goes into lanes [64:84) so it lines up with the logvar lanes.
    epsp = jnp.pad(eps.astype(jnp.float32),
                   ((0, Bp - B), (LOGVAR_OFF, PACK - LOGVAR_OFF - LATENT_DIM)))

    w1, b1, wml, bml, w3d, b3, w4, b4 = kparams
    weights = (w1, b1, wml, bml, w3d, b3, w4, b4)

    grid = (Bp // tb,)

    def row_spec(ncols):
        return pl.BlockSpec((tb, ncols), lambda i: (i, 0))

    def const_spec(arr):
        # Constant block index -> stays resident in VMEM across grid steps.
        return pl.BlockSpec(arr.shape, lambda i: (0, 0))

    in_specs = [row_spec(IN_DIM), row_spec(PACK)] + [const_spec(a) for a in weights]
    out_specs = (row_spec(IN_DIM), row_spec(PACK))
    out_shapes = (
        jax.ShapeDtypeStruct((Bp, IN_DIM), jnp.bfloat16),  # reconstruction (bf16)
        jax.ShapeDtypeStruct((Bp, PACK), jnp.float32),     # packed mu/logvar
    )

    flops = 2 * Bp * (IN_DIM * HID_DIM + HID_DIM * PACK
                      + PACK * HID_DIM + HID_DIM * IN_DIM)
    weight_bytes = sum(int(a.size) * a.dtype.itemsize for a in weights)
    io_bytes = (int(xp.size) * xp.dtype.itemsize
                + int(epsp.size) * epsp.dtype.itemsize
                + Bp * IN_DIM * 2 + Bp * PACK * 4)
    cost = pl.CostEstimate(flops=flops,
                           transcendentals=Bp * (PACK + IN_DIM),
                           bytes_accessed=weight_bytes + io_bytes)

    recon_p, ml_p = pl.pallas_call(
        vae_kernel,
        out_shape=out_shapes,
        grid=grid,
        in_specs=in_specs,
        out_specs=out_specs,
        compiler_params=pltpu.CompilerParams(
            dimension_semantics=("parallel",)),
        cost_estimate=cost,
    )(xp, epsp, *weights)

    recon = recon_p[:B]
    mu = ml_p[:B, :LATENT_DIM]
    logvar = ml_p[:B, LOGVAR_OFF:LOGVAR_OFF + LATENT_DIM]
    return recon, mu, logvar


# ----------------------------- parameter setup -------------------------------

def init_linear(key, in_dim, out_dim):
    """Deterministic init mimicking torch.nn.Linear default (uniform ±1/sqrt(in))."""
    kw, kb = jax.random.split(key)
    bound = 1.0 / (in_dim ** 0.5)
    # Stored as (in, out) — i.e. PyTorch weight transposed.
    w = jax.random.uniform(kw, (in_dim, out_dim), jnp.float32, -bound, bound)
    b = jax.random.uniform(kb, (1, out_dim), jnp.float32, -bound, bound)
    return w, b


def init_params(key):
    k1, k21, k22, k3, k4 = jax.random.split(key, 5)
    return (
        init_linear(k1, IN_DIM, HID_DIM),        # fc1
        init_linear(k21, HID_DIM, LATENT_DIM),   # fc21 (mu)
        init_linear(k22, HID_DIM, LATENT_DIM),   # fc22 (logvar)
        init_linear(k3, LATENT_DIM, HID_DIM),    # fc3
        init_linear(k4, HID_DIM, IN_DIM),        # fc4
    )


def pack_params(params):
    """Convert f32 (in,out) linear params into the kernel layout:
    bf16 weights, fused/zero-padded latent projections, f32 biases."""
    (w1, b1), (w21, b21), (w22, b22), (w3, b3), (w4, b4) = params
    bf16 = jnp.bfloat16

    # fc21 in lanes [0:20), fc22 in lanes [64:84), zeros elsewhere.
    wml = jnp.zeros((HID_DIM, PACK), jnp.float32)
    wml = wml.at[:, :LATENT_DIM].set(w21)
    wml = wml.at[:, LOGVAR_OFF:LOGVAR_OFF + LATENT_DIM].set(w22)
    bml = jnp.zeros((1, PACK), jnp.float32)
    bml = bml.at[:, :LATENT_DIM].set(b21)
    bml = bml.at[:, LOGVAR_OFF:LOGVAR_OFF + LATENT_DIM].set(b22)

    # fc3 weight duplicated into the mu lanes AND the eps*std lanes so the
    # decoder computes (mu + eps*std) @ W3 in one contraction (no lane roll).
    w3d = jnp.zeros((PACK, HID_DIM), jnp.float32)
    w3d = w3d.at[:LATENT_DIM, :].set(w3)
    w3d = w3d.at[LOGVAR_OFF:LOGVAR_OFF + LATENT_DIM, :].set(w3)

    return (w1.astype(bf16), b1,
            wml.astype(bf16), bml,
            w3d.astype(bf16), b3,
            w4.astype(bf16), b4)


def vae_reference(x_img, eps, params):
    """Pure-JAX reference using the same bf16-weight / f32-accumulate math."""
    (w1, b1), (w21, b21), (w22, b22), (w3, b3), (w4, b4) = params
    bf16, f32 = jnp.bfloat16, jnp.float32
    x = x_img.reshape(x_img.shape[0], -1).astype(f32)
    h1 = jnp.maximum(
        jnp.dot(x.astype(bf16), w1.astype(bf16), preferred_element_type=f32) + b1, 0.0)
    mu = jnp.dot(h1.astype(bf16), w21.astype(bf16), preferred_element_type=f32) + b21
    logvar = jnp.dot(h1.astype(bf16), w22.astype(bf16), preferred_element_type=f32) + b22
    z = mu + eps * jnp.exp(0.5 * logvar)
    h3 = jnp.maximum(
        jnp.dot(z.astype(bf16), w3.astype(bf16), preferred_element_type=f32) + b3, 0.0)
    recon = jax.nn.sigmoid(
        jnp.dot(h3.astype(bf16), w4.astype(bf16), preferred_element_type=f32) + b4)
    return recon, mu, logvar


if __name__ == "__main__":
    key = jax.random.PRNGKey(0)
    k_params, k_x, k_eps, k_x2, k_eps2 = jax.random.split(key, 5)

    params = init_params(k_params)
    kparams = pack_params(params)

    # --- small batch (single grid step) --------------------------------------
    B = 2
    x_img = jax.random.uniform(k_x, (B, 1, 28, 28), jnp.float32)   # NCHW, like MNIST
    # TODO(synk): eps ~ N(0,1) is drawn outside the kernel (torch.randn_like
    # has no matching-PRNG Pallas equivalent; in-kernel pltpu PRNG would also
    # break parity with the pure-JAX reference).
    eps = jax.random.normal(k_eps, (B, LATENT_DIM), jnp.float32)

    recon, mu, logvar = vae_forward(x_img, eps, kparams)
    jax.block_until_ready((recon, mu, logvar))

    r_ref, m_ref, lv_ref = vae_reference(x_img, eps, params)
    assert recon.shape == (B, IN_DIM) and mu.shape == (B, LATENT_DIM)
    assert logvar.shape == (B, LATENT_DIM)
    assert jnp.allclose(recon.astype(jnp.float32), r_ref, atol=1e-2), "recon mismatch"
    assert jnp.allclose(mu, m_ref, atol=2e-3), "mu mismatch"
    assert jnp.allclose(logvar, lv_ref, atol=2e-3), "logvar mismatch"

    # --- batch exercising a multi-step grid (padding + pipelining path) ------
    B2 = 40
    x2 = jax.random.uniform(k_x2, (B2, 1, 28, 28), jnp.float32)
    eps2 = jax.random.normal(k_eps2, (B2, LATENT_DIM), jnp.float32)
    recon2, mu2, lv2 = vae_forward(x2, eps2, kparams, tb_max=16)   # grid = (3,)
    jax.block_until_ready((recon2, mu2, lv2))
    r2_ref, m2_ref, lv2_ref = vae_reference(x2, eps2, params)
    assert jnp.allclose(recon2.astype(jnp.float32), r2_ref, atol=1e-2), "recon mismatch (tiled)"
    assert jnp.allclose(mu2, m2_ref, atol=2e-3), "mu mismatch (tiled)"
    assert jnp.allclose(lv2, lv2_ref, atol=2e-3), "logvar mismatch (tiled)"

    print("KERNEL_OK")
</pallas_src>

<mosaic_0001>
module attributes {stable_mosaic.version = 11 : i64} {
  func.func @vae_kernel(%arg0: i32, %arg1: memref<16x784xbf16, #tpu.memory_space<vmem>>, %arg2: memref<16x128xf32, #tpu.memory_space<vmem>>, %arg3: memref<784x400xbf16, #tpu.memory_space<vmem>>, %arg4: memref<1x400xf32, #tpu.memory_space<vmem>>, %arg5: memref<400x128xbf16, #tpu.memory_space<vmem>>, %arg6: memref<1x128xf32, #tpu.memory_space<vmem>>, %arg7: memref<128x400xbf16, #tpu.memory_space<vmem>>, %arg8: memref<1x400xf32, #tpu.memory_space<vmem>>, %arg9: memref<400x784xbf16, #tpu.memory_space<vmem>>, %arg10: memref<1x784xf32, #tpu.memory_space<vmem>>, %arg11: memref<16x784xbf16, #tpu.memory_space<vmem>>, %arg12: memref<16x128xf32, #tpu.memory_space<vmem>>) attributes {dimension_semantics = [#tpu.dimension_semantics<parallel>], iteration_bounds = array<i64: 1>, scalar_prefetch = 0 : i64, scratch_operands = 0 : i64, tpu.core_type = #tpu.core_type<tc>, window_params = [{transform_indices = @transform_0, window_bounds = array<i64: 16, 784>}, {transform_indices = @transform_1, window_bounds = array<i64: 16, 128>}, {pipeline_mode = #tpu.pipeline_mode<synchronous>, transform_indices = @transform_2, window_bounds = array<i64: 784, 400>}, {pipeline_mode = #tpu.pipeline_mode<synchronous>, transform_indices = @transform_3, window_bounds = array<i64: 1, 400>}, {pipeline_mode = #tpu.pipeline_mode<synchronous>, transform_indices = @transform_4, window_bounds = array<i64: 400, 128>}, {pipeline_mode = #tpu.pipeline_mode<synchronous>, transform_indices = @transform_5, window_bounds = array<i64: 1, 128>}, {pipeline_mode = #tpu.pipeline_mode<synchronous>, transform_indices = @transform_6, window_bounds = array<i64: 128, 400>}, {pipeline_mode = #tpu.pipeline_mode<synchronous>, transform_indices = @transform_7, window_bounds = array<i64: 1, 400>}, {pipeline_mode = #tpu.pipeline_mode<synchronous>, transform_indices = @transform_8, window_bounds = array<i64: 400, 784>}, {pipeline_mode = #tpu.pipeline_mode<synchronous>, transform_indices = @transform_9, window_bounds = array<i64: 1, 784>}, {transform_indices = @transform_10, window_bounds = array<i64: 16, 784>}, {transform_indices = @transform_11, window_bounds = array<i64: 16, 128>}]} {
    %c0 = arith.constant 0 : index
    %c0_0 = arith.constant 0 : index
    %0 = vector.load %arg1[%c0, %c0_0] : memref<16x784xbf16, #tpu.memory_space<vmem>>, vector<16x784xbf16>
    %c0_1 = arith.constant 0 : index
    %c0_2 = arith.constant 0 : index
    %1 = vector.load %arg3[%c0_1, %c0_2] : memref<784x400xbf16, #tpu.memory_space<vmem>>, vector<784x400xbf16>
    %cst = arith.constant dense<0.000000e+00> : vector<16x400xf32>
    %2 = tpu.matmul %0, %1, %cst {dimension_numbers = #tpu.dot_dimension_numbers<[1], [0], [0], [1], [0, 0, 1, 1], [], []>} : vector<16x784xbf16>, vector<784x400xbf16>, vector<16x400xf32> -> vector<16x400xf32>
    %c0_3 = arith.constant 0 : index
    %c0_4 = arith.constant 0 : index
    %3 = vector.load %arg4[%c0_3, %c0_4] : memref<1x400xf32, #tpu.memory_space<vmem>>, vector<1x400xf32>
    %4 = vector.broadcast %3 : vector<1x400xf32> to vector<16x400xf32>
    %5 = arith.addf %2, %4 : vector<16x400xf32>
    %cst_5 = arith.constant 0.000000e+00 : f32
    %6 = vector.broadcast %cst_5 : f32 to vector<16x400xf32>
    %7 = arith.maximumf %5, %6 : vector<16x400xf32>
    %8 = arith.truncf %7 : vector<16x400xf32> to vector<16x400xbf16>
    %c0_6 = arith.constant 0 : index
    %c0_7 = arith.constant 0 : index
    %9 = vector.load %arg5[%c0_6, %c0_7] : memref<400x128xbf16, #tpu.memory_space<vmem>>, vector<400x128xbf16>
    %cst_8 = arith.constant dense<0.000000e+00> : vector<16x128xf32>
    %10 = tpu.matmul %8, %9, %cst_8 {dimension_numbers = #tpu.dot_dimension_numbers<[1], [0], [0], [1], [0, 0, 1, 1], [], []>} : vector<16x400xbf16>, vector<400x128xbf16>, vector<16x128xf32> -> vector<16x128xf32>
    %c0_9 = arith.constant 0 : index
    %c0_10 = arith.constant 0 : index
    %11 = vector.load %arg6[%c0_9, %c0_10] : memref<1x128xf32, #tpu.memory_space<vmem>>, vector<1x128xf32>
    %12 = vector.broadcast %11 : vector<1x128xf32> to vector<16x128xf32>
    %13 = arith.addf %10, %12 : vector<16x128xf32>
    %c0_11 = arith.constant 0 : index
    %c0_12 = arith.constant 0 : index
    %14 = vector.load %arg12[%c0_11, %c0_12] : memref<16x128xf32, #tpu.memory_space<vmem>>, vector<16x128xf32>
    tpu.vector_store %arg12[%c0_11, %c0_12], %13 {strides = array<i32>} : memref<16x128xf32, #tpu.memory_space<vmem>>, vector<16x128xf32>,
    %15 = tpu.iota {dimensions = array<i32: 1>} : vector<1x128xi32>
    %c20_i32 = arith.constant 20 : i32
    %16 = vector.broadcast %c20_i32 : i32 to vector<1x128xi32>
    %17 = arith.cmpi slt, %15, %16 : vector<1x128xi32>
    %18 = arith.extui %17 : vector<1x128xi1> to vector<1x128xi32>
    %19 = arith.sitofp %18 : vector<1x128xi32> to vector<1x128xf32>
    %c64_i32 = arith.constant 64 : i32
    %20 = vector.broadcast %c64_i32 : i32 to vector<1x128xi32>
    %21 = arith.cmpi sge, %15, %20 : vector<1x128xi32>
    %c84_i32 = arith.constant 84 : i32
    %22 = vector.broadcast %c84_i32 : i32 to vector<1x128xi32>
    %23 = arith.cmpi slt, %15, %22 : vector<1x128xi32>
    %24 = arith.andi %21, %23 : vector<1x128xi1>
    %25 = arith.extui %24 : vector<1x128xi1> to vector<1x128xi32>
    %26 = arith.sitofp %25 : vector<1x128xi32> to vector<1x128xf32>
    %cst_13 = arith.constant 5.000000e-01 : f32
    %27 = vector.broadcast %cst_13 : f32 to vector<16x128xf32>
    %28 = arith.mulf %27, %13 : vector<16x128xf32>
    %29 = vector.broadcast %26 : vector<1x128xf32> to vector<16x128xf32>
    %30 = arith.mulf %28, %29 : vector<16x128xf32>
    %31 = math.exp %30 : vector<16x128xf32>
    %32 = vector.broadcast %19 : vector<1x128xf32> to vector<16x128xf32>
    %33 = arith.mulf %13, %32 : vector<16x128xf32>
    %c0_14 = arith.constant 0 : index
    %c0_15 = arith.constant 0 : index
    %34 = vector.load %arg2[%c0_14, %c0_15] : memref<16x128xf32, #tpu.memory_space<vmem>>, vector<16x128xf32>
    %35 = arith.mulf %34, %31 : vector<16x128xf32>
    %36 = arith.addf %33, %35 : vector<16x128xf32>
    %37 = arith.truncf %36 : vector<16x128xf32> to vector<16x128xbf16>
    %c0_16 = arith.constant 0 : index
    %c0_17 = arith.constant 0 : index
    %38 = vector.load %arg7[%c0_16, %c0_17] : memref<128x400xbf16, #tpu.memory_space<vmem>>, vector<128x400xbf16>
    %cst_18 = arith.constant dense<0.000000e+00> : vector<16x400xf32>
    %39 = tpu.matmul %37, %38, %cst_18 {dimension_numbers = #tpu.dot_dimension_numbers<[1], [0], [0], [1], [0, 0, 1, 1], [], []>} : vector<16x128xbf16>, vector<128x400xbf16>, vector<16x400xf32> -> vector<16x400xf32>
    %c0_19 = arith.constant 0 : index
    %c0_20 = arith.constant 0 : index
    %40 = vector.load %arg8[%c0_19, %c0_20] : memref<1x400xf32, #tpu.memory_space<vmem>>, vector<1x400xf32>
    %41 = vector.broadcast %40 : vector<1x400xf32> to vector<16x400xf32>
    %42 = arith.addf %39, %41 : vector<16x400xf32>
    %cst_21 = arith.constant 0.000000e+00 : f32
    %43 = vector.broadcast %cst_21 : f32 to vector<16x400xf32>
    %44 = arith.maximumf %42, %43 : vector<16x400xf32>
    %45 = arith.truncf %44 : vector<16x400xf32> to vector<16x400xbf16>
    %c0_22 = arith.constant 0 : index
    %c0_23 = arith.constant 0 : index
    %46 = vector.load %arg9[%c0_22, %c0_23] : memref<400x784xbf16, #tpu.memory_space<vmem>>, vector<400x784xbf16>
    %cst_24 = arith.constant dense<0.000000e+00> : vector<16x784xf32>
    %47 = tpu.matmul %45, %46, %cst_24 {dimension_numbers = #tpu.dot_dimension_numbers<[1], [0], [0], [1], [0, 0, 1, 1], [], []>} : vector<16x400xbf16>, vector<400x784xbf16>, vector<16x784xf32> -> vector<16x784xf32>
    %c0_25 = arith.constant 0 : index
    %c0_26 = arith.constant 0 : index
    %48 = vector.load %arg10[%c0_25, %c0_26] : memref<1x784xf32, #tpu.memory_space<vmem>>, vector<1x784xf32>
    %49 = vector.broadcast %48 : vector<1x784xf32> to vector<16x784xf32>
    %50 = arith.addf %47, %49 : vector<16x784xf32>
    %51 = arith.negf %50 : vector<16x784xf32>
    %52 = math.exp %51 : vector<16x784xf32>
    %cst_27 = arith.constant 1.000000e+00 : f32
    %53 = vector.broadcast %cst_27 : f32 to vector<16x784xf32>
    %54 = arith.addf %53, %52 : vector<16x784xf32>
    %55 = arith.divf %53, %54 : vector<16x784xf32>
    %56 = arith.truncf %55 : vector<16x784xf32> to vector<16x784xbf16>
    %c0_28 = arith.constant 0 : index
    %c0_29 = arith.constant 0 : index
    %57 = vector.load %arg11[%c0_28, %c0_29] : memref<16x784xbf16, #tpu.memory_space<vmem>>, vector<16x784xbf16>
    tpu.vector_store %arg11[%c0_28, %c0_29], %56 {strides = array<i32>} : memref<16x784xbf16, #tpu.memory_space<vmem>>, vector<16x784xbf16>,
    return
  }
  func.func @transform_0(%arg0: i32) -> (i32, i32) {
    %c0_i32 = arith.constant 0 : i32
    %c0_i32_0 = arith.constant 0 : i32
    return %arg0, %c0_i32 : i32, i32
  }
  func.func @transform_1(%arg0: i32) -> (i32, i32) {
    %c0_i32 = arith.constant 0 : i32
    %c0_i32_0 = arith.constant 0 : i32
    return %arg0, %c0_i32 : i32, i32
  }
  func.func @transform_2(%arg0: i32) -> (i32, i32) {
    %c0_i32 = arith.constant 0 : i32
    %c0_i32_0 = arith.constant 0 : i32
    %c0_i32_1 = arith.constant 0 : i32
    return %c0_i32, %c0_i32_0 : i32, i32
  }
  func.func @transform_3(%arg0: i32) -> (i32, i32) {
    %c0_i32 = arith.constant 0 : i32
    %c0_i32_0 = arith.constant 0 : i32
    %c0_i32_1 = arith.constant 0 : i32
    return %c0_i32, %c0_i32_0 : i32, i32
  }
  func.func @transform_4(%arg0: i32) -> (i32, i32) {
    %c0_i32 = arith.constant 0 : i32
    %c0_i32_0 = arith.constant 0 : i32
    %c0_i32_1 = arith.constant 0 : i32
    return %c0_i32, %c0_i32_0 : i32, i32
  }
  func.func @transform_5(%arg0: i32) -> (i32, i32) {
    %c0_i32 = arith.constant 0 : i32
    %c0_i32_0 = arith.constant 0 : i32
    %c0_i32_1 = arith.constant 0 : i32
    return %c0_i32, %c0_i32_0 : i32, i32
  }
  func.func @transform_6(%arg0: i32) -> (i32, i32) {
    %c0_i32 = arith.constant 0 : i32
    %c0_i32_0 = arith.constant 0 : i32
    %c0_i32_1 = arith.constant 0 : i32
    return %c0_i32, %c0_i32_0 : i32, i32
  }
  func.func @transform_7(%arg0: i32) -> (i32, i32) {
    %c0_i32 = arith.constant 0 : i32
    %c0_i32_0 = arith.constant 0 : i32
    %c0_i32_1 = arith.constant 0 : i32
    return %c0_i32, %c0_i32_0 : i32, i32
  }
  func.func @transform_8(%arg0: i32) -> (i32, i32) {
    %c0_i32 = arith.constant 0 : i32
    %c0_i32_0 = arith.constant 0 : i32
    %c0_i32_1 = arith.constant 0 : i32
    return %c0_i32, %c0_i32_0 : i32, i32
  }
  func.func @transform_9(%arg0: i32) -> (i32, i32) {
    %c0_i32 = arith.constant 0 : i32
    %c0_i32_0 = arith.constant 0 : i32
    %c0_i32_1 = arith.constant 0 : i32
    return %c0_i32, %c0_i32_0 : i32, i32
  }
  func.func @transform_10(%arg0: i32) -> (i32, i32) {
    %c0_i32 = arith.constant 0 : i32
    %c0_i32_0 = arith.constant 0 : i32
    return %arg0, %c0_i32 : i32, i32
  }
  func.func @transform_11(%arg0: i32) -> (i32, i32) {
    %c0_i32 = arith.constant 0 : i32
    %c0_i32_0 = arith.constant 0 : i32
    return %arg0, %c0_i32 : i32, i32
  }
}

</mosaic_0001>

<llo_original>
// kernel: vae_forward.1
$region0: #{vae_forward.1}
  #allocation0 [shape = 'u32[]', space=smem, size = 0x4, offset = 0x4, fixed_abs, tag = 'smem constant byte address 0x4 - core index']
  #allocation1 [shape = 'u32[144,128]{1,0:T(1,128)}', space=vmem, size = 0x12000, scoped, tag = 'internal scratch']
  %s0 = inlined_call_operand.vmem [shape: bf16[16,784], index: 0, kind: input, shape index: {}]
  %s1 = inlined_call_operand.vmem [shape: f32[16,128], index: 1, kind: input, shape index: {}]
  %s2 = inlined_call_operand.vmem [shape: bf16[784,400], index: 2, kind: input, shape index: {}]
  %s3 = inlined_call_operand.vmem [shape: f32[1,400], index: 3, kind: input, shape index: {}]
  %s4 = inlined_call_operand.vmem [shape: bf16[400,128], index: 4, kind: input, shape index: {}]
  %s5 = inlined_call_operand.vmem [shape: f32[1,128], index: 5, kind: input, shape index: {}]
  %s6 = inlined_call_operand.vmem [shape: bf16[128,400], index: 6, kind: input, shape index: {}]
  %s7 = inlined_call_operand.vmem [shape: f32[1,400], index: 7, kind: input, shape index: {}]
  %s8 = inlined_call_operand.vmem [shape: bf16[400,784], index: 8, kind: input, shape index: {}]
  %s9 = inlined_call_operand.vmem [shape: f32[1,784], index: 9, kind: input, shape index: {}]
  %s10 = inlined_call_operand.vmem [shape: bf16[16,784], index: 10, kind: output, shape index: {0}]
  %s11 = inlined_call_operand.vmem [shape: f32[16,128], index: 11, kind: output, shape index: {1}]
  %12 = xla_tuple %s10, %s11
  %s13 = sld [smem:[#allocation0]]
  $region58: #{vae_forward.1} parent=0
    _
  %s15 = ssub.s32 1, %s13
  %s16 = scalar_select 0, %s15, %s13
  // Predicated region
  $region2: #{vae_forward.1} parent=0 // pred_check
    _
  $region3: #{vae_forward.1} parent=0 // pred_check_branch
    %18 = sbr.rel (0) target = $region5
  $region4: #{vae_forward.1} parent=0 // pred_region
    _
  $region5: #{vae_forward.1} parent=0 // pred_fallthru
    _
  // Predicated region
  $region6: #{vae_forward.1} parent=0 // pred_check
    _
  $region7: #{vae_forward.1} parent=0 // pred_check_branch
    %20 = sbr.rel (0) target = $region9
  $region8: #{vae_forward.1} parent=0 // pred_region
    _
  $region9: #{vae_forward.1} parent=0 // pred_fallthru
    _
  // Predicated region
  $region10: #{vae_forward.1} parent=0 // pred_check
    _
  $region11: #{vae_forward.1} parent=0 // pred_check_branch
    %22 = sbr.rel (0) target = $region13
  $region12: #{vae_forward.1} parent=0 // pred_region
    _
  $region13: #{vae_forward.1} parent=0 // pred_fallthru
    _
  // Predicated region
  $region14: #{vae_forward.1} parent=0 // pred_check
    _
  $region15: #{vae_forward.1} parent=0 // pred_check_branch
    %24 = sbr.rel (0) target = $region17
  $region16: #{vae_forward.1} parent=0 // pred_region
    _
  $region17: #{vae_forward.1} parent=0 // pred_fallthru
    _
  // Predicated region
  $region18: #{vae_forward.1} parent=0 // pred_check
    _
  $region19: #{vae_forward.1} parent=0 // pred_check_branch
    %26 = sbr.rel (0) target = $region21
  $region20: #{vae_forward.1} parent=0 // pred_region
    _
  $region21: #{vae_forward.1} parent=0 // pred_fallthru
    _
  // Predicated region
  $region22: #{vae_forward.1} parent=0 // pred_check
    _
  $region23: #{vae_forward.1} parent=0 // pred_check_branch
    %28 = sbr.rel (0) target = $region25
  $region24: #{vae_forward.1} parent=0 // pred_region
    _
  $region25: #{vae_forward.1} parent=0 // pred_fallthru
    _
  // Predicated region
  $region26: #{vae_forward.1} parent=0 // pred_check
    _
  $region27: #{vae_forward.1} parent=0 // pred_check_branch
    %30 = sbr.rel (0) target = $region29
  $region28: #{vae_forward.1} parent=0 // pred_region
    _
  $region29: #{vae_forward.1} parent=0 // pred_fallthru
    _
  // Predicated region
  $region30: #{vae_forward.1} parent=0 // pred_check
    _
  $region31: #{vae_forward.1} parent=0 // pred_check_branch
    %32 = sbr.rel (0) target = $region33
  $region32: #{vae_forward.1} parent=0 // pred_region
    _
  $region33: #{vae_forward.1} parent=0 // pred_fallthru
    _
  // Predicated region
  $region34: #{vae_forward.1} parent=0 // pred_check
    _
  $region35: #{vae_forward.1} parent=0 // pred_check_branch
    %34 = sbr.rel (0) target = $region37
  $region36: #{vae_forward.1} parent=0 // pred_region
    _
  $region37: #{vae_forward.1} parent=0 // pred_fallthru
    _
  // Predicated region
  $region38: #{vae_forward.1} parent=0 // pred_check
    _
  $region39: #{vae_forward.1} parent=0 // pred_check_branch
    %36 = sbr.rel (0) target = $region41
  $region40: #{vae_forward.1} parent=0 // pred_region
    _
  $region41: #{vae_forward.1} parent=0 // pred_fallthru
    _
  %v38 = vld [vmem:[%s0] sm:$0xff]
  %v39 = vld [vmem:[%s0 + $0x8] sm:$0xff]
  %v40 = vld [vmem:[%s0 + $0x10] sm:$0xff]
  %v41 = vld [vmem:[%s0 + $0x18] sm:$0xf]
  %v42 = vld [vmem:[%s0 + $0x1c] sm:$0xff]
  %v43 = vld [vmem:[%s0 + $0x24] sm:$0xff]
  %v44 = vld [vmem:[%s0 + $0x2c] sm:$0xff]
  %v45 = vld [vmem:[%s0 + $0x34] sm:$0xf]
  %v46 = vld [vmem:[%s2] sm:$0xff]
  %v47 = vld [vmem:[%s2 + $0x8] sm:$0xff]
  %v48 = vld [vmem:[%s2 + $0x10] sm:$0xff]
  %v49 = vld [vmem:[%s2 + $0x18] sm:$0xff]
  %v50 = vld [vmem:[%s2 + $0x20] sm:$0xff]
  %v51 = vld [vmem:[%s2 + $0x28] sm:$0xff]
  %v52 = vld [vmem:[%s2 + $0x30] sm:$0xff]
  %v53 = vld [vmem:[%s2 + $0x38] sm:$0xff]
  %v54 = vld [vmem:[%s2 + $0x40] sm:$0xff]
  %v55 = vld [vmem:[%s2 + $0x48] sm:$0xff]
  %v56 = vld [vmem:[%s2 + $0x50] sm:$0xff]
  %v57 = vld [vmem:[%s2 + $0x58] sm:$0xff]
  %v58 = vld [vmem:[%s2 + $0x60] sm:$0xff]
  %v59 = vld [vmem:[%s2 + $0x68] sm:$0xff]
  %v60 = vld [vmem:[%s2 + $0x70] sm:$0xff]
  %v61 = vld [vmem:[%s2 + $0x78] sm:$0xff]
  %v62 = vld [vmem:[%s2 + $0x80] sm:$0xff]
  %v63 = vld [vmem:[%s2 + $0x88] sm:$0xff]
  %v64 = vld [vmem:[%s2 + $0x90] sm:$0xff]
  %v65 = vld [vmem:[%s2 + $0x98] sm:$0xff]
  %v66 = vld [vmem:[%s2 + $0xa0] sm:$0xff]
  %v67 = vld [vmem:[%s2 + $0xa8] sm:$0xff]
  %v68 = vld [vmem:[%s2 + $0xb0] sm:$0xff]
  %v69 = vld [vmem:[%s2 + $0xb8] sm:$0xff]
  %v70 = vld [vmem:[%s2 + $0xc0] sm:$0xff]
  %v71 = vld [vmem:[%s2 + $0xc8] sm:$0xff]
  %v72 = vld [vmem:[%s2 + $0xd0] sm:$0xff]
  %v73 = vld [vmem:[%s2 + $0xd8] sm:$0xff]
  %v74 = vld [vmem:[%s2 + $0xe0] sm:$0xff]
  %v75 = vld [vmem:[%s2 + $0xe8] sm:$0xff]
  %v76 = vld [vmem:[%s2 + $0xf0] sm:$0xff]
  %v77 = vld [vmem:[%s2 + $0xf8] sm:$0xff]
  %v78 = vld [vmem:[%s2 + $0x100] sm:$0xff]
  %v79 = vld [vmem:[%s2 + $0x108] sm:$0xff]
  %v80 = vld [vmem:[%s2 + $0x110] sm:$0xff]
  %v81 = vld [vmem:[%s2 + $0x118] sm:$0xff]
  %v82 = vld [vmem:[%s2 + $0x120] sm:$0xff]
  %v83 = vld [vmem:[%s2 + $0x128] sm:$0xff]
  %v84 = vld [vmem:[%s2 + $0x130] sm:$0xff]
  %v85 = vld [vmem:[%s2 + $0x138] sm:$0xff]
  %v86 = vld [vmem:[%s2 + $0x140] sm:$0xff]
  %v87 = vld [vmem:[%s2 + $0x148] sm:$0xff]
  %v88 = vld [vmem:[%s2 + $0x150] sm:$0xff]
  %v89 = vld [vmem:[%s2 + $0x158] sm:$0xff]
  %v90 = vld [vmem:[%s2 + $0x160] sm:$0xff]
  %v91 = vld [vmem:[%s2 + $0x168] sm:$0xff]
  %v92 = vld [vmem:[%s2 + $0x170] sm:$0xff]
  %v93 = vld [vmem:[%s2 + $0x178] sm:$0xff]
  %v94 = vld [vmem:[%s2 + $0x180] sm:$0xff]
  %v95 = vld [vmem:[%s2 + $0x188] sm:$0xff]
  %v96 = vld [vmem:[%s2 + $0x190] sm:$0xff]
  %v97 = vld [vmem:[%s2 + $0x198] sm:$0xff]
  %v98 = vld [vmem:[%s2 + $0x1a0] sm:$0xff]
  %v99 = vld [vmem:[%s2 + $0x1a8] sm:$0xff]
  %v100 = vld [vmem:[%s2 + $0x1b0] sm:$0xff]
  %v101 = vld [vmem:[%s2 + $0x1b8] sm:$0xff]
  %v102 = vld [vmem:[%s2 + $0x1c0] sm:$0xff]
  %v103 = vld [vmem:[%s2 + $0x1c8] sm:$0xff]
  %v104 = vld [vmem:[%s2 + $0x1d0] sm:$0xff]
  %v105 = vld [vmem:[%s2 + $0x1d8] sm:$0xff]
  %v106 = vld [vmem:[%s2 + $0x1e0] sm:$0xff]
  %v107 = vld [vmem:[%s2 + $0x1e8] sm:$0xff]
  %v108 = vld [vmem:[%s2 + $0x1f0] sm:$0xff]
  %v109 = vld [vmem:[%s2 + $0x1f8] sm:$0xff]
  %v110 = vld [vmem:[%s2 + $0x200] sm:$0xff]
  %v111 = vld [vmem:[%s2 + $0x208] sm:$0xff]
  %v112 = vld [vmem:[%s2 + $0x210] sm:$0xff]
  %v113 = vld [vmem:[%s2 + $0x218] sm:$0xff]
  %v114 = vld [vmem:[%s2 + $0x220] sm:$0xff]
  %v115 = vld [vmem:[%s2 + $0x228] sm:$0xff]
  %v116 = vld [vmem:[%s2 + $0x230] sm:$0xff]
  %v117 = vld [vmem:[%s2 + $0x238] sm:$0xff]
  %v118 = vld [vmem:[%s2 + $0x240] sm:$0xff]
  %v119 = vld [vmem:[%s2 + $0x248] sm:$0xff]
  %v120 = vld [vmem:[%s2 + $0x250] sm:$0xff]
  %v121 = vld [vmem:[%s2 + $0x258] sm:$0xff]
  %v122 = vld [vmem:[%s2 + $0x260] sm:$0xff]
  %v123 = vld [vmem:[%s2 + $0x268] sm:$0xff]
  %v124 = vld [vmem:[%s2 + $0x270] sm:$0xff]
  %v125 = vld [vmem:[%s2 + $0x278] sm:$0xff]
  %v126 = vld [vmem:[%s2 + $0x280] sm:$0xff]
  %v127 = vld [vmem:[%s2 + $0x288] sm:$0xff]
  %v128 = vld [vmem:[%s2 + $0x290] sm:$0xff]
  %v129 = vld [vmem:[%s2 + $0x298] sm:$0xff]
  %v130 = vld [vmem:[%s2 + $0x2a0] sm:$0xff]
  %v131 = vld [vmem:[%s2 + $0x2a8] sm:$0xff]
  %v132 = vld [vmem:[%s2 + $0x2b0] sm:$0xff]
  %v133 = vld [vmem:[%s2 + $0x2b8] sm:$0xff]
  %v134 = vld [vmem:[%s2 + $0x2c0] sm:$0xff]
  %v135 = vld [vmem:[%s2 + $0x2c8] sm:$0xff]
  %v136 = vld [vmem:[%s2 + $0x2d0] sm:$0xff]
  %v137 = vld [vmem:[%s2 + $0x2d8] sm:$0xff]
  %v138 = vld [vmem:[%s2 + $0x2e0] sm:$0xff]
  %v139 = vld [vmem:[%s2 + $0x2e8] sm:$0xff]
  %v140 = vld [vmem:[%s2 + $0x2f0] sm:$0xff]
  %v141 = vld [vmem:[%s2 + $0x2f8] sm:$0xff]
  %v142 = vld [vmem:[%s2 + $0x300] sm:$0xff]
  %v143 = vld [vmem:[%s2 + $0x308] sm:$0xff]
  %v144 = vld [vmem:[%s2 + $0x310] sm:$0xff]
  %v145 = vld [vmem:[%s2 + $0x318] sm:$0xff]
  %v146 = vld [vmem:[%s2 + $0x320] sm:$0xff]
  %v147 = vld [vmem:[%s2 + $0x328] sm:$0xff]
  %v148 = vld [vmem:[%s2 + $0x330] sm:$0xff]
  %v149 = vld [vmem:[%s2 + $0x338] sm:$0xff]
  %v150 = vld [vmem:[%s2 + $0x340] sm:$0xff]
  %v151 = vld [vmem:[%s2 + $0x348] sm:$0xff]
  %v152 = vld [vmem:[%s2 + $0x350] sm:$0xff]
  %v153 = vld [vmem:[%s2 + $0x358] sm:$0xff]
  %v154 = vld [vmem:[%s2 + $0x360] sm:$0xff]
  %v155 = vld [vmem:[%s2 + $0x368] sm:$0xff]
  %v156 = vld [vmem:[%s2 + $0x370] sm:$0xff]
  %v157 = vld [vmem:[%s2 + $0x378] sm:$0xff]
  %v158 = vld [vmem:[%s2 + $0x380] sm:$0xff]
  %v159 = vld [vmem:[%s2 + $0x388] sm:$0xff]
  %v160 = vld [vmem:[%s2 + $0x390] sm:$0xff]
  %v161 = vld [vmem:[%s2 + $0x398] sm:$0xff]
  %v162 = vld [vmem:[%s2 + $0x3a0] sm:$0xff]
  %v163 = vld [vmem:[%s2 + $0x3a8] sm:$0xff]
  %v164 = vld [vmem:[%s2 + $0x3b0] sm:$0xff]
  %v165 = vld [vmem:[%s2 + $0x3b8] sm:$0xff]
  %v166 = vld [vmem:[%s2 + $0x3c0] sm:$0xff]
  %v167 = vld [vmem:[%s2 + $0x3c8] sm:$0xff]
  %v168 = vld [vmem:[%s2 + $0x3d0] sm:$0xff]
  %v169 = vld [vmem:[%s2 + $0x3d8] sm:$0xff]
  %v170 = vld [vmem:[%s2 + $0x3e0] sm:$0xff]
  %v171 = vld [vmem:[%s2 + $0x3e8] sm:$0xff]
  %v172 = vld [vmem:[%s2 + $0x3f0] sm:$0xff]
  %v173 = vld [vmem:[%s2 + $0x3f8] sm:$0xff]
  %v174 = vld [vmem:[%s2 + $0x400] sm:$0xff]
  %v175 = vld [vmem:[%s2 + $0x408] sm:$0xff]
  %v176 = vld [vmem:[%s2 + $0x410] sm:$0xff]
  %v177 = vld [vmem:[%s2 + $0x418] sm:$0xff]
  %v178 = vld [vmem:[%s2 + $0x420] sm:$0xff]
  %v179 = vld [vmem:[%s2 + $0x428] sm:$0xff]
  %v180 = vld [vmem:[%s2 + $0x430] sm:$0xff]
  %v181 = vld [vmem:[%s2 + $0x438] sm:$0xff]
  %v182 = vld [vmem:[%s2 + $0x440] sm:$0xff]
  %v183 = vld [vmem:[%s2 + $0x448] sm:$0xff]
  %v184 = vld [vmem:[%s2 + $0x450] sm:$0xff]
  %v185 = vld [vmem:[%s2 + $0x458] sm:$0xff]
  %v186 = vld [vmem:[%s2 + $0x460] sm:$0xff]
  %v187 = vld [vmem:[%s2 + $0x468] sm:$0xff]
  %v188 = vld [vmem:[%s2 + $0x470] sm:$0xff]
  %v189 = vld [vmem:[%s2 + $0x478] sm:$0xff]
  %v190 = vld [vmem:[%s2 + $0x480] sm:$0xff]
  %v191 = vld [vmem:[%s2 + $0x488] sm:$0xff]
  %v192 = vld [vmem:[%s2 + $0x490] sm:$0xff]
  %v193 = vld [vmem:[%s2 + $0x498] sm:$0xff]
  %v194 = vld [vmem:[%s2 + $0x4a0] sm:$0xff]
  %v195 = vld [vmem:[%s2 + $0x4a8] sm:$0xff]
  %v196 = vld [vmem:[%s2 + $0x4b0] sm:$0xff]
  %v197 = vld [vmem:[%s2 + $0x4b8] sm:$0xff]
  %v198 = vld [vmem:[%s2 + $0x4c0] sm:$0xff]
  %v199 = vld [vmem:[%s2 + $0x4c8] sm:$0xff]
  %v200 = vld [vmem:[%s2 + $0x4d0] sm:$0xff]
  %v201 = vld [vmem:[%s2 + $0x4d8] sm:$0xff]
  %v202 = vld [vmem:[%s2 + $0x4e0] sm:$0xff]
  %v203 = vld [vmem:[%s2 + $0x4e8] sm:$0xff]
  %v204 = vld [vmem:[%s2 + $0x4f0] sm:$0xff]
  %v205 = vld [vmem:[%s2 + $0x4f8] sm:$0xff]
  %v206 = vld [vmem:[%s2 + $0x500] sm:$0xff]
  %v207 = vld [vmem:[%s2 + $0x508] sm:$0xff]
  %v208 = vld [vmem:[%s2 + $0x510] sm:$0xff]
  %v209 = vld [vmem:[%s2 + $0x518] sm:$0xff]
  %v210 = vld [vmem:[%s2 + $0x520] sm:$0xff]
  %v211 = vld [vmem:[%s2 + $0x528] sm:$0xff]
  %v212 = vld [vmem:[%s2 + $0x530] sm:$0xff]
  %v213 = vld [vmem:[%s2 + $0x538] sm:$0xff]
  %v214 = vld [vmem:[%s2 + $0x540] sm:$0xff]
  %v215 = vld [vmem:[%s2 + $0x548] sm:$0xff]
  %v216 = vld [vmem:[%s2 + $0x550] sm:$0xff]
  %v217 = vld [vmem:[%s2 + $0x558] sm:$0xff]
  %v218 = vld [vmem:[%s2 + $0x560] sm:$0xff]
  %v219 = vld [vmem:[%s2 + $0x568] sm:$0xff]
  %v220 = vld [vmem:[%s2 + $0x570] sm:$0xff]
  %v221 = vld [vmem:[%s2 + $0x578] sm:$0xff]
  %v222 = vld [vmem:[%s2 + $0x580] sm:$0xff]
  %v223 = vld [vmem:[%s2 + $0x588] sm:$0xff]
  %v224 = vld [vmem:[%s2 + $0x590] sm:$0xff]
  %v225 = vld [vmem:[%s2 + $0x598] sm:$0xff]
  %v226 = vld [vmem:[%s2 + $0x5a0] sm:$0xff]
  %v227 = vld [vmem:[%s2 + $0x5a8] sm:$0xff]
  %v228 = vld [vmem:[%s2 + $0x5b0] sm:$0xff]
  %v229 = vld [vmem:[%s2 + $0x5b8] sm:$0xff]
  %v230 = vld [vmem:[%s2 + $0x5c0] sm:$0xff]
  %v231 = vld [vmem:[%s2 + $0x5c8] sm:$0xff]
  %v232 = vld [vmem:[%s2 + $0x5d0] sm:$0xff]
  %v233 = vld [vmem:[%s2 + $0x5d8] sm:$0xff]
  %v234 = vld [vmem:[%s2 + $0x5e0] sm:$0xff]
  %v235 = vld [vmem:[%s2 + $0x5e8] sm:$0xff]
  %v236 = vld [vmem:[%s2 + $0x5f0] sm:$0xff]
  %v237 = vld [vmem:[%s2 + $0x5f8] sm:$0xff]
  %v238 = vld [vmem:[%s2 + $0x600] sm:$0xff]
  %v239 = vld [vmem:[%s2 + $0x608] sm:$0xff]
  %v240 = vld [vmem:[%s2 + $0x610] sm:$0xff]
  %v241 = vld [vmem:[%s2 + $0x618] sm:$0xff]
  %v242 = vld [vmem:[%s3] sm:$0xf]
  %v244 = vlaneseq
  %v245 = vshrl.u32 %v244, 7
  %v246 = vsub.s32 0, %v245
  %v247 = vrot.slane %v242, %v246
  %v248 = vlaneseq
  %v249 = vshrl.u32 %v248, 7
  %v250 = vsub.s32 1, %v249
  %v251 = vrot.slane %v242, %v250
  %v252 = vlaneseq
  %v253 = vshrl.u32 %v252, 7
  %v254 = vsub.s32 2, %v253
  %v255 = vrot.slane %v242, %v254
  %v256 = vlaneseq
  %v257 = vshrl.u32 %v256, 7
  %v258 = vsub.s32 3, %v257
  %v259 = vrot.slane %v242, %v258
  %v272 = vunpack.c.l.b16 %v38
  %v273 = vunpack.c.h.b16 %v38
  %v274 = vunpack.c.l.b16 %v39
  %v275 = vunpack.c.h.b16 %v39
  %v276 = vunpack.c.l.b16 %v40
  %v277 = vunpack.c.h.b16 %v40
  %v278 = vunpack.c.l.b16 %v41
  %v279 = vunpack.c.l.b16 %v42
  %v280 = vunpack.c.h.b16 %v42
  %v281 = vunpack.c.l.b16 %v43
  %v282 = vunpack.c.h.b16 %v43
  %v283 = vunpack.c.l.b16 %v44
  %v284 = vunpack.c.h.b16 %v44
  %v285 = vunpack.c.l.b16 %v45
  %v286 = vpack.c.b16 %v279, %v272
  %v287 = vpack.c.b16 %v280, %v273
  %v288 = vpack.c.b16 %v281, %v274
  %v289 = vpack.c.b16 %v282, %v275
  %v290 = vpack.c.b16 %v283, %v276
  %v291 = vpack.c.b16 %v284, %v277
  %v292 = vpack.c.b16 %v285, %v278
  %v495 = vunpack.c.l.b16 %v46
  %v496 = vunpack.c.h.b16 %v46
  %v497 = vunpack.c.l.b16 %v47
  %v498 = vunpack.c.h.b16 %v47
  %v499 = vunpack.c.l.b16 %v48
  %v500 = vunpack.c.h.b16 %v48
  %v501 = vunpack.c.l.b16 %v49
  %v502 = vunpack.c.h.b16 %v49
  %v503 = vunpack.c.l.b16 %v50
  %v504 = vunpack.c.h.b16 %v50
  %v505 = vunpack.c.l.b16 %v51
  %v506 = vunpack.c.h.b16 %v51
  %v507 = vunpack.c.l.b16 %v52
  %v508 = vunpack.c.h.b16 %v52
  %v509 = vunpack.c.l.b16 %v53
  %v510 = vunpack.c.h.b16 %v53
  %v511 = vunpack.c.l.b16 %v54
  %v512 = vunpack.c.h.b16 %v54
  %v513 = vunpack.c.l.b16 %v55
  %v514 = vunpack.c.h.b16 %v55
  %v515 = vunpack.c.l.b16 %v56
  %v516 = vunpack.c.h.b16 %v56
  %v517 = vunpack.c.l.b16 %v57
  %v518 = vunpack.c.h.b16 %v57
  %v519 = vunpack.c.l.b16 %v58
  %v520 = vunpack.c.h.b16 %v58
  %v521 = vunpack.c.l.b16 %v59
  %v522 = vunpack.c.h.b16 %v59
  %v523 = vunpack.c.l.b16 %v60
  %v524 = vunpack.c.h.b16 %v60
  %v525 = vunpack.c.l.b16 %v61
  %v526 = vunpack.c.h.b16 %v61
  %v527 = vunpack.c.l.b16 %v62
  %v528 = vunpack.c.h.b16 %v62
  %v529 = vunpack.c.l.b16 %v63
  %v530 = vunpack.c.h.b16 %v63
  %v531 = vunpack.c.l.b16 %v64
  %v532 = vunpack.c.h.b16 %v64
  %v533 = vunpack.c.l.b16 %v65
  %v534 = vunpack.c.h.b16 %v65
  %v535 = vunpack.c.l.b16 %v66
  %v536 = vunpack.c.h.b16 %v66
  %v537 = vunpack.c.l.b16 %v67
  %v538 = vunpack.c.h.b16 %v67
  %v539 = vunpack.c.l.b16 %v68
  %v540 = vunpack.c.h.b16 %v68
  %v541 = vunpack.c.l.b16 %v69
  %v542 = vunpack.c.h.b16 %v69
  %v543 = vunpack.c.l.b16 %v70
  %v544 = vunpack.c.h.b16 %v70
  %v545 = vunpack.c.l.b16 %v71
  %v546 = vunpack.c.h.b16 %v71
  %v547 = vunpack.c.l.b16 %v72
  %v548 = vunpack.c.h.b16 %v72
  %v549 = vunpack.c.l.b16 %v73
  %v550 = vunpack.c.h.b16 %v73
  %v551 = vunpack.c.l.b16 %v74
  %v552 = vunpack.c.h.b16 %v74
  %v553 = vunpack.c.l.b16 %v75
  %v554 = vunpack.c.h.b16 %v75
  %v555 = vunpack.c.l.b16 %v76
  %v556 = vunpack.c.h.b16 %v76
  %v557 = vunpack.c.l.b16 %v77
  %v558 = vunpack.c.h.b16 %v77
  %v559 = vunpack.c.l.b16 %v78
  %v560 = vunpack.c.h.b16 %v78
  %v561 = vunpack.c.l.b16 %v79
  %v562 = vunpack.c.h.b16 %v79
  %v563 = vunpack.c.l.b16 %v80
  %v564 = vunpack.c.h.b16 %v80
  %v565 = vunpack.c.l.b16 %v81
  %v566 = vunpack.c.h.b16 %v81
  %v567 = vunpack.c.l.b16 %v82
  %v568 = vunpack.c.h.b16 %v82
  %v569 = vunpack.c.l.b16 %v83
  %v570 = vunpack.c.h.b16 %v83
  %v571 = vunpack.c.l.b16 %v84
  %v572 = vunpack.c.h.b16 %v84
  %v573 = vunpack.c.l.b16 %v85
  %v574 = vunpack.c.h.b16 %v85
  %v575 = vunpack.c.l.b16 %v86
  %v576 = vunpack.c.h.b16 %v86
  %v577 = vunpack.c.l.b16 %v87
  %v578 = vunpack.c.h.b16 %v87
  %v579 = vunpack.c.l.b16 %v88
  %v580 = vunpack.c.h.b16 %v88
  %v581 = vunpack.c.l.b16 %v89
  %v582 = vunpack.c.h.b16 %v89
  %v583 = vunpack.c.l.b16 %v90
  %v584 = vunpack.c.h.b16 %v90
  %v585 = vunpack.c.l.b16 %v91
  %v586 = vunpack.c.h.b16 %v91
  %v587 = vunpack.c.l.b16 %v92
  %v588 = vunpack.c.h.b16 %v92
  %v589 = vunpack.c.l.b16 %v93
  %v590 = vunpack.c.h.b16 %v93
  %v591 = vunpack.c.l.b16 %v94
  %v592 = vunpack.c.h.b16 %v94
  %v593 = vunpack.c.l.b16 %v95
  %v594 = vunpack.c.h.b16 %v95
  %v595 = vunpack.c.l.b16 %v96
  %v596 = vunpack.c.h.b16 %v96
  %v597 = vunpack.c.l.b16 %v97
  %v598 = vunpack.c.h.b16 %v97
  %v599 = vunpack.c.l.b16 %v98
  %v600 = vunpack.c.h.b16 %v98
  %v601 = vunpack.c.l.b16 %v99
  %v602 = vunpack.c.h.b16 %v99
  %v603 = vunpack.c.l.b16 %v100
  %v604 = vunpack.c.h.b16 %v100
  %v605 = vunpack.c.l.b16 %v101
  %v606 = vunpack.c.h.b16 %v101
  %v607 = vunpack.c.l.b16 %v102
  %v608 = vunpack.c.h.b16 %v102
  %v609 = vunpack.c.l.b16 %v103
  %v610 = vunpack.c.h.b16 %v103
  %v611 = vunpack.c.l.b16 %v104
  %v612 = vunpack.c.h.b16 %v104
  %v613 = vunpack.c.l.b16 %v105
  %v614 = vunpack.c.h.b16 %v105
  %v615 = vunpack.c.l.b16 %v106
  %v616 = vunpack.c.h.b16 %v106
  %v617 = vunpack.c.l.b16 %v107
  %v618 = vunpack.c.h.b16 %v107
  %v619 = vunpack.c.l.b16 %v108
  %v620 = vunpack.c.h.b16 %v108
  %v621 = vunpack.c.l.b16 %v109
  %v622 = vunpack.c.h.b16 %v109
  %v623 = vunpack.c.l.b16 %v110
  %v624 = vunpack.c.h.b16 %v110
  %v625 = vunpack.c.l.b16 %v111
  %v626 = vunpack.c.h.b16 %v111
  %v627 = vunpack.c.l.b16 %v112
  %v628 = vunpack.c.h.b16 %v112
  %v629 = vunpack.c.l.b16 %v113
  %v630 = vunpack.c.h.b16 %v113
  %v631 = vunpack.c.l.b16 %v114
  %v632 = vunpack.c.h.b16 %v114
  %v633 = vunpack.c.l.b16 %v115
  %v634 = vunpack.c.h.b16 %v115
  %v635 = vunpack.c.l.b16 %v116
  %v636 = vunpack.c.h.b16 %v116
  %v637 = vunpack.c.l.b16 %v117
  %v638 = vunpack.c.h.b16 %v117
  %v639 = vunpack.c.l.b16 %v118
  %v640 = vunpack.c.h.b16 %v118
  %v641 = vunpack.c.l.b16 %v119
  %v642 = vunpack.c.h.b16 %v119
  %v643 = vunpack.c.l.b16 %v120
  %v644 = vunpack.c.h.b16 %v120
  %v645 = vunpack.c.l.b16 %v121
  %v646 = vunpack.c.h.b16 %v121
  %v647 = vunpack.c.l.b16 %v122
  %v648 = vunpack.c.h.b16 %v122
  %v649 = vunpack.c.l.b16 %v123
  %v650 = vunpack.c.h.b16 %v123
  %v651 = vunpack.c.l.b16 %v124
  %v652 = vunpack.c.h.b16 %v124
  %v653 = vunpack.c.l.b16 %v125
  %v654 = vunpack.c.h.b16 %v125
  %v655 = vunpack.c.l.b16 %v126
  %v656 = vunpack.c.h.b16 %v126
  %v657 = vunpack.c.l.b16 %v127
  %v658 = vunpack.c.h.b16 %v127
  %v659 = vunpack.c.l.b16 %v128
  %v660 = vunpack.c.h.b16 %v128
  %v661 = vunpack.c.l.b16 %v129
  %v662 = vunpack.c.h.b16 %v129
  %v663 = vunpack.c.l.b16 %v130
  %v664 = vunpack.c.h.b16 %v130
  %v665 = vunpack.c.l.b16 %v131
  %v666 = vunpack.c.h.b16 %v131
  %v667 = vunpack.c.l.b16 %v132
  %v668 = vunpack.c.h.b16 %v132
  %v669 = vunpack.c.l.b16 %v133
  %v670 = vunpack.c.h.b16 %v133
  %v671 = vunpack.c.l.b16 %v134
  %v672 = vunpack.c.h.b16 %v134
  %v673 = vunpack.c.l.b16 %v135
  %v674 = vunpack.c.h.b16 %v135
  %v675 = vunpack.c.l.b16 %v136
  %v676 = vunpack.c.h.b16 %v136
  %v677 = vunpack.c.l.b16 %v137
  %v678 = vunpack.c.h.b16 %v137
  %v679 = vunpack.c.l.b16 %v138
  %v680 = vunpack.c.h.b16 %v138
  %v681 = vunpack.c.l.b16 %v139
  %v682 = vunpack.c.h.b16 %v139
  %v683 = vunpack.c.l.b16 %v140
  %v684 = vunpack.c.h.b16 %v140
  %v685 = vunpack.c.l.b16 %v141
  %v686 = vunpack.c.h.b16 %v141
  %v687 = vunpack.c.l.b16 %v142
  %v688 = vunpack.c.h.b16 %v142
  %v689 = vunpack.c.l.b16 %v143
  %v690 = vunpack.c.h.b16 %v143
  %v691 = vunpack.c.l.b16 %v144
  %v692 = vunpack.c.h.b16 %v144
  %v693 = vunpack.c.l.b16 %v145
  %v694 = vunpack.c.h.b16 %v145
  %v695 = vunpack.c.l.b16 %v146
  %v696 = vunpack.c.h.b16 %v146
  %v697 = vunpack.c.l.b16 %v147
  %v698 = vunpack.c.h.b16 %v147
  %v699 = vunpack.c.l.b16 %v148
  %v700 = vunpack.c.h.b16 %v148
  %v701 = vunpack.c.l.b16 %v149
  %v702 = vunpack.c.h.b16 %v149
  %v703 = vunpack.c.l.b16 %v150
  %v704 = vunpack.c.h.b16 %v150
  %v705 = vunpack.c.l.b16 %v151
  %v706 = vunpack.c.h.b16 %v151
  %v707 = vunpack.c.l.b16 %v152
  %v708 = vunpack.c.h.b16 %v152
  %v709 = vunpack.c.l.b16 %v153
  %v710 = vunpack.c.h.b16 %v153
  %v711 = vunpack.c.l.b16 %v154
  %v712 = vunpack.c.h.b16 %v154
  %v713 = vunpack.c.l.b16 %v155
  %v714 = vunpack.c.h.b16 %v155
  %v715 = vunpack.c.l.b16 %v156
  %v716 = vunpack.c.h.b16 %v156
  %v717 = vunpack.c.l.b16 %v157
  %v718 = vunpack.c.h.b16 %v157
  %v719 = vunpack.c.l.b16 %v158
  %v720 = vunpack.c.h.b16 %v158
  %v721 = vunpack.c.l.b16 %v159
  %v722 = vunpack.c.h.b16 %v159
  %v723 = vunpack.c.l.b16 %v160
  %v724 = vunpack.c.h.b16 %v160
  %v725 = vunpack.c.l.b16 %v161
  %v726 = vunpack.c.h.b16 %v161
  %v727 = vunpack.c.l.b16 %v162
  %v728 = vunpack.c.h.b16 %v162
  %v729 = vunpack.c.l.b16 %v163
  %v730 = vunpack.c.h.b16 %v163
  %v731 = vunpack.c.l.b16 %v164
  %v732 = vunpack.c.h.b16 %v164
  %v733 = vunpack.c.l.b16 %v165
  %v734 = vunpack.c.h.b16 %v165
  %v735 = vunpack.c.l.b16 %v166
  %v736 = vunpack.c.h.b16 %v166
  %v737 = vunpack.c.l.b16 %v167
  %v738 = vunpack.c.h.b16 %v167
  %v739 = vunpack.c.l.b16 %v168
  %v740 = vunpack.c.h.b16 %v168
  %v741 = vunpack.c.l.b16 %v169
  %v742 = vunpack.c.h.b16 %v169
  %v743 = vunpack.c.l.b16 %v170
  %v744 = vunpack.c.h.b16 %v170
  %v745 = vunpack.c.l.b16 %v171
  %v746 = vunpack.c.h.b16 %v171
  %v747 = vunpack.c.l.b16 %v172
  %v748 = vunpack.c.h.b16 %v172
  %v749 = vunpack.c.l.b16 %v173
  %v750 = vunpack.c.h.b16 %v173
  %v751 = vunpack.c.l.b16 %v174
  %v752 = vunpack.c.h.b16 %v174
  %v753 = vunpack.c.l.b16 %v175
  %v754 = vunpack.c.h.b16 %v175
  %v755 = vunpack.c.l.b16 %v176
  %v756 = vunpack.c.h.b16 %v176
  %v757 = vunpack.c.l.b16 %v177
  %v758 = vunpack.c.h.b16 %v177
  %v759 = vunpack.c.l.b16 %v178
  %v760 = vunpack.c.h.b16 %v178
  %v761 = vunpack.c.l.b16 %v179
  %v762 = vunpack.c.h.b16 %v179
  %v763 = vunpack.c.l.b16 %v180
  %v764 = vunpack.c.h.b16 %v180
  %v765 = vunpack.c.l.b16 %v181
  %v766 = vunpack.c.h.b16 %v181
  %v767 = vunpack.c.l.b16 %v182
  %v768 = vunpack.c.h.b16 %v182
  %v769 = vunpack.c.l.b16 %v183
  %v770 = vunpack.c.h.b16 %v183
  %v771 = vunpack.c.l.b16 %v184
  %v772 = vunpack.c.h.b16 %v184
  %v773 = vunpack.c.l.b16 %v185
  %v774 = vunpack.c.h.b16 %v185
  %v775 = vunpack.c.l.b16 %v186
  %v776 = vunpack.c.h.b16 %v186
  %v777 = vunpack.c.l.b16 %v187
  %v778 = vunpack.c.h.b16 %v187
  %v779 = vunpack.c.l.b16 %v188
  %v780 = vunpack.c.h.b16 %v188
  %v781 = vunpack.c.l.b16 %v189
  %v782 = vunpack.c.h.b16 %v189
  %v783 = vunpack.c.l.b16 %v190
  %v784 = vunpack.c.h.b16 %v190
  %v785 = vunpack.c.l.b16 %v191
  %v786 = vunpack.c.h.b16 %v191
  %v787 = vunpack.c.l.b16 %v192
  %v788 = vunpack.c.h.b16 %v192
  %v789 = vunpack.c.l.b16 %v193
  %v790 = vunpack.c.h.b16 %v193
  %v791 = vunpack.c.l.b16 %v194
  %v792 = vunpack.c.h.b16 %v194
  %v793 = vunpack.c.l.b16 %v195
  %v794 = vunpack.c.h.b16 %v195
  %v795 = vunpack.c.l.b16 %v196
  %v796 = vunpack.c.h.b16 %v196
  %v797 = vunpack.c.l.b16 %v197
  %v798 = vunpack.c.h.b16 %v197
  %v799 = vunpack.c.l.b16 %v198
  %v800 = vunpack.c.h.b16 %v198
  %v801 = vunpack.c.l.b16 %v199
  %v802 = vunpack.c.h.b16 %v199
  %v803 = vunpack.c.l.b16 %v200
  %v804 = vunpack.c.h.b16 %v200
  %v805 = vunpack.c.l.b16 %v201
  %v806 = vunpack.c.h.b16 %v201
  %v807 = vunpack.c.l.b16 %v202
  %v808 = vunpack.c.h.b16 %v202
  %v809 = vunpack.c.l.b16 %v203
  %v810 = vunpack.c.h.b16 %v203
  %v811 = vunpack.c.l.b16 %v204
  %v812 = vunpack.c.h.b16 %v204
  %v813 = vunpack.c.l.b16 %v205
  %v814 = vunpack.c.h.b16 %v205
  %v815 = vunpack.c.l.b16 %v206
  %v816 = vunpack.c.h.b16 %v206
  %v817 = vunpack.c.l.b16 %v207
  %v818 = vunpack.c.h.b16 %v207
  %v819 = vunpack.c.l.b16 %v208
  %v820 = vunpack.c.h.b16 %v208
  %v821 = vunpack.c.l.b16 %v209
  %v822 = vunpack.c.h.b16 %v209
  %v823 = vunpack.c.l.b16 %v210
  %v824 = vunpack.c.h.b16 %v210
  %v825 = vunpack.c.l.b16 %v211
  %v826 = vunpack.c.h.b16 %v211
  %v827 = vunpack.c.l.b16 %v212
  %v828 = vunpack.c.h.b16 %v212
  %v829 = vunpack.c.l.b16 %v213
  %v830 = vunpack.c.h.b16 %v213
  %v831 = vunpack.c.l.b16 %v214
  %v832 = vunpack.c.h.b16 %v214
  %v833 = vunpack.c.l.b16 %v215
  %v834 = vunpack.c.h.b16 %v215
  %v835 = vunpack.c.l.b16 %v216
  %v836 = vunpack.c.h.b16 %v216
  %v837 = vunpack.c.l.b16 %v217
  %v838 = vunpack.c.h.b16 %v217
  %v839 = vunpack.c.l.b16 %v218
  %v840 = vunpack.c.h.b16 %v218
  %v841 = vunpack.c.l.b16 %v219
  %v842 = vunpack.c.h.b16 %v219
  %v843 = vunpack.c.l.b16 %v220
  %v844 = vunpack.c.h.b16 %v220
  %v845 = vunpack.c.l.b16 %v221
  %v846 = vunpack.c.h.b16 %v221
  %v847 = vunpack.c.l.b16 %v222
  %v848 = vunpack.c.h.b16 %v222
  %v849 = vunpack.c.l.b16 %v223
  %v850 = vunpack.c.h.b16 %v223
  %v851 = vunpack.c.l.b16 %v224
  %v852 = vunpack.c.h.b16 %v224
  %v853 = vunpack.c.l.b16 %v225
  %v854 = vunpack.c.h.b16 %v225
  %v855 = vunpack.c.l.b16 %v226
  %v856 = vunpack.c.h.b16 %v226
  %v857 = vunpack.c.l.b16 %v227
  %v858 = vunpack.c.h.b16 %v227
  %v859 = vunpack.c.l.b16 %v228
  %v860 = vunpack.c.h.b16 %v228
  %v861 = vunpack.c.l.b16 %v229
  %v862 = vunpack.c.h.b16 %v229
  %v863 = vunpack.c.l.b16 %v230
  %v864 = vunpack.c.h.b16 %v230
  %v865 = vunpack.c.l.b16 %v231
  %v866 = vunpack.c.h.b16 %v231
  %v867 = vunpack.c.l.b16 %v232
  %v868 = vunpack.c.h.b16 %v232
  %v869 = vunpack.c.l.b16 %v233
  %v870 = vunpack.c.h.b16 %v233
  %v871 = vunpack.c.l.b16 %v234
  %v872 = vunpack.c.h.b16 %v234
  %v873 = vunpack.c.l.b16 %v235
  %v874 = vunpack.c.h.b16 %v235
  %v875 = vunpack.c.l.b16 %v236
  %v876 = vunpack.c.h.b16 %v236
  %v877 = vunpack.c.l.b16 %v237
  %v878 = vunpack.c.h.b16 %v237
  %v879 = vunpack.c.l.b16 %v238
  %v880 = vunpack.c.h.b16 %v238
  %v881 = vunpack.c.l.b16 %v239
  %v882 = vunpack.c.h.b16 %v239
  %v883 = vunpack.c.l.b16 %v240
  %v884 = vunpack.c.h.b16 %v240
  %v885 = vunpack.c.l.b16 %v241
  %v886 = vunpack.c.h.b16 %v241
  %v887 = vpack.c.b16 %v499, %v495
  %v888 = vpack.c.b16 %v500, %v496
  %v889 = vpack.c.b16 %v501, %v497
  %v890 = vpack.c.b16 %v502, %v498
  %v891 = vpack.c.b16 %v507, %v503
  %v892 = vpack.c.b16 %v508, %v504
  %v893 = vpack.c.b16 %v509, %v505
  %v894 = vpack.c.b16 %v510, %v506
  %v895 = vpack.c.b16 %v515, %v511
  %v896 = vpack.c.b16 %v516, %v512
  %v897 = vpack.c.b16 %v517, %v513
  %v898 = vpack.c.b16 %v518, %v514
  %v899 = vpack.c.b16 %v523, %v519
  %v900 = vpack.c.b16 %v524, %v520
  %v901 = vpack.c.b16 %v525, %v521
  %v902 = vpack.c.b16 %v526, %v522
  %v903 = vpack.c.b16 %v531, %v527
  %v904 = vpack.c.b16 %v532, %v528
  %v905 = vpack.c.b16 %v533, %v529
  %v906 = vpack.c.b16 %v534, %v530
  %v907 = vpack.c.b16 %v539, %v535
  %v908 = vpack.c.b16 %v540, %v536
  %v909 = vpack.c.b16 %v541, %v537
  %v910 = vpack.c.b16 %v542, %v538
  %v911 = vpack.c.b16 %v547, %v543
  %v912 = vpack.c.b16 %v548, %v544
  %v913 = vpack.c.b16 %v549, %v545
  %v914 = vpack.c.b16 %v550, %v546
  %v915 = vpack.c.b16 %v555, %v551
  %v916 = vpack.c.b16 %v556, %v552
  %v917 = vpack.c.b16 %v557, %v553
  %v918 = vpack.c.b16 %v558, %v554
  %v919 = vpack.c.b16 %v563, %v559
  %v920 = vpack.c.b16 %v564, %v560
  %v921 = vpack.c.b16 %v565, %v561
  %v922 = vpack.c.b16 %v566, %v562
  %v923 = vpack.c.b16 %v571, %v567
  %v924 = vpack.c.b16 %v572, %v568
  %v925 = vpack.c.b16 %v573, %v569
  %v926 = vpack.c.b16 %v574, %v570
  %v927 = vpack.c.b16 %v579, %v575
  %v928 = vpack.c.b16 %v580, %v576
  %v929 = vpack.c.b16 %v581, %v577
  %v930 = vpack.c.b16 %v582, %v578
  %v931 = vpack.c.b16 %v587, %v583
  %v932 = vpack.c.b16 %v588, %v584
  %v933 = vpack.c.b16 %v589, %v585
  %v934 = vpack.c.b16 %v590, %v586
  %v935 = vpack.c.b16 %v595, %v591
  %v936 = vpack.c.b16 %v596, %v592
  %v937 = vpack.c.b16 %v597, %v593
  %v938 = vpack.c.b16 %v598, %v594
  %v939 = vpack.c.b16 %v603, %v599
  %v940 = vpack.c.b16 %v604, %v600
  %v941 = vpack.c.b16 %v605, %v601
  %v942 = vpack.c.b16 %v606, %v602
  %v943 = vpack.c.b16 %v611, %v607
  %v944 = vpack.c.b16 %v612, %v608
  %v945 = vpack.c.b16 %v613, %v609
  %v946 = vpack.c.b16 %v614, %v610
  %v947 = vpack.c.b16 %v619, %v615
  %v948 = vpack.c.b16 %v620, %v616
  %v949 = vpack.c.b16 %v621, %v617
  %v950 = vpack.c.b16 %v622, %v618
  %v951 = vpack.c.b16 %v627, %v623
  %v952 = vpack.c.b16 %v628, %v624
  %v953 = vpack.c.b16 %v629, %v625
  %v954 = vpack.c.b16 %v630, %v626
  %v955 = vpack.c.b16 %v635, %v631
  %v956 = vpack.c.b16 %v636, %v632
  %v957 = vpack.c.b16 %v637, %v633
  %v958 = vpack.c.b16 %v638, %v634
  %v959 = vpack.c.b16 %v643, %v639
  %v960 = vpack.c.b16 %v644, %v640
  %v961 = vpack.c.b16 %v645, %v641
  %v962 = vpack.c.b16 %v646, %v642
  %v963 = vpack.c.b16 %v651, %v647
  %v964 = vpack.c.b16 %v652, %v648
  %v965 = vpack.c.b16 %v653, %v649
  %v966 = vpack.c.b16 %v654, %v650
  %v967 = vpack.c.b16 %v659, %v655
  %v968 = vpack.c.b16 %v660, %v656
  %v969 = vpack.c.b16 %v661, %v657
  %v970 = vpack.c.b16 %v662, %v658
  %v971 = vpack.c.b16 %v667, %v663
  %v972 = vpack.c.b16 %v668, %v664
  %v973 = vpack.c.b16 %v669, %v665
  %v974 = vpack.c.b16 %v670, %v666
  %v975 = vpack.c.b16 %v675, %v671
  %v976 = vpack.c.b16 %v676, %v672
  %v977 = vpack.c.b16 %v677, %v673
  %v978 = vpack.c.b16 %v678, %v674
  %v979 = vpack.c.b16 %v683, %v679
  %v980 = vpack.c.b16 %v684, %v680
  %v981 = vpack.c.b16 %v685, %v681
  %v982 = vpack.c.b16 %v686, %v682
  %v983 = vpack.c.b16 %v691, %v687
  %v984 = vpack.c.b16 %v692, %v688
  %v985 = vpack.c.b16 %v693, %v689
  %v986 = vpack.c.b16 %v694, %v690
  %v987 = vpack.c.b16 %v699, %v695
  %v988 = vpack.c.b16 %v700, %v696
  %v989 = vpack.c.b16 %v701, %v697
  %v990 = vpack.c.b16 %v702, %v698
  %v991 = vpack.c.b16 %v707, %v703
  %v992 = vpack.c.b16 %v708, %v704
  %v993 = vpack.c.b16 %v709, %v705
  %v994 = vpack.c.b16 %v710, %v706
  %v995 = vpack.c.b16 %v715, %v711
  %v996 = vpack.c.b16 %v716, %v712
  %v997 = vpack.c.b16 %v717, %v713
  %v998 = vpack.c.b16 %v718, %v714
  %v999 = vpack.c.b16 %v723, %v719
  %v1000 = vpack.c.b16 %v724, %v720
  %v1001 = vpack.c.b16 %v725, %v721
  %v1002 = vpack.c.b16 %v726, %v722
  %v1003 = vpack.c.b16 %v731, %v727
  %v1004 = vpack.c.b16 %v732, %v728
  %v1005 = vpack.c.b16 %v733, %v729
  %v1006 = vpack.c.b16 %v734, %v730
  %v1007 = vpack.c.b16 %v739, %v735
  %v1008 = vpack.c.b16 %v740, %v736
  %v1009 = vpack.c.b16 %v741, %v737
  %v1010 = vpack.c.b16 %v742, %v738
  %v1011 = vpack.c.b16 %v747, %v743
  %v1012 = vpack.c.b16 %v748, %v744
  %v1013 = vpack.c.b16 %v749, %v745
  %v1014 = vpack.c.b16 %v750, %v746
  %v1015 = vpack.c.b16 %v755, %v751
  %v1016 = vpack.c.b16 %v756, %v752
  %v1017 = vpack.c.b16 %v757, %v753
  %v1018 = vpack.c.b16 %v758, %v754
  %v1019 = vpack.c.b16 %v763, %v759
  %v1020 = vpack.c.b16 %v764, %v760
  %v1021 = vpack.c.b16 %v765, %v761
  %v1022 = vpack.c.b16 %v766, %v762
  %v1023 = vpack.c.b16 %v771, %v767
  %v1024 = vpack.c.b16 %v772, %v768
  %v1025 = vpack.c.b16 %v773, %v769
  %v1026 = vpack.c.b16 %v774, %v770
  %v1027 = vpack.c.b16 %v779, %v775
  %v1028 = vpack.c.b16 %v780, %v776
  %v1029 = vpack.c.b16 %v781, %v777
  %v1030 = vpack.c.b16 %v782, %v778
  %v1031 = vpack.c.b16 %v787, %v783
  %v1032 = vpack.c.b16 %v788, %v784
  %v1033 = vpack.c.b16 %v789, %v785
  %v1034 = vpack.c.b16 %v790, %v786
  %v1035 = vpack.c.b16 %v795, %v791
  %v1036 = vpack.c.b16 %v796, %v792
  %v1037 = vpack.c.b16 %v797, %v793
  %v1038 = vpack.c.b16 %v798, %v794
  %v1039 = vpack.c.b16 %v803, %v799
  %v1040 = vpack.c.b16 %v804, %v800
  %v1041 = vpack.c.b16 %v805, %v801
  %v1042 = vpack.c.b16 %v806, %v802
  %v1043 = vpack.c.b16 %v811, %v807
  %v1044 = vpack.c.b16 %v812, %v808
  %v1045 = vpack.c.b16 %v813, %v809
  %v1046 = vpack.c.b16 %v814, %v810
  %v1047 = vpack.c.b16 %v819, %v815
  %v1048 = vpack.c.b16 %v820, %v816
  %v1049 = vpack.c.b16 %v821, %v817
  %v1050 = vpack.c.b16 %v822, %v818
  %v1051 = vpack.c.b16 %v827, %v823
  %v1052 = vpack.c.b16 %v828, %v824
  %v1053 = vpack.c.b16 %v829, %v825
  %v1054 = vpack.c.b16 %v830, %v826
  %v1055 = vpack.c.b16 %v835, %v831
  %v1056 = vpack.c.b16 %v836, %v832
  %v1057 = vpack.c.b16 %v837, %v833
  %v1058 = vpack.c.b16 %v838, %v834
  %v1059 = vpack.c.b16 %v843, %v839
  %v1060 = vpack.c.b16 %v844, %v840
  %v1061 = vpack.c.b16 %v845, %v841
  %v1062 = vpack.c.b16 %v846, %v842
  %v1063 = vpack.c.b16 %v851, %v847
  %v1064 = vpack.c.b16 %v852, %v848
  %v1065 = vpack.c.b16 %v853, %v849
  %v1066 = vpack.c.b16 %v854, %v850
  %v1067 = vpack.c.b16 %v859, %v855
  %v1068 = vpack.c.b16 %v860, %v856
  %v1069 = vpack.c.b16 %v861, %v857
  %v1070 = vpack.c.b16 %v862, %v858
  %v1071 = vpack.c.b16 %v867, %v863
  %v1072 = vpack.c.b16 %v868, %v864
  %v1073 = vpack.c.b16 %v869, %v865
  %v1074 = vpack.c.b16 %v870, %v866
  %v1075 = vpack.c.b16 %v875, %v871
  %v1076 = vpack.c.b16 %v876, %v872
  %v1077 = vpack.c.b16 %v877, %v873
  %v1078 = vpack.c.b16 %v878, %v874
  %v1079 = vpack.c.b16 %v883, %v879
  %v1080 = vpack.c.b16 %v884, %v880
  %v1081 = vpack.c.b16 %v885, %v881
  %v1082 = vpack.c.b16 %v886, %v882
  %vm1279 = vcmask 130048
  %v1281 = vsel %vm1279, %v292, 0
  %1283 = vmatprep.subr.bf16.mxu0 %v888
  %1284 = vmatpush1.bf16.msra.mxu0 %v887
  %1285 = vmatprep.subr.bf16.mxu0 %v892
  %1286 = vmatpush1.bf16.msra.mxu0 %v891
  %1287 = vmatprep.subr.bf16.mxu0 %v896
  %1288 = vmatpush1.bf16.msra.mxu0 %v895
  %1289 = vmatprep.subr.bf16.mxu0 %v900
  %1290 = vmatpush1.bf16.msra.mxu0 %v899
  %1291 = vmatprep.subr.bf16.mxu0 %v904
  %1292 = vmatpush1.bf16.msra.mxu0 %v903
  %1293 = vmatprep.subr.bf16.mxu0 %v908
  %1294 = vmatpush1.bf16.msra.mxu0 %v907
  %1295 = vmatprep.subr.bf16.mxu0 %v912
  %1296 = vmatpush1.bf16.msra.mxu0 %v911
  %1297 = vmatprep.subr.bf16.mxu0 %v916
  %1298 = vmatpush1.bf16.msra.mxu0 %v915
  %1299 = vmatprep.subr.bf16.mxu0 %v920
  %1300 = vmatpush1.bf16.msra.mxu0 %v919
  %1301 = vmatprep.subr.bf16.mxu0 %v924
  %1302 = vmatpush1.bf16.msra.mxu0 %v923
  %1303 = vmatprep.subr.bf16.mxu0 %v928
  %1304 = vmatpush1.bf16.msra.mxu0 %v927
  %1305 = vmatprep.subr.bf16.mxu0 %v932
  %1306 = vmatpush1.bf16.msra.mxu0 %v931
  %1307 = vmatprep.subr.bf16.mxu0 %v936
  %1308 = vmatpush1.bf16.msra.mxu0 %v935
  %1309 = vmatprep.subr.bf16.mxu0 %v940
  %1310 = vmatpush1.bf16.msra.mxu0 %v939
  %1311 = vmatprep.subr.bf16.mxu0 %v944
  %1312 = vmatpush1.bf16.msra.mxu0 %v943
  %1313 = vmatprep.subr.bf16.mxu0 %v948
  %1314 = vmatpush1.bf16.msra.mxu0 %v947
  %1315 = vmatprep.mubr.bf16.mxu0 %v287
  %1316 = vmatmul.mubr.bf16.gmra.mrb[0].mxu0 %v286
  %v1317 = vpop.f32.mrb[0].mxu0
  %v1318 = vadd.f32 %v247, %v1317
  %v1319 = vpop.f32.mrb[0].mxu0
  %v1320 = vadd.f32 %v251, %v1319
  %v1321 = vpop.f32.mrb[0].mxu0
  %v1322 = vadd.f32 %v247, %v1321
  %v1323 = vpop.f32.mrb[0].mxu0
  %v1324 = vadd.f32 %v251, %v1323
  %1325 = vdwg.mxu0
  %1326 = vmatprep.subr.bf16.mxu0 %v952
  %1327 = vmatpush1.bf16.msra.mxu0 %v951
  %1328 = vmatprep.subr.bf16.mxu0 %v956
  %1329 = vmatpush1.bf16.msra.mxu0 %v955
  %1330 = vmatprep.subr.bf16.mxu0 %v960
  %1331 = vmatpush1.bf16.msra.mxu0 %v959
  %1332 = vmatprep.subr.bf16.mxu0 %v964
  %1333 = vmatpush1.bf16.msra.mxu0 %v963
  %1334 = vmatprep.subr.bf16.mxu0 %v968
  %1335 = vmatpush1.bf16.msra.mxu0 %v967
  %1336 = vmatprep.subr.bf16.mxu0 %v972
  %1337 = vmatpush1.bf16.msra.mxu0 %v971
  %1338 = vmatprep.subr.bf16.mxu0 %v976
  %1339 = vmatpush1.bf16.msra.mxu0 %v975
  %1340 = vmatprep.subr.bf16.mxu0 %v980
  %1341 = vmatpush1.bf16.msra.mxu0 %v979
  %1342 = vmatprep.subr.bf16.mxu0 %v984
  %1343 = vmatpush1.bf16.msra.mxu0 %v983
  %1344 = vmatprep.subr.bf16.mxu0 %v988
  %1345 = vmatpush1.bf16.msra.mxu0 %v987
  %1346 = vmatprep.subr.bf16.mxu0 %v992
  %1347 = vmatpush1.bf16.msra.mxu0 %v991
  %1348 = vmatprep.subr.bf16.mxu0 %v996
  %1349 = vmatpush1.bf16.msra.mxu0 %v995
  %1350 = vmatprep.subr.bf16.mxu0 %v1000
  %1351 = vmatpush1.bf16.msra.mxu0 %v999
  %1352 = vmatprep.subr.bf16.mxu0 %v1004
  %1353 = vmatpush1.bf16.msra.mxu0 %v1003
  %1354 = vmatprep.subr.bf16.mxu0 %v1008
  %1355 = vmatpush1.bf16.msra.mxu0 %v1007
  %1356 = vmatprep.subr.bf16.mxu0 %v1012
  %1357 = vmatpush1.bf16.msra.mxu0 %v1011
  %1358 = vmatprep.mubr.bf16.mxu0 %v289
  %1359 = vmatmul.mubr.bf16.gmra.mrb[0].mxu0 %v288
  %v1360 = vpop.f32.mrb[0].mxu0
  %v1361 = vadd.f32 %v1318, %v1360
  %v1362 = vpop.f32.mrb[0].mxu0
  %v1363 = vadd.f32 %v1320, %v1362
  %v1364 = vpop.f32.mrb[0].mxu0
  %v1365 = vadd.f32 %v1322, %v1364
  %v1366 = vpop.f32.mrb[0].mxu0
  %v1367 = vadd.f32 %v1324, %v1366
  %1368 = vdwg.mxu0
  %1369 = vmatprep.subr.bf16.mxu0 %v1016
  %1370 = vmatpush1.bf16.msra.mxu0 %v1015
  %1371 = vmatprep.subr.bf16.mxu0 %v1020
  %1372 = vmatpush1.bf16.msra.mxu0 %v1019
  %1373 = vmatprep.subr.bf16.mxu0 %v1024
  %1374 = vmatpush1.bf16.msra.mxu0 %v1023
  %1375 = vmatprep.subr.bf16.mxu0 %v1028
  %1376 = vmatpush1.bf16.msra.mxu0 %v1027
  %1377 = vmatprep.subr.bf16.mxu0 %v1032
  %1378 = vmatpush1.bf16.msra.mxu0 %v1031
  %1379 = vmatprep.subr.bf16.mxu0 %v1036
  %1380 = vmatpush1.bf16.msra.mxu0 %v1035
  %1381 = vmatprep.subr.bf16.mxu0 %v1040
  %1382 = vmatpush1.bf16.msra.mxu0 %v1039
  %1383 = vmatprep.subr.bf16.mxu0 %v1044
  %1384 = vmatpush1.bf16.msra.mxu0 %v1043
  %1385 = vmatprep.subr.bf16.mxu0 %v1048
  %1386 = vmatpush1.bf16.msra.mxu0 %v1047
  %1387 = vmatprep.subr.bf16.mxu0 %v1052
  %1388 = vmatpush1.bf16.msra.mxu0 %v1051
  %1389 = vmatprep.subr.bf16.mxu0 %v1056
  %1390 = vmatpush1.bf16.msra.mxu0 %v1055
  %1391 = vmatprep.subr.bf16.mxu0 %v1060
  %1392 = vmatpush1.bf16.msra.mxu0 %v1059
  %1393 = vmatprep.subr.bf16.mxu0 %v1064
  %1394 = vmatpush1.bf16.msra.mxu0 %v1063
  %1395 = vmatprep.subr.bf16.mxu0 %v1068
  %1396 = vmatpush1.bf16.msra.mxu0 %v1067
  %1397 = vmatprep.subr.bf16.mxu0 %v1072
  %1398 = vmatpush1.bf16.msra.mxu0 %v1071
  %1399 = vmatprep.subr.bf16.mxu0 %v1076
  %1400 = vmatpush1.bf16.msra.mxu0 %v1075
  %1401 = vmatprep.mubr.bf16.mxu0 %v291
  %1402 = vmatmul.mubr.bf16.gmra.mrb[0].mxu0 %v290
  %v1403 = vpop.f32.mrb[0].mxu0
  %v1404 = vadd.f32 %v1361, %v1403
  %v1405 = vpop.f32.mrb[0].mxu0
  %v1406 = vadd.f32 %v1363, %v1405
  %v1407 = vpop.f32.mrb[0].mxu0
  %v1408 = vadd.f32 %v1365, %v1407
  %v1409 = vpop.f32.mrb[0].mxu0
  %v1410 = vadd.f32 %v1367, %v1409
  %1411 = vdwg.mxu0
  %1412 = vmatprep.subr.bf16.mxu0 %v1080
  %1413 = vmatpush1.bf16.msra.mxu0 %v1079
  %1414 = vmatprep.subr.bf16.mxu0 0
  %1415 = vmatpush1.bf16.msra.mxu0 0
  %1416 = vmatprep.subr.bf16.mxu0 0
  %1417 = vmatpush1.bf16.msra.mxu0 0
  %1418 = vmatprep.subr.bf16.mxu0 0
  %1419 = vmatpush1.bf16.msra.mxu0 0
  %1420 = vmatprep.subr.bf16.mxu0 0
  %1421 = vmatpush1.bf16.msra.mxu0 0
  %1422 = vmatprep.subr.bf16.mxu0 0
  %1423 = vmatpush1.bf16.msra.mxu0 0
  %1424 = vmatprep.subr.bf16.mxu0 0
  %1425 = vmatpush1.bf16.msra.mxu0 0
  %1426 = vmatprep.subr.bf16.mxu0 0
  %1427 = vmatpush1.bf16.msra.mxu0 0
  %1428 = vmatprep.subr.bf16.mxu0 0
  %1429 = vmatpush1.bf16.msra.mxu0 0
  %1430 = vmatprep.subr.bf16.mxu0 0
  %1431 = vmatpush1.bf16.msra.mxu0 0
  %1432 = vmatprep.subr.bf16.mxu0 0
  %1433 = vmatpush1.bf16.msra.mxu0 0
  %1434 = vmatprep.subr.bf16.mxu0 0
  %1435 = vmatpush1.bf16.msra.mxu0 0
  %1436 = vmatprep.subr.bf16.mxu0 0
  %1437 = vmatpush1.bf16.msra.mxu0 0
  %1438 = vmatprep.subr.bf16.mxu0 0
  %1439 = vmatpush1.bf16.msra.mxu0 0
  %1440 = vmatprep.subr.bf16.mxu0 0
  %1441 = vmatpush1.bf16.msra.mxu0 0
  %1442 = vmatprep.subr.bf16.mxu0 0
  %1443 = vmatpush1.bf16.msra.mxu0 0
  %1444 = vmatprep.mubr.bf16.mxu0 0
  %1445 = vmatmul.mubr.bf16.gmra.mrb[0].mxu0 %v1281
  %v1446 = vpop.f32.mrb[0].mxu0
  %v1447 = vadd.f32 %v1404, %v1446
  %v1448 = vpop.f32.mrb[0].mxu0
  %v1449 = vadd.f32 %v1406, %v1448
  %v1450 = vpop.f32.mrb[0].mxu0
  %v1451 = vadd.f32 %v1408, %v1450
  %v1452 = vpop.f32.mrb[0].mxu0
  %v1453 = vadd.f32 %v1410, %v1452
  %1454 = vdwg.mxu0
  %1455 = vmatprep.subr.bf16.mxu0 %v890
  %1456 = vmatpush1.bf16.msra.mxu0 %v889
  %1457 = vmatprep.subr.bf16.mxu0 %v894
  %1458 = vmatpush1.bf16.msra.mxu0 %v893
  %1459 = vmatprep.subr.bf16.mxu0 %v898
  %1460 = vmatpush1.bf16.msra.mxu0 %v897
  %1461 = vmatprep.subr.bf16.mxu0 %v902
  %1462 = vmatpush1.bf16.msra.mxu0 %v901
  %1463 = vmatprep.subr.bf16.mxu0 %v906
  %1464 = vmatpush1.bf16.msra.mxu0 %v905
  %1465 = vmatprep.subr.bf16.mxu0 %v910
  %1466 = vmatpush1.bf16.msra.mxu0 %v909
  %1467 = vmatprep.subr.bf16.mxu0 %v914
  %1468 = vmatpush1.bf16.msra.mxu0 %v913
  %1469 = vmatprep.subr.bf16.mxu0 %v918
  %1470 = vmatpush1.bf16.msra.mxu0 %v917
  %1471 = vmatprep.subr.bf16.mxu0 %v922
  %1472 = vmatpush1.bf16.msra.mxu0 %v921
  %1473 = vmatprep.subr.bf16.mxu0 %v926
  %1474 = vmatpush1.bf16.msra.mxu0 %v925
  %1475 = vmatprep.subr.bf16.mxu0 %v930
  %1476 = vmatpush1.bf16.msra.mxu0 %v929
  %1477 = vmatprep.subr.bf16.mxu0 %v934
  %1478 = vmatpush1.bf16.msra.mxu0 %v933
  %1479 = vmatprep.subr.bf16.mxu0 %v938
  %1480 = vmatpush1.bf16.msra.mxu0 %v937
  %1481 = vmatprep.subr.bf16.mxu0 %v942
  %1482 = vmatpush1.bf16.msra.mxu0 %v941
  %1483 = vmatprep.subr.bf16.mxu0 %v946
  %1484 = vmatpush1.bf16.msra.mxu0 %v945
  %1485 = vmatprep.subr.bf16.mxu0 %v950
  %1486 = vmatpush1.bf16.msra.mxu0 %v949
  %1487 = vmatprep.mubr.bf16.mxu0 %v287
  %1488 = vmatmul.mubr.bf16.gmra.mrb[0].mxu0 %v286
  %v1489 = vpop.f32.mrb[0].mxu0
  %v1490 = vadd.f32 %v255, %v1489
  %v1491 = vpop.f32.mrb[0].mxu0
  %v1492 = vadd.f32 %v259, %v1491
  %v1493 = vpop.f32.mrb[0].mxu0
  %v1494 = vadd.f32 %v255, %v1493
  %v1495 = vpop.f32.mrb[0].mxu0
  %v1496 = vadd.f32 %v259, %v1495
  %1497 = vdwg.mxu0
  %1498 = vmatprep.subr.bf16.mxu0 %v954
  %1499 = vmatpush1.bf16.msra.mxu0 %v953
  %1500 = vmatprep.subr.bf16.mxu0 %v958
  %1501 = vmatpush1.bf16.msra.mxu0 %v957
  %1502 = vmatprep.subr.bf16.mxu0 %v962
  %1503 = vmatpush1.bf16.msra.mxu0 %v961
  %1504 = vmatprep.subr.bf16.mxu0 %v966
  %1505 = vmatpush1.bf16.msra.mxu0 %v965
  %1506 = vmatprep.subr.bf16.mxu0 %v970
  %1507 = vmatpush1.bf16.msra.mxu0 %v969
  %1508 = vmatprep.subr.bf16.mxu0 %v974
  %1509 = vmatpush1.bf16.msra.mxu0 %v973
  %1510 = vmatprep.subr.bf16.mxu0 %v978
  %1511 = vmatpush1.bf16.msra.mxu0 %v977
  %1512 = vmatprep.subr.bf16.mxu0 %v982
  %1513 = vmatpush1.bf16.msra.mxu0 %v981
  %1514 = vmatprep.subr.bf16.mxu0 %v986
  %1515 = vmatpush1.bf16.msra.mxu0 %v985
  %1516 = vmatprep.subr.bf16.mxu0 %v990
  %1517 = vmatpush1.bf16.msra.mxu0 %v989
  %1518 = vmatprep.subr.bf16.mxu0 %v994
  %1519 = vmatpush1.bf16.msra.mxu0 %v993
  %1520 = vmatprep.subr.bf16.mxu0 %v998
  %1521 = vmatpush1.bf16.msra.mxu0 %v997
  %1522 = vmatprep.subr.bf16.mxu0 %v1002
  %1523 = vmatpush1.bf16.msra.mxu0 %v1001
  %1524 = vmatprep.subr.bf16.mxu0 %v1006
  %1525 = vmatpush1.bf16.msra.mxu0 %v1005
  %1526 = vmatprep.subr.bf16.mxu0 %v1010
  %1527 = vmatpush1.bf16.msra.mxu0 %v1009
  %1528 = vmatprep.subr.bf16.mxu0 %v1014
  %1529 = vmatpush1.bf16.msra.mxu0 %v1013
  %1530 = vmatprep.mubr.bf16.mxu0 %v289
  %1531 = vmatmul.mubr.bf16.gmra.mrb[0].mxu0 %v288
  %v1532 = vpop.f32.mrb[0].mxu0
  %v1533 = vadd.f32 %v1490, %v1532
  %v1534 = vpop.f32.mrb[0].mxu0
  %v1535 = vadd.f32 %v1492, %v1534
  %v1536 = vpop.f32.mrb[0].mxu0
  %v1537 = vadd.f32 %v1494, %v1536
  %v1538 = vpop.f32.mrb[0].mxu0
  %v1539 = vadd.f32 %v1496, %v1538
  %1540 = vdwg.mxu0
  %1541 = vmatprep.subr.bf16.mxu0 %v1018
  %1542 = vmatpush1.bf16.msra.mxu0 %v1017
  %1543 = vmatprep.subr.bf16.mxu0 %v1022
  %1544 = vmatpush1.bf16.msra.mxu0 %v1021
  %1545 = vmatprep.subr.bf16.mxu0 %v1026
  %1546 = vmatpush1.bf16.msra.mxu0 %v1025
  %1547 = vmatprep.subr.bf16.mxu0 %v1030
  %1548 = vmatpush1.bf16.msra.mxu0 %v1029
  %1549 = vmatprep.subr.bf16.mxu0 %v1034
  %1550 = vmatpush1.bf16.msra.mxu0 %v1033
  %1551 = vmatprep.subr.bf16.mxu0 %v1038
  %1552 = vmatpush1.bf16.msra.mxu0 %v1037
  %1553 = vmatprep.subr.bf16.mxu0 %v1042
  %1554 = vmatpush1.bf16.msra.mxu0 %v1041
  %1555 = vmatprep.subr.bf16.mxu0 %v1046
  %1556 = vmatpush1.bf16.msra.mxu0 %v1045
  %1557 = vmatprep.subr.bf16.mxu0 %v1050
  %1558 = vmatpush1.bf16.msra.mxu0 %v1049
  %1559 = vmatprep.subr.bf16.mxu0 %v1054
  %1560 = vmatpush1.bf16.msra.mxu0 %v1053
  %1561 = vmatprep.subr.bf16.mxu0 %v1058
  %1562 = vmatpush1.bf16.msra.mxu0 %v1057
  %1563 = vmatprep.subr.bf16.mxu0 %v1062
  %1564 = vmatpush1.bf16.msra.mxu0 %v1061
  %1565 = vmatprep.subr.bf16.mxu0 %v1066
  %1566 = vmatpush1.bf16.msra.mxu0 %v1065
  %1567 = vmatprep.subr.bf16.mxu0 %v1070
  %1568 = vmatpush1.bf16.msra.mxu0 %v1069
  %1569 = vmatprep.subr.bf16.mxu0 %v1074
  %1570 = vmatpush1.bf16.msra.mxu0 %v1073
  %1571 = vmatprep.subr.bf16.mxu0 %v1078
  %1572 = vmatpush1.bf16.msra.mxu0 %v1077
  %1573 = vmatprep.mubr.bf16.mxu0 %v291
  %1574 = vmatmul.mubr.bf16.gmra.mrb[0].mxu0 %v290
  %v1575 = vpop.f32.mrb[0].mxu0
  %v1576 = vadd.f32 %v1533, %v1575
  %v1577 = vpop.f32.mrb[0].mxu0
  %v1578 = vadd.f32 %v1535, %v1577
  %v1579 = vpop.f32.mrb[0].mxu0
  %v1580 = vadd.f32 %v1537, %v1579
  %v1581 = vpop.f32.mrb[0].mxu0
  %v1582 = vadd.f32 %v1539, %v1581
  %1583 = vdwg.mxu0
  %1584 = vmatprep.subr.bf16.mxu0 %v1082
  %1585 = vmatpush1.bf16.msra.mxu0 %v1081
  %1586 = vmatprep.subr.bf16.mxu0 0
  %1587 = vmatpush1.bf16.msra.mxu0 0
  %1588 = vmatprep.subr.bf16.mxu0 0
  %1589 = vmatpush1.bf16.msra.mxu0 0
  %1590 = vmatprep.subr.bf16.mxu0 0
  %1591 = vmatpush1.bf16.msra.mxu0 0
  %1592 = vmatprep.subr.bf16.mxu0 0
  %1593 = vmatpush1.bf16.msra.mxu0 0
  %1594 = vmatprep.subr.bf16.mxu0 0
  %1595 = vmatpush1.bf16.msra.mxu0 0
  %1596 = vmatprep.subr.bf16.mxu0 0
  %1597 = vmatpush1.bf16.msra.mxu0 0
  %1598 = vmatprep.subr.bf16.mxu0 0
  %1599 = vmatpush1.bf16.msra.mxu0 0
  %1600 = vmatprep.subr.bf16.mxu0 0
  %1601 = vmatpush1.bf16.msra.mxu0 0
  %1602 = vmatprep.subr.bf16.mxu0 0
  %1603 = vmatpush1.bf16.msra.mxu0 0
  %1604 = vmatprep.subr.bf16.mxu0 0
  %1605 = vmatpush1.bf16.msra.mxu0 0
  %1606 = vmatprep.subr.bf16.mxu0 0
  %1607 = vmatpush1.bf16.msra.mxu0 0
  %1608 = vmatprep.subr.bf16.mxu0 0
  %1609 = vmatpush1.bf16.msra.mxu0 0
  %1610 = vmatprep.subr.bf16.mxu0 0
  %1611 = vmatpush1.bf16.msra.mxu0 0
  %1612 = vmatprep.subr.bf16.mxu0 0
  %1613 = vmatpush1.bf16.msra.mxu0 0
  %1614 = vmatprep.subr.bf16.mxu0 0
  %1615 = vmatpush1.bf16.msra.mxu0 0
  %1616 = vmatprep.mubr.bf16.mxu0 0
  %1617 = vmatmul.mubr.bf16.gmra.mrb[0].mxu0 %v1281
  %v1618 = vpop.f32.mrb[0].mxu0
  %v1619 = vadd.f32 %v1576, %v1618
  %v1620 = vpop.f32.mrb[0].mxu0
  %v1621 = vadd.f32 %v1578, %v1620
  %v1622 = vpop.f32.mrb[0].mxu0
  %v1623 = vadd.f32 %v1580, %v1622
  %v1624 = vpop.f32.mrb[0].mxu0
  %v1625 = vadd.f32 %v1582, %v1624
  %1626 = vdwg.mxu0
  %v1627 = vmax.f32 %v1447, 0.0
  %v1628 = vmax.f32 %v1449, 0.0
  %v1629 = vmax.f32 %v1619, 0.0
  %v1630 = vmax.f32 %v1621, 0.0
  %v1631 = vmax.f32 %v1451, 0.0
  %v1632 = vmax.f32 %v1453, 0.0
  %v1633 = vmax.f32 %v1623, 0.0
  %v1634 = vmax.f32 %v1625, 0.0
  %v1635 = vpack.c.bf16 %v1631, %v1627
  %v1636 = vpack.c.bf16 %v1632, %v1628
  %v1637 = vpack.c.bf16 %v1633, %v1629
  %v1638 = vpack.c.bf16 %v1634, %v1630
  %v1639 = vld [vmem:[%s4] sm:$0xf]
  %v1640 = vld [vmem:[%s4 + $0x4] sm:$0xf]
  %v1641 = vld [vmem:[%s4 + $0x8] sm:$0xf]
  %v1642 = vld [vmem:[%s4 + $0xc] sm:$0xf]
  %v1643 = vld [vmem:[%s4 + $0x10] sm:$0xf]
  %v1644 = vld [vmem:[%s4 + $0x14] sm:$0xf]
  %v1645 = vld [vmem:[%s4 + $0x18] sm:$0xf]
  %v1646 = vld [vmem:[%s4 + $0x1c] sm:$0xf]
  %v1647 = vld [vmem:[%s4 + $0x20] sm:$0xf]
  %v1648 = vld [vmem:[%s4 + $0x24] sm:$0xf]
  %v1649 = vld [vmem:[%s4 + $0x28] sm:$0xf]
  %v1650 = vld [vmem:[%s4 + $0x2c] sm:$0xf]
  %v1651 = vld [vmem:[%s4 + $0x30] sm:$0xf]
  %v1652 = vld [vmem:[%s4 + $0x34] sm:$0xf]
  %v1653 = vld [vmem:[%s4 + $0x38] sm:$0xf]
  %v1654 = vld [vmem:[%s4 + $0x3c] sm:$0xf]
  %v1655 = vld [vmem:[%s4 + $0x40] sm:$0xf]
  %v1656 = vld [vmem:[%s4 + $0x44] sm:$0xf]
  %v1657 = vld [vmem:[%s4 + $0x48] sm:$0xf]
  %v1658 = vld [vmem:[%s4 + $0x4c] sm:$0xf]
  %v1659 = vld [vmem:[%s4 + $0x50] sm:$0xf]
  %v1660 = vld [vmem:[%s4 + $0x54] sm:$0xf]
  %v1661 = vld [vmem:[%s4 + $0x58] sm:$0xf]
  %v1662 = vld [vmem:[%s4 + $0x5c] sm:$0xf]
  %v1663 = vld [vmem:[%s4 + $0x60] sm:$0xf]
  %v1664 = vld [vmem:[%s4 + $0x64] sm:$0xf]
  %v1665 = vld [vmem:[%s4 + $0x68] sm:$0xf]
  %v1666 = vld [vmem:[%s4 + $0x6c] sm:$0xf]
  %v1667 = vld [vmem:[%s4 + $0x70] sm:$0xf]
  %v1668 = vld [vmem:[%s4 + $0x74] sm:$0xf]
  %v1669 = vld [vmem:[%s4 + $0x78] sm:$0xf]
  %v1670 = vld [vmem:[%s4 + $0x7c] sm:$0xf]
  %v1671 = vld [vmem:[%s4 + $0x80] sm:$0xf]
  %v1672 = vld [vmem:[%s4 + $0x84] sm:$0xf]
  %v1673 = vld [vmem:[%s4 + $0x88] sm:$0xf]
  %v1674 = vld [vmem:[%s4 + $0x8c] sm:$0xf]
  %v1675 = vld [vmem:[%s4 + $0x90] sm:$0xf]
  %v1676 = vld [vmem:[%s4 + $0x94] sm:$0xf]
  %v1677 = vld [vmem:[%s4 + $0x98] sm:$0xf]
  %v1678 = vld [vmem:[%s4 + $0x9c] sm:$0xf]
  %v1679 = vld [vmem:[%s4 + $0xa0] sm:$0xf]
  %v1680 = vld [vmem:[%s4 + $0xa4] sm:$0xf]
  %v1681 = vld [vmem:[%s4 + $0xa8] sm:$0xf]
  %v1682 = vld [vmem:[%s4 + $0xac] sm:$0xf]
  %v1683 = vld [vmem:[%s4 + $0xb0] sm:$0xf]
  %v1684 = vld [vmem:[%s4 + $0xb4] sm:$0xf]
  %v1685 = vld [vmem:[%s4 + $0xb8] sm:$0xf]
  %v1686 = vld [vmem:[%s4 + $0xbc] sm:$0xf]
  %v1687 = vld [vmem:[%s4 + $0xc0] sm:$0xf]
  %v1688 = vld [vmem:[%s4 + $0xc4] sm:$0xf]
  %v1689 = vld [vmem:[%s5] sm:$0x1]
  %v1691 = vlaneseq
  %v1692 = vshrl.u32 %v1691, 7
  %v1693 = vsub.s32 0, %v1692
  %v1694 = vrot.slane %v1689, %v1693
  %v1746 = vunpack.c.l.b16 %v1639
  %v1747 = vunpack.c.l.b16 %v1640
  %v1748 = vunpack.c.l.b16 %v1641
  %v1749 = vunpack.c.l.b16 %v1642
  %v1750 = vunpack.c.l.b16 %v1643
  %v1751 = vunpack.c.l.b16 %v1644
  %v1752 = vunpack.c.l.b16 %v1645
  %v1753 = vunpack.c.l.b16 %v1646
  %v1754 = vunpack.c.l.b16 %v1647
  %v1755 = vunpack.c.l.b16 %v1648
  %v1756 = vunpack.c.l.b16 %v1649
  %v1757 = vunpack.c.l.b16 %v1650
  %v1758 = vunpack.c.l.b16 %v1651
  %v1759 = vunpack.c.l.b16 %v1652
  %v1760 = vunpack.c.l.b16 %v1653
  %v1761 = vunpack.c.l.b16 %v1654
  %v1762 = vunpack.c.l.b16 %v1655
  %v1763 = vunpack.c.l.b16 %v1656
  %v1764 = vunpack.c.l.b16 %v1657
  %v1765 = vunpack.c.l.b16 %v1658
  %v1766 = vunpack.c.l.b16 %v1659
  %v1767 = vunpack.c.l.b16 %v1660
  %v1768 = vunpack.c.l.b16 %v1661
  %v1769 = vunpack.c.l.b16 %v1662
  %v1770 = vunpack.c.l.b16 %v1663
  %v1771 = vunpack.c.l.b16 %v1664
  %v1772 = vunpack.c.l.b16 %v1665
  %v1773 = vunpack.c.l.b16 %v1666
  %v1774 = vunpack.c.l.b16 %v1667
  %v1775 = vunpack.c.l.b16 %v1668
  %v1776 = vunpack.c.l.b16 %v1669
  %v1777 = vunpack.c.l.b16 %v1670
  %v1778 = vunpack.c.l.b16 %v1671
  %v1779 = vunpack.c.l.b16 %v1672
  %v1780 = vunpack.c.l.b16 %v1673
  %v1781 = vunpack.c.l.b16 %v1674
  %v1782 = vunpack.c.l.b16 %v1675
  %v1783 = vunpack.c.l.b16 %v1676
  %v1784 = vunpack.c.l.b16 %v1677
  %v1785 = vunpack.c.l.b16 %v1678
  %v1786 = vunpack.c.l.b16 %v1679
  %v1787 = vunpack.c.l.b16 %v1680
  %v1788 = vunpack.c.l.b16 %v1681
  %v1789 = vunpack.c.l.b16 %v1682
  %v1790 = vunpack.c.l.b16 %v1683
  %v1791 = vunpack.c.l.b16 %v1684
  %v1792 = vunpack.c.l.b16 %v1685
  %v1793 = vunpack.c.l.b16 %v1686
  %v1794 = vunpack.c.l.b16 %v1687
  %v1795 = vunpack.c.l.b16 %v1688
  %v1796 = vpack.c.b16 %v1747, %v1746
  %v1797 = vpack.c.b16 %v1749, %v1748
  %v1798 = vpack.c.b16 %v1751, %v1750
  %v1799 = vpack.c.b16 %v1753, %v1752
  %v1800 = vpack.c.b16 %v1755, %v1754
  %v1801 = vpack.c.b16 %v1757, %v1756
  %v1802 = vpack.c.b16 %v1759, %v1758
  %v1803 = vpack.c.b16 %v1761, %v1760
  %v1804 = vpack.c.b16 %v1763, %v1762
  %v1805 = vpack.c.b16 %v1765, %v1764
  %v1806 = vpack.c.b16 %v1767, %v1766
  %v1807 = vpack.c.b16 %v1769, %v1768
  %v1808 = vpack.c.b16 %v1771, %v1770
  %v1809 = vpack.c.b16 %v1773, %v1772
  %v1810 = vpack.c.b16 %v1775, %v1774
  %v1811 = vpack.c.b16 %v1777, %v1776
  %v1812 = vpack.c.b16 %v1779, %v1778
  %v1813 = vpack.c.b16 %v1781, %v1780
  %v1814 = vpack.c.b16 %v1783, %v1782
  %v1815 = vpack.c.b16 %v1785, %v1784
  %v1816 = vpack.c.b16 %v1787, %v1786
  %v1817 = vpack.c.b16 %v1789, %v1788
  %v1818 = vpack.c.b16 %v1791, %v1790
  %v1819 = vpack.c.b16 %v1793, %v1792
  %v1820 = vpack.c.b16 %v1795, %v1794
  %v1847 = vsel %vm1279, %v1638, 0
  %1849 = vmatprep.subr.bf16.mxu0 0
  %1850 = vmatpush1.bf16.msra.mxu0 %v1796
  %1851 = vmatprep.subr.bf16.mxu0 0
  %1852 = vmatpush1.bf16.msra.mxu0 %v1797
  %1853 = vmatprep.subr.bf16.mxu0 0
  %1854 = vmatpush1.bf16.msra.mxu0 %v1798
  %1855 = vmatprep.subr.bf16.mxu0 0
  %1856 = vmatpush1.bf16.msra.mxu0 %v1799
  %1857 = vmatprep.subr.bf16.mxu0 0
  %1858 = vmatpush1.bf16.msra.mxu0 %v1800
  %1859 = vmatprep.subr.bf16.mxu0 0
  %1860 = vmatpush1.bf16.msra.mxu0 %v1801
  %1861 = vmatprep.subr.bf16.mxu0 0
  %1862 = vmatpush1.bf16.msra.mxu0 %v1802
  %1863 = vmatprep.subr.bf16.mxu0 0
  %1864 = vmatpush1.bf16.msra.mxu0 %v1803
  %1865 = vmatprep.subr.bf16.mxu0 0
  %1866 = vmatpush1.bf16.msra.mxu0 %v1804
  %1867 = vmatprep.subr.bf16.mxu0 0
  %1868 = vmatpush1.bf16.msra.mxu0 %v1805
  %1869 = vmatprep.subr.bf16.mxu0 0
  %1870 = vmatpush1.bf16.msra.mxu0 %v1806
  %1871 = vmatprep.subr.bf16.mxu0 0
  %1872 = vmatpush1.bf16.msra.mxu0 %v1807
  %1873 = vmatprep.subr.bf16.mxu0 0
  %1874 = vmatpush1.bf16.msra.mxu0 %v1808
  %1875 = vmatprep.subr.bf16.mxu0 0
  %1876 = vmatpush1.bf16.msra.mxu0 %v1809
  %1877 = vmatprep.subr.bf16.mxu0 0
  %1878 = vmatpush1.bf16.msra.mxu0 %v1810
  %1879 = vmatprep.subr.bf16.mxu0 0
  %1880 = vmatpush1.bf16.msra.mxu0 %v1811
  %1881 = vmatprep.mubr.bf16.mxu0 %v1636
  %1882 = vmatmul.mubr.bf16.gmra.mrb[0].mxu0 %v1635
  %v1883 = vpop.f32.mrb[0].mxu0
  %v1884 = vadd.f32 %v1694, %v1883
  %v1885 = vpop.f32.mrb[0].mxu0
  %v1886 = vpop.f32.mrb[0].mxu0
  %v1887 = vadd.f32 %v1694, %v1886
  %v1888 = vpop.f32.mrb[0].mxu0
  %1889 = vdwg.mxu0
  %1890 = vmatprep.subr.bf16.mxu0 0
  %1891 = vmatpush1.bf16.msra.mxu0 %v1812
  %1892 = vmatprep.subr.bf16.mxu0 0
  %1893 = vmatpush1.bf16.msra.mxu0 %v1813
  %1894 = vmatprep.subr.bf16.mxu0 0
  %1895 = vmatpush1.bf16.msra.mxu0 %v1814
  %1896 = vmatprep.subr.bf16.mxu0 0
  %1897 = vmatpush1.bf16.msra.mxu0 %v1815
  %1898 = vmatprep.subr.bf16.mxu0 0
  %1899 = vmatpush1.bf16.msra.mxu0 %v1816
  %1900 = vmatprep.subr.bf16.mxu0 0
  %1901 = vmatpush1.bf16.msra.mxu0 %v1817
  %1902 = vmatprep.subr.bf16.mxu0 0
  %1903 = vmatpush1.bf16.msra.mxu0 %v1818
  %1904 = vmatprep.subr.bf16.mxu0 0
  %1905 = vmatpush1.bf16.msra.mxu0 %v1819
  %1906 = vmatprep.subr.bf16.mxu0 0
  %1907 = vmatpush1.bf16.msra.mxu0 %v1820
  %1908 = vmatprep.subr.bf16.mxu0 0
  %1909 = vmatpush1.bf16.msra.mxu0 0
  %1910 = vmatprep.subr.bf16.mxu0 0
  %1911 = vmatpush1.bf16.msra.mxu0 0
  %1912 = vmatprep.subr.bf16.mxu0 0
  %1913 = vmatpush1.bf16.msra.mxu0 0
  %1914 = vmatprep.subr.bf16.mxu0 0
  %1915 = vmatpush1.bf16.msra.mxu0 0
  %1916 = vmatprep.subr.bf16.mxu0 0
  %1917 = vmatpush1.bf16.msra.mxu0 0
  %1918 = vmatprep.subr.bf16.mxu0 0
  %1919 = vmatpush1.bf16.msra.mxu0 0
  %1920 = vmatprep.subr.bf16.mxu0 0
  %1921 = vmatpush1.bf16.msra.mxu0 0
  %1922 = vmatprep.mubr.bf16.mxu0 %v1847
  %1923 = vmatmul.mubr.bf16.gmra.mrb[0].mxu0 %v1637
  %v1924 = vpop.f32.mrb[0].mxu0
  %v1925 = vadd.f32 %v1884, %v1924
  %v1926 = vpop.f32.mrb[0].mxu0
  %v1927 = vpop.f32.mrb[0].mxu0
  %v1928 = vadd.f32 %v1887, %v1927
  %v1929 = vpop.f32.mrb[0].mxu0
  %1930 = vdwg.mxu0
  %1931 = vst [vmem:[%s11] sm:$0xff] %v1925
  %1932 = vst [vmem:[%s11 + $0x8] sm:$0xff] %v1928
  %v1933 = vlaneseq
  %v1934 = vand.u32 %v1933, 127
  %vm1935 = vcmp.lt.s32.totalorder %v1934, 20
  %v1936 = vsel %vm1935, 1, 0
  %v1937 = vcvt.s32.f32 %v1936
  %vm1938 = vcmp.ge.s32.totalorder %v1934, 64
  %vm1939 = vcmp.lt.s32.totalorder %v1934, 84
  %vm1940 = vmand %vm1938, %vm1939
  %v1941 = vsel %vm1940, 1, 0
  %v1942 = vcvt.s32.f32 %v1941
  %v1943 = vmul.f32 %v1925, 0.5
  %v1944 = vmul.f32 %v1928, 0.5
  %v1945 = vmul.f32 %v1943, %v1942
  %v1946 = vmul.f32 %v1944, %v1942
  %v1947 = vmul.f32 %v1945, 1.442695
  %v1948 = vpow.pop %v1947
  %v1949 = vmul.f32 %v1946, 1.442695
  %v1950 = vpow.pop %v1949
  %v1951 = vmul.f32 %v1925, %v1937
  %v1952 = vmul.f32 %v1928, %v1937
  %v1953 = vld [vmem:[%s1] sm:$0xff]
  %v1954 = vld [vmem:[%s1 + $0x8] sm:$0xff]
  %v1955 = vmul.f32 %v1953, %v1948
  %v1956 = vmul.f32 %v1954, %v1950
  %v1957 = vadd.f32 %v1951, %v1955
  %v1958 = vadd.f32 %v1952, %v1956
  %v1959 = vpack.c.bf16 %v1958, %v1957
  %v1960 = vld [vmem:[%s6] sm:$0xff]
  %v1961 = vld [vmem:[%s6 + $0x8] sm:$0xff]
  %v1962 = vld [vmem:[%s6 + $0x10] sm:$0xff]
  %v1963 = vld [vmem:[%s6 + $0x18] sm:$0xff]
  %v1964 = vld [vmem:[%s6 + $0x20] sm:$0xff]
  %v1965 = vld [vmem:[%s6 + $0x28] sm:$0xff]
  %v1966 = vld [vmem:[%s6 + $0x30] sm:$0xff]
  %v1967 = vld [vmem:[%s6 + $0x38] sm:$0xff]
  %v1968 = vld [vmem:[%s6 + $0x40] sm:$0xff]
  %v1969 = vld [vmem:[%s6 + $0x48] sm:$0xff]
  %v1970 = vld [vmem:[%s6 + $0x50] sm:$0xff]
  %v1971 = vld [vmem:[%s6 + $0x58] sm:$0xff]
  %v1972 = vld [vmem:[%s6 + $0x60] sm:$0xff]
  %v1973 = vld [vmem:[%s6 + $0x68] sm:$0xff]
  %v1974 = vld [vmem:[%s6 + $0x70] sm:$0xff]
  %v1975 = vld [vmem:[%s6 + $0x78] sm:$0xff]
  %v1976 = vld [vmem:[%s6 + $0x80] sm:$0xff]
  %v1977 = vld [vmem:[%s6 + $0x88] sm:$0xff]
  %v1978 = vld [vmem:[%s6 + $0x90] sm:$0xff]
  %v1979 = vld [vmem:[%s6 + $0x98] sm:$0xff]
  %v1980 = vld [vmem:[%s6 + $0xa0] sm:$0xff]
  %v1981 = vld [vmem:[%s6 + $0xa8] sm:$0xff]
  %v1982 = vld [vmem:[%s6 + $0xb0] sm:$0xff]
  %v1983 = vld [vmem:[%s6 + $0xb8] sm:$0xff]
  %v1984 = vld [vmem:[%s6 + $0xc0] sm:$0xff]
  %v1985 = vld [vmem:[%s6 + $0xc8] sm:$0xff]
  %v1986 = vld [vmem:[%s6 + $0xd0] sm:$0xff]
  %v1987 = vld [vmem:[%s6 + $0xd8] sm:$0xff]
  %v1988 = vld [vmem:[%s6 + $0xe0] sm:$0xff]
  %v1989 = vld [vmem:[%s6 + $0xe8] sm:$0xff]
  %v1990 = vld [vmem:[%s6 + $0xf0] sm:$0xff]
  %v1991 = vld [vmem:[%s6 + $0xf8] sm:$0xff]
  %v1992 = vld [vmem:[%s7] sm:$0xf]
  %v1994 = vlaneseq
  %v1995 = vshrl.u32 %v1994, 7
  %v1996 = vsub.s32 0, %v1995
  %v1997 = vrot.slane %v1992, %v1996
  %v1998 = vlaneseq
  %v1999 = vshrl.u32 %v1998, 7
  %v2000 = vsub.s32 1, %v1999
  %v2001 = vrot.slane %v1992, %v2000
  %v2002 = vlaneseq
  %v2003 = vshrl.u32 %v2002, 7
  %v2004 = vsub.s32 2, %v2003
  %v2005 = vrot.slane %v1992, %v2004
  %v2006 = vlaneseq
  %v2007 = vshrl.u32 %v2006, 7
  %v2008 = vsub.s32 3, %v2007
  %v2009 = vrot.slane %v1992, %v2008
  %v2046 = vunpack.c.l.b16 %v1960
  %v2047 = vunpack.c.h.b16 %v1960
  %v2048 = vunpack.c.l.b16 %v1961
  %v2049 = vunpack.c.h.b16 %v1961
  %v2050 = vunpack.c.l.b16 %v1962
  %v2051 = vunpack.c.h.b16 %v1962
  %v2052 = vunpack.c.l.b16 %v1963
  %v2053 = vunpack.c.h.b16 %v1963
  %v2054 = vunpack.c.l.b16 %v1964
  %v2055 = vunpack.c.h.b16 %v1964
  %v2056 = vunpack.c.l.b16 %v1965
  %v2057 = vunpack.c.h.b16 %v1965
  %v2058 = vunpack.c.l.b16 %v1966
  %v2059 = vunpack.c.h.b16 %v1966
  %v2060 = vunpack.c.l.b16 %v1967
  %v2061 = vunpack.c.h.b16 %v1967
  %v2062 = vunpack.c.l.b16 %v1968
  %v2063 = vunpack.c.h.b16 %v1968
  %v2064 = vunpack.c.l.b16 %v1969
  %v2065 = vunpack.c.h.b16 %v1969
  %v2066 = vunpack.c.l.b16 %v1970
  %v2067 = vunpack.c.h.b16 %v1970
  %v2068 = vunpack.c.l.b16 %v1971
  %v2069 = vunpack.c.h.b16 %v1971
  %v2070 = vunpack.c.l.b16 %v1972
  %v2071 = vunpack.c.h.b16 %v1972
  %v2072 = vunpack.c.l.b16 %v1973
  %v2073 = vunpack.c.h.b16 %v1973
  %v2074 = vunpack.c.l.b16 %v1974
  %v2075 = vunpack.c.h.b16 %v1974
  %v2076 = vunpack.c.l.b16 %v1975
  %v2077 = vunpack.c.h.b16 %v1975
  %v2078 = vunpack.c.l.b16 %v1976
  %v2079 = vunpack.c.h.b16 %v1976
  %v2080 = vunpack.c.l.b16 %v1977
  %v2081 = vunpack.c.h.b16 %v1977
  %v2082 = vunpack.c.l.b16 %v1978
  %v2083 = vunpack.c.h.b16 %v1978
  %v2084 = vunpack.c.l.b16 %v1979
  %v2085 = vunpack.c.h.b16 %v1979
  %v2086 = vunpack.c.l.b16 %v1980
  %v2087 = vunpack.c.h.b16 %v1980
  %v2088 = vunpack.c.l.b16 %v1981
  %v2089 = vunpack.c.h.b16 %v1981
  %v2090 = vunpack.c.l.b16 %v1982
  %v2091 = vunpack.c.h.b16 %v1982
  %v2092 = vunpack.c.l.b16 %v1983
  %v2093 = vunpack.c.h.b16 %v1983
  %v2094 = vunpack.c.l.b16 %v1984
  %v2095 = vunpack.c.h.b16 %v1984
  %v2096 = vunpack.c.l.b16 %v1985
  %v2097 = vunpack.c.h.b16 %v1985
  %v2098 = vunpack.c.l.b16 %v1986
  %v2099 = vunpack.c.h.b16 %v1986
  %v2100 = vunpack.c.l.b16 %v1987
  %v2101 = vunpack.c.h.b16 %v1987
  %v2102 = vunpack.c.l.b16 %v1988
  %v2103 = vunpack.c.h.b16 %v1988
  %v2104 = vunpack.c.l.b16 %v1989
  %v2105 = vunpack.c.h.b16 %v1989
  %v2106 = vunpack.c.l.b16 %v1990
  %v2107 = vunpack.c.h.b16 %v1990
  %v2108 = vunpack.c.l.b16 %v1991
  %v2109 = vunpack.c.h.b16 %v1991
  %v2110 = vpack.c.b16 %v2050, %v2046
  %v2111 = vpack.c.b16 %v2051, %v2047
  %v2112 = vpack.c.b16 %v2052, %v2048
  %v2113 = vpack.c.b16 %v2053, %v2049
  %v2114 = vpack.c.b16 %v2058, %v2054
  %v2115 = vpack.c.b16 %v2059, %v2055
  %v2116 = vpack.c.b16 %v2060, %v2056
  %v2117 = vpack.c.b16 %v2061, %v2057
  %v2118 = vpack.c.b16 %v2066, %v2062
  %v2119 = vpack.c.b16 %v2067, %v2063
  %v2120 = vpack.c.b16 %v2068, %v2064
  %v2121 = vpack.c.b16 %v2069, %v2065
  %v2122 = vpack.c.b16 %v2074, %v2070
  %v2123 = vpack.c.b16 %v2075, %v2071
  %v2124 = vpack.c.b16 %v2076, %v2072
  %v2125 = vpack.c.b16 %v2077, %v2073
  %v2126 = vpack.c.b16 %v2082, %v2078
  %v2127 = vpack.c.b16 %v2083, %v2079
  %v2128 = vpack.c.b16 %v2084, %v2080
  %v2129 = vpack.c.b16 %v2085, %v2081
  %v2130 = vpack.c.b16 %v2090, %v2086
  %v2131 = vpack.c.b16 %v2091, %v2087
  %v2132 = vpack.c.b16 %v2092, %v2088
  %v2133 = vpack.c.b16 %v2093, %v2089
  %v2134 = vpack.c.b16 %v2098, %v2094
  %v2135 = vpack.c.b16 %v2099, %v2095
  %v2136 = vpack.c.b16 %v2100, %v2096
  %v2137 = vpack.c.b16 %v2101, %v2097
  %v2138 = vpack.c.b16 %v2106, %v2102
  %v2139 = vpack.c.b16 %v2107, %v2103
  %v2140 = vpack.c.b16 %v2108, %v2104
  %v2141 = vpack.c.b16 %v2109, %v2105
  %2174 = vmatprep.subr.bf16.mxu0 %v2111
  %2175 = vmatpush1.bf16.msra.mxu0 %v2110
  %2176 = vmatprep.subr.bf16.mxu0 %v2115
  %2177 = vmatpush1.bf16.msra.mxu0 %v2114
  %2178 = vmatprep.subr.bf16.mxu0 %v2119
  %2179 = vmatpush1.bf16.msra.mxu0 %v2118
  %2180 = vmatprep.subr.bf16.mxu0 %v2123
  %2181 = vmatpush1.bf16.msra.mxu0 %v2122
  %2182 = vmatprep.subr.bf16.mxu0 %v2127
  %2183 = vmatpush1.bf16.msra.mxu0 %v2126
  %2184 = vmatprep.subr.bf16.mxu0 %v2131
  %2185 = vmatpush1.bf16.msra.mxu0 %v2130
  %2186 = vmatprep.subr.bf16.mxu0 %v2135
  %2187 = vmatpush1.bf16.msra.mxu0 %v2134
  %2188 = vmatprep.subr.bf16.mxu0 %v2139
  %2189 = vmatpush1.bf16.msra.mxu0 %v2138
  %2190 = vmatprep.subr.bf16.mxu0 0
  %2191 = vmatpush1.bf16.msra.mxu0 0
  %2192 = vmatprep.subr.bf16.mxu0 0
  %2193 = vmatpush1.bf16.msra.mxu0 0
  %2194 = vmatprep.subr.bf16.mxu0 0
  %2195 = vmatpush1.bf16.msra.mxu0 0
  %2196 = vmatprep.subr.bf16.mxu0 0
  %2197 = vmatpush1.bf16.msra.mxu0 0
  %2198 = vmatprep.subr.bf16.mxu0 0
  %2199 = vmatpush1.bf16.msra.mxu0 0
  %2200 = vmatprep.subr.bf16.mxu0 0
  %2201 = vmatpush1.bf16.msra.mxu0 0
  %2202 = vmatprep.subr.bf16.mxu0 0
  %2203 = vmatpush1.bf16.msra.mxu0 0
  %2204 = vmatprep.subr.bf16.mxu0 0
  %2205 = vmatpush1.bf16.msra.mxu0 0
  %2206 = vmatprep.mubr.bf16.mxu0 0
  %2207 = vmatmul.mubr.bf16.gmra.mrb[0].mxu0 %v1959
  %v2208 = vpop.f32.mrb[0].mxu0
  %v2209 = vadd.f32 %v1997, %v2208
  %v2210 = vpop.f32.mrb[0].mxu0
  %v2211 = vadd.f32 %v2001, %v2210
  %v2212 = vpop.f32.mrb[0].mxu0
  %v2213 = vadd.f32 %v1997, %v2212
  %v2214 = vpop.f32.mrb[0].mxu0
  %v2215 = vadd.f32 %v2001, %v2214
  %2216 = vdwg.mxu0
  %2217 = vmatprep.subr.bf16.mxu0 %v2113
  %2218 = vmatpush1.bf16.msra.mxu0 %v2112
  %2219 = vmatprep.subr.bf16.mxu0 %v2117
  %2220 = vmatpush1.bf16.msra.mxu0 %v2116
  %2221 = vmatprep.subr.bf16.mxu0 %v2121
  %2222 = vmatpush1.bf16.msra.mxu0 %v2120
  %2223 = vmatprep.subr.bf16.mxu0 %v2125
  %2224 = vmatpush1.bf16.msra.mxu0 %v2124
  %2225 = vmatprep.subr.bf16.mxu0 %v2129
  %2226 = vmatpush1.bf16.msra.mxu0 %v2128
  %2227 = vmatprep.subr.bf16.mxu0 %v2133
  %2228 = vmatpush1.bf16.msra.mxu0 %v2132
  %2229 = vmatprep.subr.bf16.mxu0 %v2137
  %2230 = vmatpush1.bf16.msra.mxu0 %v2136
  %2231 = vmatprep.subr.bf16.mxu0 %v2141
  %2232 = vmatpush1.bf16.msra.mxu0 %v2140
  %2233 = vmatprep.subr.bf16.mxu0 0
  %2234 = vmatpush1.bf16.msra.mxu0 0
  %2235 = vmatprep.subr.bf16.mxu0 0
  %2236 = vmatpush1.bf16.msra.mxu0 0
  %2237 = vmatprep.subr.bf16.mxu0 0
  %2238 = vmatpush1.bf16.msra.mxu0 0
  %2239 = vmatprep.subr.bf16.mxu0 0
  %2240 = vmatpush1.bf16.msra.mxu0 0
  %2241 = vmatprep.subr.bf16.mxu0 0
  %2242 = vmatpush1.bf16.msra.mxu0 0
  %2243 = vmatprep.subr.bf16.mxu0 0
  %2244 = vmatpush1.bf16.msra.mxu0 0
  %2245 = vmatprep.subr.bf16.mxu0 0
  %2246 = vmatpush1.bf16.msra.mxu0 0
  %2247 = vmatprep.subr.bf16.mxu0 0
  %2248 = vmatpush1.bf16.msra.mxu0 0
  %2249 = vmatprep.mubr.bf16.mxu0 0
  %2250 = vmatmul.mubr.bf16.gmra.mrb[0].mxu0 %v1959
  %v2251 = vpop.f32.mrb[0].mxu0
  %v2252 = vadd.f32 %v2005, %v2251
  %v2253 = vpop.f32.mrb[0].mxu0
  %v2254 = vadd.f32 %v2009, %v2253
  %v2255 = vpop.f32.mrb[0].mxu0
  %v2256 = vadd.f32 %v2005, %v2255
  %v2257 = vpop.f32.mrb[0].mxu0
  %v2258 = vadd.f32 %v2009, %v2257
  %2259 = vdwg.mxu0
  %v2260 = vmax.f32 %v2209, 0.0
  %v2261 = vmax.f32 %v2211, 0.0
  %v2262 = vmax.f32 %v2252, 0.0
  %v2263 = vmax.f32 %v2254, 0.0
  %v2264 = vmax.f32 %v2213, 0.0
  %v2265 = vmax.f32 %v2215, 0.0
  %v2266 = vmax.f32 %v2256, 0.0
  %v2267 = vmax.f32 %v2258, 0.0
  %v2268 = vpack.c.bf16 %v2264, %v2260
  %v2269 = vpack.c.bf16 %v2265, %v2261
  %v2270 = vpack.c.bf16 %v2266, %v2262
  %v2271 = vpack.c.bf16 %v2267, %v2263
  %v2272 = vld [vmem:[%s8] sm:$0xff]
  %v2273 = vld [vmem:[%s8 + $0x8] sm:$0xff]
  %v2274 = vld [vmem:[%s8 + $0x10] sm:$0xff]
  %v2275 = vld [vmem:[%s8 + $0x18] sm:$0xf]
  %v2276 = vld [vmem:[%s8 + $0x1c] sm:$0xff]
  %v2277 = vld [vmem:[%s8 + $0x24] sm:$0xff]
  %v2278 = vld [vmem:[%s8 + $0x2c] sm:$0xff]
  %v2279 = vld [vmem:[%s8 + $0x34] sm:$0xf]
  %v2280 = vld [vmem:[%s8 + $0x38] sm:$0xff]
  %v2281 = vld [vmem:[%s8 + $0x40] sm:$0xff]
  %v2282 = vld [vmem:[%s8 + $0x48] sm:$0xff]
  %v2283 = vld [vmem:[%s8 + $0x50] sm:$0xf]
  %v2284 = vld [vmem:[%s8 + $0x54] sm:$0xff]
  %v2285 = vld [vmem:[%s8 + $0x5c] sm:$0xff]
  %v2286 = vld [vmem:[%s8 + $0x64] sm:$0xff]
  %v2287 = vld [vmem:[%s8 + $0x6c] sm:$0xf]
  %v2288 = vld [vmem:[%s8 + $0x70] sm:$0xff]
  %v2289 = vld [vmem:[%s8 + $0x78] sm:$0xff]
  %v2290 = vld [vmem:[%s8 + $0x80] sm:$0xff]
  %v2291 = vld [vmem:[%s8 + $0x88] sm:$0xf]
  %v2292 = vld [vmem:[%s8 + $0x8c] sm:$0xff]
  %v2293 = vld [vmem:[%s8 + $0x94] sm:$0xff]
  %v2294 = vld [vmem:[%s8 + $0x9c] sm:$0xff]
  %v2295 = vld [vmem:[%s8 + $0xa4] sm:$0xf]
  %v2296 = vld [vmem:[%s8 + $0xa8] sm:$0xff]
  %v2297 = vld [vmem:[%s8 + $0xb0] sm:$0xff]
  %v2298 = vld [vmem:[%s8 + $0xb8] sm:$0xff]
  %v2299 = vld [vmem:[%s8 + $0xc0] sm:$0xf]
  %v2300 = vld [vmem:[%s8 + $0xc4] sm:$0xff]
  %v2301 = vld [vmem:[%s8 + $0xcc] sm:$0xff]
  %v2302 = vld [vmem:[%s8 + $0xd4] sm:$0xff]
  %v2303 = vld [vmem:[%s8 + $0xdc] sm:$0xf]
  %v2304 = vld [vmem:[%s8 + $0xe0] sm:$0xff]
  %v2305 = vld [vmem:[%s8 + $0xe8] sm:$0xff]
  %v2306 = vld [vmem:[%s8 + $0xf0] sm:$0xff]
  %v2307 = vld [vmem:[%s8 + $0xf8] sm:$0xf]
  %v2308 = vld [vmem:[%s8 + $0xfc] sm:$0xff]
  %v2309 = vld [vmem:[%s8 + $0x104] sm:$0xff]
  %v2310 = vld [vmem:[%s8 + $0x10c] sm:$0xff]
  %v2311 = vld [vmem:[%s8 + $0x114] sm:$0xf]
  %v2312 = vld [vmem:[%s8 + $0x118] sm:$0xff]
  %v2313 = vld [vmem:[%s8 + $0x120] sm:$0xff]
  %v2314 = vld [vmem:[%s8 + $0x128] sm:$0xff]
  %v2315 = vld [vmem:[%s8 + $0x130] sm:$0xf]
  %v2316 = vld [vmem:[%s8 + $0x134] sm:$0xff]
  %v2317 = vld [vmem:[%s8 + $0x13c] sm:$0xff]
  %v2318 = vld [vmem:[%s8 + $0x144] sm:$0xff]
  %v2319 = vld [vmem:[%s8 + $0x14c] sm:$0xf]
  %v2320 = vld [vmem:[%s8 + $0x150] sm:$0xff]
  %v2321 = vld [vmem:[%s8 + $0x158] sm:$0xff]
  %v2322 = vld [vmem:[%s8 + $0x160] sm:$0xff]
  %v2323 = vld [vmem:[%s8 + $0x168] sm:$0xf]
  %v2324 = vld [vmem:[%s8 + $0x16c] sm:$0xff]
  %v2325 = vld [vmem:[%s8 + $0x174] sm:$0xff]
  %v2326 = vld [vmem:[%s8 + $0x17c] sm:$0xff]
  %v2327 = vld [vmem:[%s8 + $0x184] sm:$0xf]
  %v2328 = vld [vmem:[%s8 + $0x188] sm:$0xff]
  %v2329 = vld [vmem:[%s8 + $0x190] sm:$0xff]
  %v2330 = vld [vmem:[%s8 + $0x198] sm:$0xff]
  %v2331 = vld [vmem:[%s8 + $0x1a0] sm:$0xf]
  %v2332 = vld [vmem:[%s8 + $0x1a4] sm:$0xff]
  %v2333 = vld [vmem:[%s8 + $0x1ac] sm:$0xff]
  %v2334 = vld [vmem:[%s8 + $0x1b4] sm:$0xff]
  %v2335 = vld [vmem:[%s8 + $0x1bc] sm:$0xf]
  %v2336 = vld [vmem:[%s8 + $0x1c0] sm:$0xff]
  %v2337 = vld [vmem:[%s8 + $0x1c8] sm:$0xff]
  %v2338 = vld [vmem:[%s8 + $0x1d0] sm:$0xff]
  %v2339 = vld [vmem:[%s8 + $0x1d8] sm:$0xf]
  %v2340 = vld [vmem:[%s8 + $0x1dc] sm:$0xff]
  %v2341 = vld [vmem:[%s8 + $0x1e4] sm:$0xff]
  %v2342 = vld [vmem:[%s8 + $0x1ec] sm:$0xff]
  %v2343 = vld [vmem:[%s8 + $0x1f4] sm:$0xf]
  %v2344 = vld [vmem:[%s8 + $0x1f8] sm:$0xff]
  %v2345 = vld [vmem:[%s8 + $0x200] sm:$0xff]
  %v2346 = vld [vmem:[%s8 + $0x208] sm:$0xff]
  %v2347 = vld [vmem:[%s8 + $0x210] sm:$0xf]
  %v2348 = vld [vmem:[%s8 + $0x214] sm:$0xff]
  %v2349 = vld [vmem:[%s8 + $0x21c] sm:$0xff]
  %v2350 = vld [vmem:[%s8 + $0x224] sm:$0xff]
  %v2351 = vld [vmem:[%s8 + $0x22c] sm:$0xf]
  %v2352 = vld [vmem:[%s8 + $0x230] sm:$0xff]
  %v2353 = vld [vmem:[%s8 + $0x238] sm:$0xff]
  %v2354 = vld [vmem:[%s8 + $0x240] sm:$0xff]
  %v2355 = vld [vmem:[%s8 + $0x248] sm:$0xf]
  %v2356 = vld [vmem:[%s8 + $0x24c] sm:$0xff]
  %v2357 = vld [vmem:[%s8 + $0x254] sm:$0xff]
  %v2358 = vld [vmem:[%s8 + $0x25c] sm:$0xff]
  %v2359 = vld [vmem:[%s8 + $0x264] sm:$0xf]
  %v2360 = vld [vmem:[%s8 + $0x268] sm:$0xff]
  %v2361 = vld [vmem:[%s8 + $0x270] sm:$0xff]
  %v2362 = vld [vmem:[%s8 + $0x278] sm:$0xff]
  %v2363 = vld [vmem:[%s8 + $0x280] sm:$0xf]
  %v2364 = vld [vmem:[%s8 + $0x284] sm:$0xff]
  %v2365 = vld [vmem:[%s8 + $0x28c] sm:$0xff]
  %v2366 = vld [vmem:[%s8 + $0x294] sm:$0xff]
  %v2367 = vld [vmem:[%s8 + $0x29c] sm:$0xf]
  %v2368 = vld [vmem:[%s8 + $0x2a0] sm:$0xff]
  %v2369 = vld [vmem:[%s8 + $0x2a8] sm:$0xff]
  %v2370 = vld [vmem:[%s8 + $0x2b0] sm:$0xff]
  %v2371 = vld [vmem:[%s8 + $0x2b8] sm:$0xf]
  %v2372 = vld [vmem:[%s8 + $0x2bc] sm:$0xff]
  %v2373 = vld [vmem:[%s8 + $0x2c4] sm:$0xff]
  %v2374 = vld [vmem:[%s8 + $0x2cc] sm:$0xff]
  %v2375 = vld [vmem:[%s8 + $0x2d4] sm:$0xf]
  %v2376 = vld [vmem:[%s8 + $0x2d8] sm:$0xff]
  %v2377 = vld [vmem:[%s8 + $0x2e0] sm:$0xff]
  %v2378 = vld [vmem:[%s8 + $0x2e8] sm:$0xff]
  %v2379 = vld [vmem:[%s8 + $0x2f0] sm:$0xf]
  %v2380 = vld [vmem:[%s8 + $0x2f4] sm:$0xff]
  %v2381 = vld [vmem:[%s8 + $0x2fc] sm:$0xff]
  %v2382 = vld [vmem:[%s8 + $0x304] sm:$0xff]
  %v2383 = vld [vmem:[%s8 + $0x30c] sm:$0xf]
  %v2384 = vld [vmem:[%s8 + $0x310] sm:$0xff]
  %v2385 = vld [vmem:[%s8 + $0x318] sm:$0xff]
  %v2386 = vld [vmem:[%s8 + $0x320] sm:$0xff]
  %v2387 = vld [vmem:[%s8 + $0x328] sm:$0xf]
  %v2388 = vld [vmem:[%s8 + $0x32c] sm:$0xff]
  %v2389 = vld [vmem:[%s8 + $0x334] sm:$0xff]
  %v2390 = vld [vmem:[%s8 + $0x33c] sm:$0xff]
  %v2391 = vld [vmem:[%s8 + $0x344] sm:$0xf]
  %v2392 = vld [vmem:[%s8 + $0x348] sm:$0xff]
  %v2393 = vld [vmem:[%s8 + $0x350] sm:$0xff]
  %v2394 = vld [vmem:[%s8 + $0x358] sm:$0xff]
  %v2395 = vld [vmem:[%s8 + $0x360] sm:$0xf]
  %v2396 = vld [vmem:[%s8 + $0x364] sm:$0xff]
  %v2397 = vld [vmem:[%s8 + $0x36c] sm:$0xff]
  %v2398 = vld [vmem:[%s8 + $0x374] sm:$0xff]
  %v2399 = vld [vmem:[%s8 + $0x37c] sm:$0xf]
  %v2400 = vld [vmem:[%s8 + $0x380] sm:$0xff]
  %v2401 = vld [vmem:[%s8 + $0x388] sm:$0xff]
  %v2402 = vld [vmem:[%s8 + $0x390] sm:$0xff]
  %v2403 = vld [vmem:[%s8 + $0x398] sm:$0xf]
  %v2404 = vld [vmem:[%s8 + $0x39c] sm:$0xff]
  %v2405 = vld [vmem:[%s8 + $0x3a4] sm:$0xff]
  %v2406 = vld [vmem:[%s8 + $0x3ac] sm:$0xff]
  %v2407 = vld [vmem:[%s8 + $0x3b4] sm:$0xf]
  %v2408 = vld [vmem:[%s8 + $0x3b8] sm:$0xff]
  %v2409 = vld [vmem:[%s8 + $0x3c0] sm:$0xff]
  %v2410 = vld [vmem:[%s8 + $0x3c8] sm:$0xff]
  %v2411 = vld [vmem:[%s8 + $0x3d0] sm:$0xf]
  %v2412 = vld [vmem:[%s8 + $0x3d4] sm:$0xff]
  %v2413 = vld [vmem:[%s8 + $0x3dc] sm:$0xff]
  %v2414 = vld [vmem:[%s8 + $0x3e4] sm:$0xff]
  %v2415 = vld [vmem:[%s8 + $0x3ec] sm:$0xf]
  %v2416 = vld [vmem:[%s8 + $0x3f0] sm:$0xff]
  %v2417 = vld [vmem:[%s8 + $0x3f8] sm:$0xff]
  %v2418 = vld [vmem:[%s8 + $0x400] sm:$0xff]
  %v2419 = vld [vmem:[%s8 + $0x408] sm:$0xf]
  %v2420 = vld [vmem:[%s8 + $0x40c] sm:$0xff]
  %v2421 = vld [vmem:[%s8 + $0x414] sm:$0xff]
  %v2422 = vld [vmem:[%s8 + $0x41c] sm:$0xff]
  %v2423 = vld [vmem:[%s8 + $0x424] sm:$0xf]
  %v2424 = vld [vmem:[%s8 + $0x428] sm:$0xff]
  %v2425 = vld [vmem:[%s8 + $0x430] sm:$0xff]
  %v2426 = vld [vmem:[%s8 + $0x438] sm:$0xff]
  %v2427 = vld [vmem:[%s8 + $0x440] sm:$0xf]
  %v2428 = vld [vmem:[%s8 + $0x444] sm:$0xff]
  %v2429 = vld [vmem:[%s8 + $0x44c] sm:$0xff]
  %v2430 = vld [vmem:[%s8 + $0x454] sm:$0xff]
  %v2431 = vld [vmem:[%s8 + $0x45c] sm:$0xf]
  %v2432 = vld [vmem:[%s8 + $0x460] sm:$0xff]
  %v2433 = vld [vmem:[%s8 + $0x468] sm:$0xff]
  %v2434 = vld [vmem:[%s8 + $0x470] sm:$0xff]
  %v2435 = vld [vmem:[%s8 + $0x478] sm:$0xf]
  %v2436 = vld [vmem:[%s8 + $0x47c] sm:$0xff]
  %v2437 = vld [vmem:[%s8 + $0x484] sm:$0xff]
  %v2438 = vld [vmem:[%s8 + $0x48c] sm:$0xff]
  %v2439 = vld [vmem:[%s8 + $0x494] sm:$0xf]
  %v2440 = vld [vmem:[%s8 + $0x498] sm:$0xff]
  %v2441 = vld [vmem:[%s8 + $0x4a0] sm:$0xff]
  %v2442 = vld [vmem:[%s8 + $0x4a8] sm:$0xff]
  %v2443 = vld [vmem:[%s8 + $0x4b0] sm:$0xf]
  %v2444 = vld [vmem:[%s8 + $0x4b4] sm:$0xff]
  %v2445 = vld [vmem:[%s8 + $0x4bc] sm:$0xff]
  %v2446 = vld [vmem:[%s8 + $0x4c4] sm:$0xff]
  %v2447 = vld [vmem:[%s8 + $0x4cc] sm:$0xf]
  %v2448 = vld [vmem:[%s8 + $0x4d0] sm:$0xff]
  %v2449 = vld [vmem:[%s8 + $0x4d8] sm:$0xff]
  %v2450 = vld [vmem:[%s8 + $0x4e0] sm:$0xff]
  %v2451 = vld [vmem:[%s8 + $0x4e8] sm:$0xf]
  %v2452 = vld [vmem:[%s8 + $0x4ec] sm:$0xff]
  %v2453 = vld [vmem:[%s8 + $0x4f4] sm:$0xff]
  %v2454 = vld [vmem:[%s8 + $0x4fc] sm:$0xff]
  %v2455 = vld [vmem:[%s8 + $0x504] sm:$0xf]
  %v2456 = vld [vmem:[%s8 + $0x508] sm:$0xff]
  %v2457 = vld [vmem:[%s8 + $0x510] sm:$0xff]
  %v2458 = vld [vmem:[%s8 + $0x518] sm:$0xff]
  %v2459 = vld [vmem:[%s8 + $0x520] sm:$0xf]
  %v2460 = vld [vmem:[%s8 + $0x524] sm:$0xff]
  %v2461 = vld [vmem:[%s8 + $0x52c] sm:$0xff]
  %v2462 = vld [vmem:[%s8 + $0x534] sm:$0xff]
  %v2463 = vld [vmem:[%s8 + $0x53c] sm:$0xf]
  %v2464 = vld [vmem:[%s8 + $0x540] sm:$0xff]
  %v2465 = vld [vmem:[%s8 + $0x548] sm:$0xff]
  %v2466 = vld [vmem:[%s8 + $0x550] sm:$0xff]
  %v2467 = vld [vmem:[%s8 + $0x558] sm:$0xf]
  %v2468 = vld [vmem:[%s8 + $0x55c] sm:$0xff]
  %v2469 = vld [vmem:[%s8 + $0x564] sm:$0xff]
  %v2470 = vld [vmem:[%s8 + $0x56c] sm:$0xff]
  %v2471 = vld [vmem:[%s8 + $0x574] sm:$0xf]
  %v2472 = vld [vmem:[%s9] sm:$0x7f]
  %v2474 = vlaneseq
  %v2475 = vshrl.u32 %v2474, 7
  %v2476 = vsub.s32 0, %v2475
  %v2477 = vrot.slane %v2472, %v2476
  %v2478 = vlaneseq
  %v2479 = vshrl.u32 %v2478, 7
  %v2480 = vsub.s32 1, %v2479
  %v2481 = vrot.slane %v2472, %v2480
  %v2482 = vlaneseq
  %v2483 = vshrl.u32 %v2482, 7
  %v2484 = vsub.s32 2, %v2483
  %v2485 = vrot.slane %v2472, %v2484
  %v2486 = vlaneseq
  %v2487 = vshrl.u32 %v2486, 7
  %v2488 = vsub.s32 3, %v2487
  %v2489 = vrot.slane %v2472, %v2488
  %v2490 = vlaneseq
  %v2491 = vshrl.u32 %v2490, 7
  %v2492 = vsub.s32 4, %v2491
  %v2493 = vrot.slane %v2472, %v2492
  %v2494 = vlaneseq
  %v2495 = vshrl.u32 %v2494, 7
  %v2496 = vsub.s32 5, %v2495
  %v2497 = vrot.slane %v2472, %v2496
  %v2498 = vlaneseq
  %v2499 = vshrl.u32 %v2498, 7
  %v2500 = vsub.s32 6, %v2499
  %v2501 = vrot.slane %v2472, %v2500
  %v2709 = vunpack.c.l.b16 %v2272
  %v2710 = vunpack.c.h.b16 %v2272
  %v2711 = vunpack.c.l.b16 %v2273
  %v2712 = vunpack.c.h.b16 %v2273
  %v2713 = vunpack.c.l.b16 %v2274
  %v2714 = vunpack.c.h.b16 %v2274
  %v2715 = vunpack.c.l.b16 %v2275
  %v2716 = vunpack.c.l.b16 %v2276
  %v2717 = vunpack.c.h.b16 %v2276
  %v2718 = vunpack.c.l.b16 %v2277
  %v2719 = vunpack.c.h.b16 %v2277
  %v2720 = vunpack.c.l.b16 %v2278
  %v2721 = vunpack.c.h.b16 %v2278
  %v2722 = vunpack.c.l.b16 %v2279
  %v2723 = vunpack.c.l.b16 %v2280
  %v2724 = vunpack.c.h.b16 %v2280
  %v2725 = vunpack.c.l.b16 %v2281
  %v2726 = vunpack.c.h.b16 %v2281
  %v2727 = vunpack.c.l.b16 %v2282
  %v2728 = vunpack.c.h.b16 %v2282
  %v2729 = vunpack.c.l.b16 %v2283
  %v2730 = vunpack.c.l.b16 %v2284
  %v2731 = vunpack.c.h.b16 %v2284
  %v2732 = vunpack.c.l.b16 %v2285
  %v2733 = vunpack.c.h.b16 %v2285
  %v2734 = vunpack.c.l.b16 %v2286
  %v2735 = vunpack.c.h.b16 %v2286
  %v2736 = vunpack.c.l.b16 %v2287
  %v2737 = vunpack.c.l.b16 %v2288
  %v2738 = vunpack.c.h.b16 %v2288
  %v2739 = vunpack.c.l.b16 %v2289
  %v2740 = vunpack.c.h.b16 %v2289
  %v2741 = vunpack.c.l.b16 %v2290
  %v2742 = vunpack.c.h.b16 %v2290
  %v2743 = vunpack.c.l.b16 %v2291
  %v2744 = vunpack.c.l.b16 %v2292
  %v2745 = vunpack.c.h.b16 %v2292
  %v2746 = vunpack.c.l.b16 %v2293
  %v2747 = vunpack.c.h.b16 %v2293
  %v2748 = vunpack.c.l.b16 %v2294
  %v2749 = vunpack.c.h.b16 %v2294
  %v2750 = vunpack.c.l.b16 %v2295
  %v2751 = vunpack.c.l.b16 %v2296
  %v2752 = vunpack.c.h.b16 %v2296
  %v2753 = vunpack.c.l.b16 %v2297
  %v2754 = vunpack.c.h.b16 %v2297
  %v2755 = vunpack.c.l.b16 %v2298
  %v2756 = vunpack.c.h.b16 %v2298
  %v2757 = vunpack.c.l.b16 %v2299
  %v2758 = vunpack.c.l.b16 %v2300
  %v2759 = vunpack.c.h.b16 %v2300
  %v2760 = vunpack.c.l.b16 %v2301
  %v2761 = vunpack.c.h.b16 %v2301
  %v2762 = vunpack.c.l.b16 %v2302
  %v2763 = vunpack.c.h.b16 %v2302
  %v2764 = vunpack.c.l.b16 %v2303
  %v2765 = vunpack.c.l.b16 %v2304
  %v2766 = vunpack.c.h.b16 %v2304
  %v2767 = vunpack.c.l.b16 %v2305
  %v2768 = vunpack.c.h.b16 %v2305
  %v2769 = vunpack.c.l.b16 %v2306
  %v2770 = vunpack.c.h.b16 %v2306
  %v2771 = vunpack.c.l.b16 %v2307
  %v2772 = vunpack.c.l.b16 %v2308
  %v2773 = vunpack.c.h.b16 %v2308
  %v2774 = vunpack.c.l.b16 %v2309
  %v2775 = vunpack.c.h.b16 %v2309
  %v2776 = vunpack.c.l.b16 %v2310
  %v2777 = vunpack.c.h.b16 %v2310
  %v2778 = vunpack.c.l.b16 %v2311
  %v2779 = vunpack.c.l.b16 %v2312
  %v2780 = vunpack.c.h.b16 %v2312
  %v2781 = vunpack.c.l.b16 %v2313
  %v2782 = vunpack.c.h.b16 %v2313
  %v2783 = vunpack.c.l.b16 %v2314
  %v2784 = vunpack.c.h.b16 %v2314
  %v2785 = vunpack.c.l.b16 %v2315
  %v2786 = vunpack.c.l.b16 %v2316
  %v2787 = vunpack.c.h.b16 %v2316
  %v2788 = vunpack.c.l.b16 %v2317
  %v2789 = vunpack.c.h.b16 %v2317
  %v2790 = vunpack.c.l.b16 %v2318
  %v2791 = vunpack.c.h.b16 %v2318
  %v2792 = vunpack.c.l.b16 %v2319
  %v2793 = vunpack.c.l.b16 %v2320
  %v2794 = vunpack.c.h.b16 %v2320
  %v2795 = vunpack.c.l.b16 %v2321
  %v2796 = vunpack.c.h.b16 %v2321
  %v2797 = vunpack.c.l.b16 %v2322
  %v2798 = vunpack.c.h.b16 %v2322
  %v2799 = vunpack.c.l.b16 %v2323
  %v2800 = vunpack.c.l.b16 %v2324
  %v2801 = vunpack.c.h.b16 %v2324
  %v2802 = vunpack.c.l.b16 %v2325
  %v2803 = vunpack.c.h.b16 %v2325
  %v2804 = vunpack.c.l.b16 %v2326
  %v2805 = vunpack.c.h.b16 %v2326
  %v2806 = vunpack.c.l.b16 %v2327
  %v2807 = vunpack.c.l.b16 %v2328
  %v2808 = vunpack.c.h.b16 %v2328
  %v2809 = vunpack.c.l.b16 %v2329
  %v2810 = vunpack.c.h.b16 %v2329
  %v2811 = vunpack.c.l.b16 %v2330
  %v2812 = vunpack.c.h.b16 %v2330
  %v2813 = vunpack.c.l.b16 %v2331
  %v2814 = vunpack.c.l.b16 %v2332
  %v2815 = vunpack.c.h.b16 %v2332
  %v2816 = vunpack.c.l.b16 %v2333
  %v2817 = vunpack.c.h.b16 %v2333
  %v2818 = vunpack.c.l.b16 %v2334
  %v2819 = vunpack.c.h.b16 %v2334
  %v2820 = vunpack.c.l.b16 %v2335
  %v2821 = vunpack.c.l.b16 %v2336
  %v2822 = vunpack.c.h.b16 %v2336
  %v2823 = vunpack.c.l.b16 %v2337
  %v2824 = vunpack.c.h.b16 %v2337
  %v2825 = vunpack.c.l.b16 %v2338
  %v2826 = vunpack.c.h.b16 %v2338
  %v2827 = vunpack.c.l.b16 %v2339
  %v2828 = vunpack.c.l.b16 %v2340
  %v2829 = vunpack.c.h.b16 %v2340
  %v2830 = vunpack.c.l.b16 %v2341
  %v2831 = vunpack.c.h.b16 %v2341
  %v2832 = vunpack.c.l.b16 %v2342
  %v2833 = vunpack.c.h.b16 %v2342
  %v2834 = vunpack.c.l.b16 %v2343
  %v2835 = vunpack.c.l.b16 %v2344
  %v2836 = vunpack.c.h.b16 %v2344
  %v2837 = vunpack.c.l.b16 %v2345
  %v2838 = vunpack.c.h.b16 %v2345
  %v2839 = vunpack.c.l.b16 %v2346
  %v2840 = vunpack.c.h.b16 %v2346
  %v2841 = vunpack.c.l.b16 %v2347
  %v2842 = vunpack.c.l.b16 %v2348
  %v2843 = vunpack.c.h.b16 %v2348
  %v2844 = vunpack.c.l.b16 %v2349
  %v2845 = vunpack.c.h.b16 %v2349
  %v2846 = vunpack.c.l.b16 %v2350
  %v2847 = vunpack.c.h.b16 %v2350
  %v2848 = vunpack.c.l.b16 %v2351
  %v2849 = vunpack.c.l.b16 %v2352
  %v2850 = vunpack.c.h.b16 %v2352
  %v2851 = vunpack.c.l.b16 %v2353
  %v2852 = vunpack.c.h.b16 %v2353
  %v2853 = vunpack.c.l.b16 %v2354
  %v2854 = vunpack.c.h.b16 %v2354
  %v2855 = vunpack.c.l.b16 %v2355
  %v2856 = vunpack.c.l.b16 %v2356
  %v2857 = vunpack.c.h.b16 %v2356
  %v2858 = vunpack.c.l.b16 %v2357
  %v2859 = vunpack.c.h.b16 %v2357
  %v2860 = vunpack.c.l.b16 %v2358
  %v2861 = vunpack.c.h.b16 %v2358
  %v2862 = vunpack.c.l.b16 %v2359
  %v2863 = vunpack.c.l.b16 %v2360
  %v2864 = vunpack.c.h.b16 %v2360
  %v2865 = vunpack.c.l.b16 %v2361
  %v2866 = vunpack.c.h.b16 %v2361
  %v2867 = vunpack.c.l.b16 %v2362
  %v2868 = vunpack.c.h.b16 %v2362
  %v2869 = vunpack.c.l.b16 %v2363
  %v2870 = vunpack.c.l.b16 %v2364
  %v2871 = vunpack.c.h.b16 %v2364
  %v2872 = vunpack.c.l.b16 %v2365
  %v2873 = vunpack.c.h.b16 %v2365
  %v2874 = vunpack.c.l.b16 %v2366
  %v2875 = vunpack.c.h.b16 %v2366
  %v2876 = vunpack.c.l.b16 %v2367
  %v2877 = vunpack.c.l.b16 %v2368
  %v2878 = vunpack.c.h.b16 %v2368
  %v2879 = vunpack.c.l.b16 %v2369
  %v2880 = vunpack.c.h.b16 %v2369
  %v2881 = vunpack.c.l.b16 %v2370
  %v2882 = vunpack.c.h.b16 %v2370
  %v2883 = vunpack.c.l.b16 %v2371
  %v2884 = vunpack.c.l.b16 %v2372
  %v2885 = vunpack.c.h.b16 %v2372
  %v2886 = vunpack.c.l.b16 %v2373
  %v2887 = vunpack.c.h.b16 %v2373
  %v2888 = vunpack.c.l.b16 %v2374
  %v2889 = vunpack.c.h.b16 %v2374
  %v2890 = vunpack.c.l.b16 %v2375
  %v2891 = vunpack.c.l.b16 %v2376
  %v2892 = vunpack.c.h.b16 %v2376
  %v2893 = vunpack.c.l.b16 %v2377
  %v2894 = vunpack.c.h.b16 %v2377
  %v2895 = vunpack.c.l.b16 %v2378
  %v2896 = vunpack.c.h.b16 %v2378
  %v2897 = vunpack.c.l.b16 %v2379
  %v2898 = vunpack.c.l.b16 %v2380
  %v2899 = vunpack.c.h.b16 %v2380
  %v2900 = vunpack.c.l.b16 %v2381
  %v2901 = vunpack.c.h.b16 %v2381
  %v2902 = vunpack.c.l.b16 %v2382
  %v2903 = vunpack.c.h.b16 %v2382
  %v2904 = vunpack.c.l.b16 %v2383
  %v2905 = vunpack.c.l.b16 %v2384
  %v2906 = vunpack.c.h.b16 %v2384
  %v2907 = vunpack.c.l.b16 %v2385
  %v2908 = vunpack.c.h.b16 %v2385
  %v2909 = vunpack.c.l.b16 %v2386
  %v2910 = vunpack.c.h.b16 %v2386
  %v2911 = vunpack.c.l.b16 %v2387
  %v2912 = vunpack.c.l.b16 %v2388
  %v2913 = vunpack.c.h.b16 %v2388
  %v2914 = vunpack.c.l.b16 %v2389
  %v2915 = vunpack.c.h.b16 %v2389
  %v2916 = vunpack.c.l.b16 %v2390
  %v2917 = vunpack.c.h.b16 %v2390
  %v2918 = vunpack.c.l.b16 %v2391
  %v2919 = vunpack.c.l.b16 %v2392
  %v2920 = vunpack.c.h.b16 %v2392
  %v2921 = vunpack.c.l.b16 %v2393
  %v2922 = vunpack.c.h.b16 %v2393
  %v2923 = vunpack.c.l.b16 %v2394
  %v2924 = vunpack.c.h.b16 %v2394
  %v2925 = vunpack.c.l.b16 %v2395
  %v2926 = vunpack.c.l.b16 %v2396
  %v2927 = vunpack.c.h.b16 %v2396
  %v2928 = vunpack.c.l.b16 %v2397
  %v2929 = vunpack.c.h.b16 %v2397
  %v2930 = vunpack.c.l.b16 %v2398
  %v2931 = vunpack.c.h.b16 %v2398
  %v2932 = vunpack.c.l.b16 %v2399
  %v2933 = vunpack.c.l.b16 %v2400
  %v2934 = vunpack.c.h.b16 %v2400
  %v2935 = vunpack.c.l.b16 %v2401
  %v2936 = vunpack.c.h.b16 %v2401
  %v2937 = vunpack.c.l.b16 %v2402
  %v2938 = vunpack.c.h.b16 %v2402
  %v2939 = vunpack.c.l.b16 %v2403
  %v2940 = vunpack.c.l.b16 %v2404
  %v2941 = vunpack.c.h.b16 %v2404
  %v2942 = vunpack.c.l.b16 %v2405
  %v2943 = vunpack.c.h.b16 %v2405
  %v2944 = vunpack.c.l.b16 %v2406
  %v2945 = vunpack.c.h.b16 %v2406
  %v2946 = vunpack.c.l.b16 %v2407
  %v2947 = vunpack.c.l.b16 %v2408
  %v2948 = vunpack.c.h.b16 %v2408
  %v2949 = vunpack.c.l.b16 %v2409
  %v2950 = vunpack.c.h.b16 %v2409
  %v2951 = vunpack.c.l.b16 %v2410
  %v2952 = vunpack.c.h.b16 %v2410
  %v2953 = vunpack.c.l.b16 %v2411
  %v2954 = vunpack.c.l.b16 %v2412
  %v2955 = vunpack.c.h.b16 %v2412
  %v2956 = vunpack.c.l.b16 %v2413
  %v2957 = vunpack.c.h.b16 %v2413
  %v2958 = vunpack.c.l.b16 %v2414
  %v2959 = vunpack.c.h.b16 %v2414
  %v2960 = vunpack.c.l.b16 %v2415
  %v2961 = vunpack.c.l.b16 %v2416
  %v2962 = vunpack.c.h.b16 %v2416
  %v2963 = vunpack.c.l.b16 %v2417
  %v2964 = vunpack.c.h.b16 %v2417
  %v2965 = vunpack.c.l.b16 %v2418
  %v2966 = vunpack.c.h.b16 %v2418
  %v2967 = vunpack.c.l.b16 %v2419
  %v2968 = vunpack.c.l.b16 %v2420
  %v2969 = vunpack.c.h.b16 %v2420
  %v2970 = vunpack.c.l.b16 %v2421
  %v2971 = vunpack.c.h.b16 %v2421
  %v2972 = vunpack.c.l.b16 %v2422
  %v2973 = vunpack.c.h.b16 %v2422
  %v2974 = vunpack.c.l.b16 %v2423
  %v2975 = vunpack.c.l.b16 %v2424
  %v2976 = vunpack.c.h.b16 %v2424
  %v2977 = vunpack.c.l.b16 %v2425
  %v2978 = vunpack.c.h.b16 %v2425
  %v2979 = vunpack.c.l.b16 %v2426
  %v2980 = vunpack.c.h.b16 %v2426
  %v2981 = vunpack.c.l.b16 %v2427
  %v2982 = vunpack.c.l.b16 %v2428
  %v2983 = vunpack.c.h.b16 %v2428
  %v2984 = vunpack.c.l.b16 %v2429
  %v2985 = vunpack.c.h.b16 %v2429
  %v2986 = vunpack.c.l.b16 %v2430
  %v2987 = vunpack.c.h.b16 %v2430
  %v2988 = vunpack.c.l.b16 %v2431
  %v2989 = vunpack.c.l.b16 %v2432
  %v2990 = vunpack.c.h.b16 %v2432
  %v2991 = vunpack.c.l.b16 %v2433
  %v2992 = vunpack.c.h.b16 %v2433
  %v2993 = vunpack.c.l.b16 %v2434
  %v2994 = vunpack.c.h.b16 %v2434
  %v2995 = vunpack.c.l.b16 %v2435
  %v2996 = vunpack.c.l.b16 %v2436
  %v2997 = vunpack.c.h.b16 %v2436
  %v2998 = vunpack.c.l.b16 %v2437
  %v2999 = vunpack.c.h.b16 %v2437
  %v3000 = vunpack.c.l.b16 %v2438
  %v3001 = vunpack.c.h.b16 %v2438
  %v3002 = vunpack.c.l.b16 %v2439
  %v3003 = vunpack.c.l.b16 %v2440
  %v3004 = vunpack.c.h.b16 %v2440
  %v3005 = vunpack.c.l.b16 %v2441
  %v3006 = vunpack.c.h.b16 %v2441
  %v3007 = vunpack.c.l.b16 %v2442
  %v3008 = vunpack.c.h.b16 %v2442
  %v3009 = vunpack.c.l.b16 %v2443
  %v3010 = vunpack.c.l.b16 %v2444
  %v3011 = vunpack.c.h.b16 %v2444
  %v3012 = vunpack.c.l.b16 %v2445
  %v3013 = vunpack.c.h.b16 %v2445
  %v3014 = vunpack.c.l.b16 %v2446
  %v3015 = vunpack.c.h.b16 %v2446
  %v3016 = vunpack.c.l.b16 %v2447
  %v3017 = vunpack.c.l.b16 %v2448
  %v3018 = vunpack.c.h.b16 %v2448
  %v3019 = vunpack.c.l.b16 %v2449
  %v3020 = vunpack.c.h.b16 %v2449
  %v3021 = vunpack.c.l.b16 %v2450
  %v3022 = vunpack.c.h.b16 %v2450
  %v3023 = vunpack.c.l.b16 %v2451
  %v3024 = vunpack.c.l.b16 %v2452
  %v3025 = vunpack.c.h.b16 %v2452
  %v3026 = vunpack.c.l.b16 %v2453
  %v3027 = vunpack.c.h.b16 %v2453
  %v3028 = vunpack.c.l.b16 %v2454
  %v3029 = vunpack.c.h.b16 %v2454
  %v3030 = vunpack.c.l.b16 %v2455
  %v3031 = vunpack.c.l.b16 %v2456
  %v3032 = vunpack.c.h.b16 %v2456
  %v3033 = vunpack.c.l.b16 %v2457
  %v3034 = vunpack.c.h.b16 %v2457
  %v3035 = vunpack.c.l.b16 %v2458
  %v3036 = vunpack.c.h.b16 %v2458
  %v3037 = vunpack.c.l.b16 %v2459
  %v3038 = vunpack.c.l.b16 %v2460
  %v3039 = vunpack.c.h.b16 %v2460
  %v3040 = vunpack.c.l.b16 %v2461
  %v3041 = vunpack.c.h.b16 %v2461
  %v3042 = vunpack.c.l.b16 %v2462
  %v3043 = vunpack.c.h.b16 %v2462
  %v3044 = vunpack.c.l.b16 %v2463
  %v3045 = vunpack.c.l.b16 %v2464
  %v3046 = vunpack.c.h.b16 %v2464
  %v3047 = vunpack.c.l.b16 %v2465
  %v3048 = vunpack.c.h.b16 %v2465
  %v3049 = vunpack.c.l.b16 %v2466
  %v3050 = vunpack.c.h.b16 %v2466
  %v3051 = vunpack.c.l.b16 %v2467
  %v3052 = vunpack.c.l.b16 %v2468
  %v3053 = vunpack.c.h.b16 %v2468
  %v3054 = vunpack.c.l.b16 %v2469
  %v3055 = vunpack.c.h.b16 %v2469
  %v3056 = vunpack.c.l.b16 %v2470
  %v3057 = vunpack.c.h.b16 %v2470
  %v3058 = vunpack.c.l.b16 %v2471
  %v3059 = vpack.c.b16 %v2716, %v2709
  %v3060 = vpack.c.b16 %v2717, %v2710
  %v3061 = vpack.c.b16 %v2718, %v2711
  %v3062 = vpack.c.b16 %v2719, %v2712
  %v3063 = vpack.c.b16 %v2720, %v2713
  %v3064 = vpack.c.b16 %v2721, %v2714
  %v3065 = vpack.c.b16 %v2722, %v2715
  %v3066 = vpack.c.b16 %v2730, %v2723
  %v3067 = vpack.c.b16 %v2731, %v2724
  %v3068 = vpack.c.b16 %v2732, %v2725
  %v3069 = vpack.c.b16 %v2733, %v2726
  %v3070 = vpack.c.b16 %v2734, %v2727
  %v3071 = vpack.c.b16 %v2735, %v2728
  %v3072 = vpack.c.b16 %v2736, %v2729
  %v3073 = vpack.c.b16 %v2744, %v2737
  %v3074 = vpack.c.b16 %v2745, %v2738
  %v3075 = vpack.c.b16 %v2746, %v2739
  %v3076 = vpack.c.b16 %v2747, %v2740
  %v3077 = vpack.c.b16 %v2748, %v2741
  %v3078 = vpack.c.b16 %v2749, %v2742
  %v3079 = vpack.c.b16 %v2750, %v2743
  %v3080 = vpack.c.b16 %v2758, %v2751
  %v3081 = vpack.c.b16 %v2759, %v2752
  %v3082 = vpack.c.b16 %v2760, %v2753
  %v3083 = vpack.c.b16 %v2761, %v2754
  %v3084 = vpack.c.b16 %v2762, %v2755
  %v3085 = vpack.c.b16 %v2763, %v2756
  %v3086 = vpack.c.b16 %v2764, %v2757
  %v3087 = vpack.c.b16 %v2772, %v2765
  %v3088 = vpack.c.b16 %v2773, %v2766
  %v3089 = vpack.c.b16 %v2774, %v2767
  %v3090 = vpack.c.b16 %v2775, %v2768
  %v3091 = vpack.c.b16 %v2776, %v2769
  %v3092 = vpack.c.b16 %v2777, %v2770
  %v3093 = vpack.c.b16 %v2778, %v2771
  %v3094 = vpack.c.b16 %v2786, %v2779
  %v3095 = vpack.c.b16 %v2787, %v2780
  %v3096 = vpack.c.b16 %v2788, %v2781
  %v3097 = vpack.c.b16 %v2789, %v2782
  %v3098 = vpack.c.b16 %v2790, %v2783
  %v3099 = vpack.c.b16 %v2791, %v2784
  %v3100 = vpack.c.b16 %v2792, %v2785
  %v3101 = vpack.c.b16 %v2800, %v2793
  %v3102 = vpack.c.b16 %v2801, %v2794
  %v3103 = vpack.c.b16 %v2802, %v2795
  %v3104 = vpack.c.b16 %v2803, %v2796
  %v3105 = vpack.c.b16 %v2804, %v2797
  %v3106 = vpack.c.b16 %v2805, %v2798
  %v3107 = vpack.c.b16 %v2806, %v2799
  %v3108 = vpack.c.b16 %v2814, %v2807
  %v3109 = vpack.c.b16 %v2815, %v2808
  %v3110 = vpack.c.b16 %v2816, %v2809
  %v3111 = vpack.c.b16 %v2817, %v2810
  %v3112 = vpack.c.b16 %v2818, %v2811
  %v3113 = vpack.c.b16 %v2819, %v2812
  %v3114 = vpack.c.b16 %v2820, %v2813
  %v3115 = vpack.c.b16 %v2828, %v2821
  %v3116 = vpack.c.b16 %v2829, %v2822
  %v3117 = vpack.c.b16 %v2830, %v2823
  %v3118 = vpack.c.b16 %v2831, %v2824
  %v3119 = vpack.c.b16 %v2832, %v2825
  %v3120 = vpack.c.b16 %v2833, %v2826
  %v3121 = vpack.c.b16 %v2834, %v2827
  %v3122 = vpack.c.b16 %v2842, %v2835
  %v3123 = vpack.c.b16 %v2843, %v2836
  %v3124 = vpack.c.b16 %v2844, %v2837
  %v3125 = vpack.c.b16 %v2845, %v2838
  %v3126 = vpack.c.b16 %v2846, %v2839
  %v3127 = vpack.c.b16 %v2847, %v2840
  %v3128 = vpack.c.b16 %v2848, %v2841
  %v3129 = vpack.c.b16 %v2856, %v2849
  %v3130 = vpack.c.b16 %v2857, %v2850
  %v3131 = vpack.c.b16 %v2858, %v2851
  %v3132 = vpack.c.b16 %v2859, %v2852
  %v3133 = vpack.c.b16 %v2860, %v2853
  %v3134 = vpack.c.b16 %v2861, %v2854
  %v3135 = vpack.c.b16 %v2862, %v2855
  %v3136 = vpack.c.b16 %v2870, %v2863
  %v3137 = vpack.c.b16 %v2871, %v2864
  %v3138 = vpack.c.b16 %v2872, %v2865
  %v3139 = vpack.c.b16 %v2873, %v2866
  %v3140 = vpack.c.b16 %v2874, %v2867
  %v3141 = vpack.c.b16 %v2875, %v2868
  %v3142 = vpack.c.b16 %v2876, %v2869
  %v3143 = vpack.c.b16 %v2884, %v2877
  %v3144 = vpack.c.b16 %v2885, %v2878
  %v3145 = vpack.c.b16 %v2886, %v2879
  %v3146 = vpack.c.b16 %v2887, %v2880
  %v3147 = vpack.c.b16 %v2888, %v2881
  %v3148 = vpack.c.b16 %v2889, %v2882
  %v3149 = vpack.c.b16 %v2890, %v2883
  %v3150 = vpack.c.b16 %v2898, %v2891
  %v3151 = vpack.c.b16 %v2899, %v2892
  %v3152 = vpack.c.b16 %v2900, %v2893
  %v3153 = vpack.c.b16 %v2901, %v2894
  %v3154 = vpack.c.b16 %v2902, %v2895
  %v3155 = vpack.c.b16 %v2903, %v2896
  %v3156 = vpack.c.b16 %v2904, %v2897
  %v3157 = vpack.c.b16 %v2912, %v2905
  %v3158 = vpack.c.b16 %v2913, %v2906
  %v3159 = vpack.c.b16 %v2914, %v2907
  %v3160 = vpack.c.b16 %v2915, %v2908
  %v3161 = vpack.c.b16 %v2916, %v2909
  %v3162 = vpack.c.b16 %v2917, %v2910
  %v3163 = vpack.c.b16 %v2918, %v2911
  %v3164 = vpack.c.b16 %v2926, %v2919
  %v3165 = vpack.c.b16 %v2927, %v2920
  %v3166 = vpack.c.b16 %v2928, %v2921
  %v3167 = vpack.c.b16 %v2929, %v2922
  %v3168 = vpack.c.b16 %v2930, %v2923
  %v3169 = vpack.c.b16 %v2931, %v2924
  %v3170 = vpack.c.b16 %v2932, %v2925
  %v3171 = vpack.c.b16 %v2940, %v2933
  %v3172 = vpack.c.b16 %v2941, %v2934
  %v3173 = vpack.c.b16 %v2942, %v2935
  %v3174 = vpack.c.b16 %v2943, %v2936
  %v3175 = vpack.c.b16 %v2944, %v2937
  %v3176 = vpack.c.b16 %v2945, %v2938
  %v3177 = vpack.c.b16 %v2946, %v2939
  %v3178 = vpack.c.b16 %v2954, %v2947
  %v3179 = vpack.c.b16 %v2955, %v2948
  %v3180 = vpack.c.b16 %v2956, %v2949
  %v3181 = vpack.c.b16 %v2957, %v2950
  %v3182 = vpack.c.b16 %v2958, %v2951
  %v3183 = vpack.c.b16 %v2959, %v2952
  %v3184 = vpack.c.b16 %v2960, %v2953
  %v3185 = vpack.c.b16 %v2968, %v2961
  %v3186 = vpack.c.b16 %v2969, %v2962
  %v3187 = vpack.c.b16 %v2970, %v2963
  %v3188 = vpack.c.b16 %v2971, %v2964
  %v3189 = vpack.c.b16 %v2972, %v2965
  %v3190 = vpack.c.b16 %v2973, %v2966
  %v3191 = vpack.c.b16 %v2974, %v2967
  %v3192 = vpack.c.b16 %v2982, %v2975
  %v3193 = vpack.c.b16 %v2983, %v2976
  %v3194 = vpack.c.b16 %v2984, %v2977
  %v3195 = vpack.c.b16 %v2985, %v2978
  %v3196 = vpack.c.b16 %v2986, %v2979
  %v3197 = vpack.c.b16 %v2987, %v2980
  %v3198 = vpack.c.b16 %v2988, %v2981
  %v3199 = vpack.c.b16 %v2996, %v2989
  %v3200 = vpack.c.b16 %v2997, %v2990
  %v3201 = vpack.c.b16 %v2998, %v2991
  %v3202 = vpack.c.b16 %v2999, %v2992
  %v3203 = vpack.c.b16 %v3000, %v2993
  %v3204 = vpack.c.b16 %v3001, %v2994
  %v3205 = vpack.c.b16 %v3002, %v2995
  %v3206 = vpack.c.b16 %v3010, %v3003
  %v3207 = vpack.c.b16 %v3011, %v3004
  %v3208 = vpack.c.b16 %v3012, %v3005
  %v3209 = vpack.c.b16 %v3013, %v3006
  %v3210 = vpack.c.b16 %v3014, %v3007
  %v3211 = vpack.c.b16 %v3015, %v3008
  %v3212 = vpack.c.b16 %v3016, %v3009
  %v3213 = vpack.c.b16 %v3024, %v3017
  %v3214 = vpack.c.b16 %v3025, %v3018
  %v3215 = vpack.c.b16 %v3026, %v3019
  %v3216 = vpack.c.b16 %v3027, %v3020
  %v3217 = vpack.c.b16 %v3028, %v3021
  %v3218 = vpack.c.b16 %v3029, %v3022
  %v3219 = vpack.c.b16 %v3030, %v3023
  %v3220 = vpack.c.b16 %v3038, %v3031
  %v3221 = vpack.c.b16 %v3039, %v3032
  %v3222 = vpack.c.b16 %v3040, %v3033
  %v3223 = vpack.c.b16 %v3041, %v3034
  %v3224 = vpack.c.b16 %v3042, %v3035
  %v3225 = vpack.c.b16 %v3043, %v3036
  %v3226 = vpack.c.b16 %v3044, %v3037
  %v3227 = vpack.c.b16 %v3052, %v3045
  %v3228 = vpack.c.b16 %v3053, %v3046
  %v3229 = vpack.c.b16 %v3054, %v3047
  %v3230 = vpack.c.b16 %v3055, %v3048
  %v3231 = vpack.c.b16 %v3056, %v3049
  %v3232 = vpack.c.b16 %v3057, %v3050
  %v3233 = vpack.c.b16 %v3058, %v3051
  %v3410 = vsel %vm1279, %v2271, 0
  %3412 = vmatprep.subr.bf16.mxu0 %v3060
  %3413 = vmatpush1.bf16.msra.mxu0 %v3059
  %3414 = vmatprep.subr.bf16.mxu0 %v3067
  %3415 = vmatpush1.bf16.msra.mxu0 %v3066
  %3416 = vmatprep.subr.bf16.mxu0 %v3074
  %3417 = vmatpush1.bf16.msra.mxu0 %v3073
  %3418 = vmatprep.subr.bf16.mxu0 %v3081
  %3419 = vmatpush1.bf16.msra.mxu0 %v3080
  %3420 = vmatprep.subr.bf16.mxu0 %v3088
  %3421 = vmatpush1.bf16.msra.mxu0 %v3087
  %3422 = vmatprep.subr.bf16.mxu0 %v3095
  %3423 = vmatpush1.bf16.msra.mxu0 %v3094
  %3424 = vmatprep.subr.bf16.mxu0 %v3102
  %3425 = vmatpush1.bf16.msra.mxu0 %v3101
  %3426 = vmatprep.subr.bf16.mxu0 %v3109
  %3427 = vmatpush1.bf16.msra.mxu0 %v3108
  %3428 = vmatprep.subr.bf16.mxu0 %v3116
  %3429 = vmatpush1.bf16.msra.mxu0 %v3115
  %3430 = vmatprep.subr.bf16.mxu0 %v3123
  %3431 = vmatpush1.bf16.msra.mxu0 %v3122
  %3432 = vmatprep.subr.bf16.mxu0 %v3130
  %3433 = vmatpush1.bf16.msra.mxu0 %v3129
  %3434 = vmatprep.subr.bf16.mxu0 %v3137
  %3435 = vmatpush1.bf16.msra.mxu0 %v3136
  %3436 = vmatprep.subr.bf16.mxu0 %v3144
  %3437 = vmatpush1.bf16.msra.mxu0 %v3143
  %3438 = vmatprep.subr.bf16.mxu0 %v3151
  %3439 = vmatpush1.bf16.msra.mxu0 %v3150
  %3440 = vmatprep.subr.bf16.mxu0 %v3158
  %3441 = vmatpush1.bf16.msra.mxu0 %v3157
  %3442 = vmatprep.subr.bf16.mxu0 %v3165
  %3443 = vmatpush1.bf16.msra.mxu0 %v3164
  %3444 = vmatprep.mubr.bf16.mxu0 %v2269
  %3445 = vmatmul.mubr.bf16.gmra.mrb[0].mxu0 %v2268
  %v3446 = vpop.f32.mrb[0].mxu0
  %v3447 = vadd.f32 %v2477, %v3446
  %v3448 = vpop.f32.mrb[0].mxu0
  %v3449 = vadd.f32 %v2481, %v3448
  %v3450 = vpop.f32.mrb[0].mxu0
  %v3451 = vadd.f32 %v2477, %v3450
  %v3452 = vpop.f32.mrb[0].mxu0
  %v3453 = vadd.f32 %v2481, %v3452
  %3454 = vdwg.mxu0
  %3455 = vmatprep.subr.bf16.mxu0 %v3172
  %3456 = vmatpush1.bf16.msra.mxu0 %v3171
  %3457 = vmatprep.subr.bf16.mxu0 %v3179
  %3458 = vmatpush1.bf16.msra.mxu0 %v3178
  %3459 = vmatprep.subr.bf16.mxu0 %v3186
  %3460 = vmatpush1.bf16.msra.mxu0 %v3185
  %3461 = vmatprep.subr.bf16.mxu0 %v3193
  %3462 = vmatpush1.bf16.msra.mxu0 %v3192
  %3463 = vmatprep.subr.bf16.mxu0 %v3200
  %3464 = vmatpush1.bf16.msra.mxu0 %v3199
  %3465 = vmatprep.subr.bf16.mxu0 %v3207
  %3466 = vmatpush1.bf16.msra.mxu0 %v3206
  %3467 = vmatprep.subr.bf16.mxu0 %v3214
  %3468 = vmatpush1.bf16.msra.mxu0 %v3213
  %3469 = vmatprep.subr.bf16.mxu0 %v3221
  %3470 = vmatpush1.bf16.msra.mxu0 %v3220
  %3471 = vmatprep.subr.bf16.mxu0 %v3228
  %3472 = vmatpush1.bf16.msra.mxu0 %v3227
  %3473 = vmatprep.subr.bf16.mxu0 0
  %3474 = vmatpush1.bf16.msra.mxu0 0
  %3475 = vmatprep.subr.bf16.mxu0 0
  %3476 = vmatpush1.bf16.msra.mxu0 0
  %3477 = vmatprep.subr.bf16.mxu0 0
  %3478 = vmatpush1.bf16.msra.mxu0 0
  %3479 = vmatprep.subr.bf16.mxu0 0
  %3480 = vmatpush1.bf16.msra.mxu0 0
  %3481 = vmatprep.subr.bf16.mxu0 0
  %3482 = vmatpush1.bf16.msra.mxu0 0
  %3483 = vmatprep.subr.bf16.mxu0 0
  %3484 = vmatpush1.bf16.msra.mxu0 0
  %3485 = vmatprep.subr.bf16.mxu0 0
  %3486 = vmatpush1.bf16.msra.mxu0 0
  %3487 = vmatprep.mubr.bf16.mxu0 %v3410
  %3488 = vmatmul.mubr.bf16.gmra.mrb[0].mxu0 %v2270
  %v3489 = vpop.f32.mrb[0].mxu0
  %v3490 = vadd.f32 %v3447, %v3489
  %v3491 = vpop.f32.mrb[0].mxu0
  %v3492 = vadd.f32 %v3449, %v3491
  %v3493 = vpop.f32.mrb[0].mxu0
  %v3494 = vadd.f32 %v3451, %v3493
  %v3495 = vpop.f32.mrb[0].mxu0
  %v3496 = vadd.f32 %v3453, %v3495
  %3497 = vdwg.mxu0
  %3498 = vmatprep.subr.bf16.mxu0 %v3062
  %3499 = vmatpush1.bf16.msra.mxu0 %v3061
  %3500 = vmatprep.subr.bf16.mxu0 %v3069
  %3501 = vmatpush1.bf16.msra.mxu0 %v3068
  %3502 = vmatprep.subr.bf16.mxu0 %v3076
  %3503 = vmatpush1.bf16.msra.mxu0 %v3075
  %3504 = vmatprep.subr.bf16.mxu0 %v3083
  %3505 = vmatpush1.bf16.msra.mxu0 %v3082
  %3506 = vmatprep.subr.bf16.mxu0 %v3090
  %3507 = vmatpush1.bf16.msra.mxu0 %v3089
  %3508 = vmatprep.subr.bf16.mxu0 %v3097
  %3509 = vmatpush1.bf16.msra.mxu0 %v3096
  %3510 = vmatprep.subr.bf16.mxu0 %v3104
  %3511 = vmatpush1.bf16.msra.mxu0 %v3103
  %3512 = vmatprep.subr.bf16.mxu0 %v3111
  %3513 = vmatpush1.bf16.msra.mxu0 %v3110
  %3514 = vmatprep.subr.bf16.mxu0 %v3118
  %3515 = vmatpush1.bf16.msra.mxu0 %v3117
  %3516 = vmatprep.subr.bf16.mxu0 %v3125
  %3517 = vmatpush1.bf16.msra.mxu0 %v3124
  %3518 = vmatprep.subr.bf16.mxu0 %v3132
  %3519 = vmatpush1.bf16.msra.mxu0 %v3131
  %3520 = vmatprep.subr.bf16.mxu0 %v3139
  %3521 = vmatpush1.bf16.msra.mxu0 %v3138
  %3522 = vmatprep.subr.bf16.mxu0 %v3146
  %3523 = vmatpush1.bf16.msra.mxu0 %v3145
  %3524 = vmatprep.subr.bf16.mxu0 %v3153
  %3525 = vmatpush1.bf16.msra.mxu0 %v3152
  %3526 = vmatprep.subr.bf16.mxu0 %v3160
  %3527 = vmatpush1.bf16.msra.mxu0 %v3159
  %3528 = vmatprep.subr.bf16.mxu0 %v3167
  %3529 = vmatpush1.bf16.msra.mxu0 %v3166
  %3530 = vmatprep.mubr.bf16.mxu0 %v2269
  %3531 = vmatmul.mubr.bf16.gmra.mrb[0].mxu0 %v2268
  %v3532 = vpop.f32.mrb[0].mxu0
  %v3533 = vadd.f32 %v2485, %v3532
  %v3534 = vpop.f32.mrb[0].mxu0
  %v3535 = vadd.f32 %v2489, %v3534
  %v3536 = vpop.f32.mrb[0].mxu0
  %v3537 = vadd.f32 %v2485, %v3536
  %v3538 = vpop.f32.mrb[0].mxu0
  %v3539 = vadd.f32 %v2489, %v3538
  %3540 = vdwg.mxu0
  %3541 = vmatprep.subr.bf16.mxu0 %v3174
  %3542 = vmatpush1.bf16.msra.mxu0 %v3173
  %3543 = vmatprep.subr.bf16.mxu0 %v3181
  %3544 = vmatpush1.bf16.msra.mxu0 %v3180
  %3545 = vmatprep.subr.bf16.mxu0 %v3188
  %3546 = vmatpush1.bf16.msra.mxu0 %v3187
  %3547 = vmatprep.subr.bf16.mxu0 %v3195
  %3548 = vmatpush1.bf16.msra.mxu0 %v3194
  %3549 = vmatprep.subr.bf16.mxu0 %v3202
  %3550 = vmatpush1.bf16.msra.mxu0 %v3201
  %3551 = vmatprep.subr.bf16.mxu0 %v3209
  %3552 = vmatpush1.bf16.msra.mxu0 %v3208
  %3553 = vmatprep.subr.bf16.mxu0 %v3216
  %3554 = vmatpush1.bf16.msra.mxu0 %v3215
  %3555 = vmatprep.subr.bf16.mxu0 %v3223
  %3556 = vmatpush1.bf16.msra.mxu0 %v3222
  %3557 = vmatprep.subr.bf16.mxu0 %v3230
  %3558 = vmatpush1.bf16.msra.mxu0 %v3229
  %3559 = vmatprep.subr.bf16.mxu0 0
  %3560 = vmatpush1.bf16.msra.mxu0 0
  %3561 = vmatprep.subr.bf16.mxu0 0
  %3562 = vmatpush1.bf16.msra.mxu0 0
  %3563 = vmatprep.subr.bf16.mxu0 0
  %3564 = vmatpush1.bf16.msra.mxu0 0
  %3565 = vmatprep.subr.bf16.mxu0 0
  %3566 = vmatpush1.bf16.msra.mxu0 0
  %3567 = vmatprep.subr.bf16.mxu0 0
  %3568 = vmatpush1.bf16.msra.mxu0 0
  %3569 = vmatprep.subr.bf16.mxu0 0
  %3570 = vmatpush1.bf16.msra.mxu0 0
  %3571 = vmatprep.subr.bf16.mxu0 0
  %3572 = vmatpush1.bf16.msra.mxu0 0
  %3573 = vmatprep.mubr.bf16.mxu0 %v3410
  %3574 = vmatmul.mubr.bf16.gmra.mrb[0].mxu0 %v2270
  %v3575 = vpop.f32.mrb[0].mxu0
  %v3576 = vadd.f32 %v3533, %v3575
  %v3577 = vpop.f32.mrb[0].mxu0
  %v3578 = vadd.f32 %v3535, %v3577
  %v3579 = vpop.f32.mrb[0].mxu0
  %v3580 = vadd.f32 %v3537, %v3579
  %v3581 = vpop.f32.mrb[0].mxu0
  %v3582 = vadd.f32 %v3539, %v3581
  %3583 = vdwg.mxu0
  %3584 = vmatprep.subr.bf16.mxu0 %v3064
  %3585 = vmatpush1.bf16.msra.mxu0 %v3063
  %3586 = vmatprep.subr.bf16.mxu0 %v3071
  %3587 = vmatpush1.bf16.msra.mxu0 %v3070
  %3588 = vmatprep.subr.bf16.mxu0 %v3078
  %3589 = vmatpush1.bf16.msra.mxu0 %v3077
  %3590 = vmatprep.subr.bf16.mxu0 %v3085
  %3591 = vmatpush1.bf16.msra.mxu0 %v3084
  %3592 = vmatprep.subr.bf16.mxu0 %v3092
  %3593 = vmatpush1.bf16.msra.mxu0 %v3091
  %3594 = vmatprep.subr.bf16.mxu0 %v3099
  %3595 = vmatpush1.bf16.msra.mxu0 %v3098
  %3596 = vmatprep.subr.bf16.mxu0 %v3106
  %3597 = vmatpush1.bf16.msra.mxu0 %v3105
  %3598 = vmatprep.subr.bf16.mxu0 %v3113
  %3599 = vmatpush1.bf16.msra.mxu0 %v3112
  %3600 = vmatprep.subr.bf16.mxu0 %v3120
  %3601 = vmatpush1.bf16.msra.mxu0 %v3119
  %3602 = vmatprep.subr.bf16.mxu0 %v3127
  %3603 = vmatpush1.bf16.msra.mxu0 %v3126
  %3604 = vmatprep.subr.bf16.mxu0 %v3134
  %3605 = vmatpush1.bf16.msra.mxu0 %v3133
  %3606 = vmatprep.subr.bf16.mxu0 %v3141
  %3607 = vmatpush1.bf16.msra.mxu0 %v3140
  %3608 = vmatprep.subr.bf16.mxu0 %v3148
  %3609 = vmatpush1.bf16.msra.mxu0 %v3147
  %3610 = vmatprep.subr.bf16.mxu0 %v3155
  %3611 = vmatpush1.bf16.msra.mxu0 %v3154
  %3612 = vmatprep.subr.bf16.mxu0 %v3162
  %3613 = vmatpush1.bf16.msra.mxu0 %v3161
  %3614 = vmatprep.subr.bf16.mxu0 %v3169
  %3615 = vmatpush1.bf16.msra.mxu0 %v3168
  %3616 = vmatprep.mubr.bf16.mxu0 %v2269
  %3617 = vmatmul.mubr.bf16.gmra.mrb[0].mxu0 %v2268
  %v3618 = vpop.f32.mrb[0].mxu0
  %v3619 = vadd.f32 %v2493, %v3618
  %v3620 = vpop.f32.mrb[0].mxu0
  %v3621 = vadd.f32 %v2497, %v3620
  %v3622 = vpop.f32.mrb[0].mxu0
  %v3623 = vadd.f32 %v2493, %v3622
  %v3624 = vpop.f32.mrb[0].mxu0
  %v3625 = vadd.f32 %v2497, %v3624
  %3626 = vdwg.mxu0
  %3627 = vmatprep.subr.bf16.mxu0 %v3176
  %3628 = vmatpush1.bf16.msra.mxu0 %v3175
  %3629 = vmatprep.subr.bf16.mxu0 %v3183
  %3630 = vmatpush1.bf16.msra.mxu0 %v3182
  %3631 = vmatprep.subr.bf16.mxu0 %v3190
  %3632 = vmatpush1.bf16.msra.mxu0 %v3189
  %3633 = vmatprep.subr.bf16.mxu0 %v3197
  %3634 = vmatpush1.bf16.msra.mxu0 %v3196
  %3635 = vmatprep.subr.bf16.mxu0 %v3204
  %3636 = vmatpush1.bf16.msra.mxu0 %v3203
  %3637 = vmatprep.subr.bf16.mxu0 %v3211
  %3638 = vmatpush1.bf16.msra.mxu0 %v3210
  %3639 = vmatprep.subr.bf16.mxu0 %v3218
  %3640 = vmatpush1.bf16.msra.mxu0 %v3217
  %3641 = vmatprep.subr.bf16.mxu0 %v3225
  %3642 = vmatpush1.bf16.msra.mxu0 %v3224
  %3643 = vmatprep.subr.bf16.mxu0 %v3232
  %3644 = vmatpush1.bf16.msra.mxu0 %v3231
  %3645 = vmatprep.subr.bf16.mxu0 0
  %3646 = vmatpush1.bf16.msra.mxu0 0
  %3647 = vmatprep.subr.bf16.mxu0 0
  %3648 = vmatpush1.bf16.msra.mxu0 0
  %3649 = vmatprep.subr.bf16.mxu0 0
  %3650 = vmatpush1.bf16.msra.mxu0 0
  %3651 = vmatprep.subr.bf16.mxu0 0
  %3652 = vmatpush1.bf16.msra.mxu0 0
  %3653 = vmatprep.subr.bf16.mxu0 0
  %3654 = vmatpush1.bf16.msra.mxu0 0
  %3655 = vmatprep.subr.bf16.mxu0 0
  %3656 = vmatpush1.bf16.msra.mxu0 0
  %3657 = vmatprep.subr.bf16.mxu0 0
  %3658 = vmatpush1.bf16.msra.mxu0 0
  %3659 = vmatprep.mubr.bf16.mxu0 %v3410
  %3660 = vmatmul.mubr.bf16.gmra.mrb[0].mxu0 %v2270
  %v3661 = vpop.f32.mrb[0].mxu0
  %v3662 = vadd.f32 %v3619, %v3661
  %v3663 = vpop.f32.mrb[0].mxu0
  %v3664 = vadd.f32 %v3621, %v3663
  %v3665 = vpop.f32.mrb[0].mxu0
  %v3666 = vadd.f32 %v3623, %v3665
  %v3667 = vpop.f32.mrb[0].mxu0
  %v3668 = vadd.f32 %v3625, %v3667
  %3669 = vdwg.mxu0
  %3670 = vmatprep.subr.bf16.mxu0 0
  %3671 = vmatpush1.bf16.msra.mxu0 %v3065
  %3672 = vmatprep.subr.bf16.mxu0 0
  %3673 = vmatpush1.bf16.msra.mxu0 %v3072
  %3674 = vmatprep.subr.bf16.mxu0 0
  %3675 = vmatpush1.bf16.msra.mxu0 %v3079
  %3676 = vmatprep.subr.bf16.mxu0 0
  %3677 = vmatpush1.bf16.msra.mxu0 %v3086
  %3678 = vmatprep.subr.bf16.mxu0 0
  %3679 = vmatpush1.bf16.msra.mxu0 %v3093
  %3680 = vmatprep.subr.bf16.mxu0 0
  %3681 = vmatpush1.bf16.msra.mxu0 %v3100
  %3682 = vmatprep.subr.bf16.mxu0 0
  %3683 = vmatpush1.bf16.msra.mxu0 %v3107
  %3684 = vmatprep.subr.bf16.mxu0 0
  %3685 = vmatpush1.bf16.msra.mxu0 %v3114
  %3686 = vmatprep.subr.bf16.mxu0 0
  %3687 = vmatpush1.bf16.msra.mxu0 %v3121
  %3688 = vmatprep.subr.bf16.mxu0 0
  %3689 = vmatpush1.bf16.msra.mxu0 %v3128
  %3690 = vmatprep.subr.bf16.mxu0 0
  %3691 = vmatpush1.bf16.msra.mxu0 %v3135
  %3692 = vmatprep.subr.bf16.mxu0 0
  %3693 = vmatpush1.bf16.msra.mxu0 %v3142
  %3694 = vmatprep.subr.bf16.mxu0 0
  %3695 = vmatpush1.bf16.msra.mxu0 %v3149
  %3696 = vmatprep.subr.bf16.mxu0 0
  %3697 = vmatpush1.bf16.msra.mxu0 %v3156
  %3698 = vmatprep.subr.bf16.mxu0 0
  %3699 = vmatpush1.bf16.msra.mxu0 %v3163
  %3700 = vmatprep.subr.bf16.mxu0 0
  %3701 = vmatpush1.bf16.msra.mxu0 %v3170
  %3702 = vmatprep.mubr.bf16.mxu0 %v2269
  %3703 = vmatmul.mubr.bf16.gmra.mrb[0].mxu0 %v2268
  %v3704 = vpop.f32.mrb[0].mxu0
  %v3705 = vadd.f32 %v2501, %v3704
  %v3706 = vpop.f32.mrb[0].mxu0
  %v3707 = vpop.f32.mrb[0].mxu0
  %v3708 = vadd.f32 %v2501, %v3707
  %v3709 = vpop.f32.mrb[0].mxu0
  %3710 = vdwg.mxu0
  %3711 = vmatprep.subr.bf16.mxu0 0
  %3712 = vmatpush1.bf16.msra.mxu0 %v3177
  %3713 = vmatprep.subr.bf16.mxu0 0
  %3714 = vmatpush1.bf16.msra.mxu0 %v3184
  %3715 = vmatprep.subr.bf16.mxu0 0
  %3716 = vmatpush1.bf16.msra.mxu0 %v3191
  %3717 = vmatprep.subr.bf16.mxu0 0
  %3718 = vmatpush1.bf16.msra.mxu0 %v3198
  %3719 = vmatprep.subr.bf16.mxu0 0
  %3720 = vmatpush1.bf16.msra.mxu0 %v3205
  %3721 = vmatprep.subr.bf16.mxu0 0
  %3722 = vmatpush1.bf16.msra.mxu0 %v3212
  %3723 = vmatprep.subr.bf16.mxu0 0
  %3724 = vmatpush1.bf16.msra.mxu0 %v3219
  %3725 = vmatprep.subr.bf16.mxu0 0
  %3726 = vmatpush1.bf16.msra.mxu0 %v3226
  %3727 = vmatprep.subr.bf16.mxu0 0
  %3728 = vmatpush1.bf16.msra.mxu0 %v3233
  %3729 = vmatprep.subr.bf16.mxu0 0
  %3730 = vmatpush1.bf16.msra.mxu0 0
  %3731 = vmatprep.subr.bf16.mxu0 0
  %3732 = vmatpush1.bf16.msra.mxu0 0
  %3733 = vmatprep.subr.bf16.mxu0 0
  %3734 = vmatpush1.bf16.msra.mxu0 0
  %3735 = vmatprep.subr.bf16.mxu0 0
  %3736 = vmatpush1.bf16.msra.mxu0 0
  %3737 = vmatprep.subr.bf16.mxu0 0
  %3738 = vmatpush1.bf16.msra.mxu0 0
  %3739 = vmatprep.subr.bf16.mxu0 0
  %3740 = vmatpush1.bf16.msra.mxu0 0
  %3741 = vmatprep.subr.bf16.mxu0 0
  %3742 = vmatpush1.bf16.msra.mxu0 0
  %3743 = vmatprep.mubr.bf16.mxu0 %v3410
  %3744 = vmatmul.mubr.bf16.gmra.mrb[0].mxu0 %v2270
  %v3745 = vpop.f32.mrb[0].mxu0
  %v3746 = vadd.f32 %v3705, %v3745
  %v3747 = vpop.f32.mrb[0].mxu0
  %v3748 = vpop.f32.mrb[0].mxu0
  %v3749 = vadd.f32 %v3708, %v3748
  %v3750 = vpop.f32.mrb[0].mxu0
  %3751 = vdwg.mxu0
  %v3752 = vxor.u32 %v3490, 2147483648
  %v3753 = vxor.u32 %v3492, 2147483648
  %v3754 = vxor.u32 %v3576, 2147483648
  %v3755 = vxor.u32 %v3578, 2147483648
  %v3756 = vxor.u32 %v3662, 2147483648
  %v3757 = vxor.u32 %v3664, 2147483648
  %v3758 = vxor.u32 %v3746, 2147483648
  %v3759 = vxor.u32 %v3494, 2147483648
  %v3760 = vxor.u32 %v3496, 2147483648
  %v3761 = vxor.u32 %v3580, 2147483648
  %v3762 = vxor.u32 %v3582, 2147483648
  %v3763 = vxor.u32 %v3666, 2147483648
  %v3764 = vxor.u32 %v3668, 2147483648
  %v3765 = vxor.u32 %v3749, 2147483648
  %v3766 = vmul.f32 %v3752, 1.442695
  %v3767 = vpow.pop %v3766
  %v3768 = vmul.f32 %v3753, 1.442695
  %v3769 = vpow.pop %v3768
  %v3770 = vmul.f32 %v3754, 1.442695
  %v3771 = vpow.pop %v3770
  %v3772 = vmul.f32 %v3755, 1.442695
  %v3773 = vpow.pop %v3772
  %v3774 = vmul.f32 %v3756, 1.442695
  %v3775 = vpow.pop %v3774
  %v3776 = vmul.f32 %v3757, 1.442695
  %v3777 = vpow.pop %v3776
  %v3778 = vmul.f32 %v3758, 1.442695
  %v3779 = vpow.pop %v3778
  %v3780 = vmul.f32 %v3759, 1.442695
  %v3781 = vpow.pop %v3780
  %v3782 = vmul.f32 %v3760, 1.442695
  %v3783 = vpow.pop %v3782
  %v3784 = vmul.f32 %v3761, 1.442695
  %v3785 = vpow.pop %v3784
  %v3786 = vmul.f32 %v3762, 1.442695
  %v3787 = vpow.pop %v3786
  %v3788 = vmul.f32 %v3763, 1.442695
  %v3789 = vpow.pop %v3788
  %v3790 = vmul.f32 %v3764, 1.442695
  %v3791 = vpow.pop %v3790
  %v3792 = vmul.f32 %v3765, 1.442695
  %v3793 = vpow.pop %v3792
  %v3794 = vadd.f32 %v3767, 1.0
  %v3795 = vadd.f32 %v3769, 1.0
  %v3796 = vadd.f32 %v3771, 1.0
  %v3797 = vadd.f32 %v3773, 1.0
  %v3798 = vadd.f32 %v3775, 1.0
  %v3799 = vadd.f32 %v3777, 1.0
  %v3800 = vadd.f32 %v3779, 1.0
  %v3801 = vadd.f32 %v3781, 1.0
  %v3802 = vadd.f32 %v3783, 1.0
  %v3803 = vadd.f32 %v3785, 1.0
  %v3804 = vadd.f32 %v3787, 1.0
  %v3805 = vadd.f32 %v3789, 1.0
  %v3806 = vadd.f32 %v3791, 1.0
  %v3807 = vadd.f32 %v3793, 1.0
  %v3808 = vrcp.pop %v3794
  %v3809 = vmul.f32 1.0, %v3808
  %v3810 = vrcp.pop %v3795
  %v3811 = vmul.f32 1.0, %v3810
  %v3812 = vrcp.pop %v3796
  %v3813 = vmul.f32 1.0, %v3812
  %v3814 = vrcp.pop %v3797
  %v3815 = vmul.f32 1.0, %v3814
  %v3816 = vrcp.pop %v3798
  %v3817 = vmul.f32 1.0, %v3816
  %v3818 = vrcp.pop %v3799
  %v3819 = vmul.f32 1.0, %v3818
  %v3820 = vrcp.pop %v3800
  %v3821 = vmul.f32 1.0, %v3820
  %v3822 = vrcp.pop %v3801
  %v3823 = vmul.f32 1.0, %v3822
  %v3824 = vrcp.pop %v3802
  %v3825 = vmul.f32 1.0, %v3824
  %v3826 = vrcp.pop %v3803
  %v3827 = vmul.f32 1.0, %v3826
  %v3828 = vrcp.pop %v3804
  %v3829 = vmul.f32 1.0, %v3828
  %v3830 = vrcp.pop %v3805
  %v3831 = vmul.f32 1.0, %v3830
  %v3832 = vrcp.pop %v3806
  %v3833 = vmul.f32 1.0, %v3832
  %v3834 = vrcp.pop %v3807
  %v3835 = vmul.f32 1.0, %v3834
  %v3836 = vpack.c.bf16 %v3823, %v3809
  %v3837 = vpack.c.bf16 %v3825, %v3811
  %v3838 = vpack.c.bf16 %v3827, %v3813
  %v3839 = vpack.c.bf16 %v3829, %v3815
  %v3840 = vpack.c.bf16 %v3831, %v3817
  %v3841 = vpack.c.bf16 %v3833, %v3819
  %v3842 = vpack.c.bf16 %v3835, %v3821
  %v3850 = vunpack.c.l.b16 %v3836
  %v3851 = vunpack.c.l.b16 %v3837
  %v3852 = vunpack.c.l.b16 %v3838
  %v3853 = vunpack.c.l.b16 %v3839
  %v3854 = vunpack.c.l.b16 %v3840
  %v3855 = vunpack.c.l.b16 %v3841
  %v3856 = vunpack.c.l.b16 %v3842
  %v3857 = vunpack.c.h.b16 %v3836
  %v3858 = vunpack.c.h.b16 %v3837
  %v3859 = vunpack.c.h.b16 %v3838
  %v3860 = vunpack.c.h.b16 %v3839
  %v3861 = vunpack.c.h.b16 %v3840
  %v3862 = vunpack.c.h.b16 %v3841
  %v3863 = vunpack.c.h.b16 %v3842
  %v3864 = vpack.c.b16 %v3851, %v3850
  %v3865 = vpack.c.b16 %v3853, %v3852
  %v3866 = vpack.c.b16 %v3855, %v3854
  %v3867 = vpack.c.b16 %v3856, %v3856
  %v3868 = vpack.c.b16 %v3858, %v3857
  %v3869 = vpack.c.b16 %v3860, %v3859
  %v3870 = vpack.c.b16 %v3862, %v3861
  %v3871 = vpack.c.b16 %v3863, %v3863
  %3880 = vst [vmem:[%s10] sm:$0xff] %v3864
  %3881 = vst [vmem:[%s10 + $0x8] sm:$0xff] %v3865
  %3882 = vst [vmem:[%s10 + $0x10] sm:$0xff] %v3866
  %vm3883 = vcmask 125952
  %3884 = vst.msk [vmem:[%s10 + $0x18] sm:$0xf] %vm3883, %v3867
  %3885 = vst [vmem:[%s10 + $0x1c] sm:$0xff] %v3868
  %3886 = vst [vmem:[%s10 + $0x24] sm:$0xff] %v3869
  %3887 = vst [vmem:[%s10 + $0x2c] sm:$0xff] %v3870
  %3888 = vst.msk [vmem:[%s10 + $0x34] sm:$0xf] %vm3883, %v3871
  // Predicated region
  $region42: #{vae_forward.1} parent=0 // pred_check
    _
  $region43: #{vae_forward.1} parent=0 // pred_check_branch
    %3890 = sbr.rel (0) target = $region45
  $region44: #{vae_forward.1} parent=0 // pred_region
    _
  $region45: #{vae_forward.1} parent=0 // pred_fallthru
    _
  // Predicated region
  $region46: #{vae_forward.1} parent=0 // pred_check
    _
  $region47: #{vae_forward.1} parent=0 // pred_check_branch
    %3892 = sbr.rel (0) target = $region49
  $region48: #{vae_forward.1} parent=0 // pred_region
    _
  $region49: #{vae_forward.1} parent=0 // pred_fallthru
    _
  // Predicated region
  $region50: #{vae_forward.1} parent=0 // pred_check
    _
  $region51: #{vae_forward.1} parent=0 // pred_check_branch
    %3894 = sbr.rel (0) target = $region53
  $region52: #{vae_forward.1} parent=0 // pred_region
    _
  $region53: #{vae_forward.1} parent=0 // pred_fallthru
    _
  // Predicated region
  $region54: #{vae_forward.1} parent=0 // pred_check
    _
  $region55: #{vae_forward.1} parent=0 // pred_check_branch
    %3896 = sbr.rel (0) target = $region57
  $region56: #{vae_forward.1} parent=0 // pred_region
    _
  $region57: #{vae_forward.1} parent=0 // pred_fallthru
    _

</llo_original>
